<compile_context>
chip_gen: v7x
topology: tpu7x:2x2x1
jax: 0.10.0
libtpu: 0.0.40
codegen_flags: <defaults>
</compile_context>

<pallas_src>
import functools

import numpy as np
import jax
import jax.numpy as jnp
from jax import lax
from jax.experimental import pallas as pl
from jax.experimental.pallas import tpu as pltpu


def _replicate_lanes(x, n_rep):
    """[x, x, ..., x] (n_rep copies along the last axis) via log-depth
    doubling: O(log n_rep) lane-axis concats instead of O(n_rep)."""
    pieces = []
    block = x
    remaining = int(n_rep)
    while remaining > 0:
        if remaining & 1:
            pieces.append(block)
        remaining >>= 1
        if remaining:
            block = jnp.concatenate([block, block], axis=-1)
    if len(pieces) == 1:
        return pieces[0]
    return jnp.concatenate(pieces, axis=-1)


def _sinusoidal_kernel(x_ref, scale_ref, phase_ref, o_ref, *, n_rep, n_in,
                       enable_identity):
    """Compute one tile of rows.

    x_ref:     [T, D]      f32
    scale_ref: [1, D_out]  f32  per-column scale (1 for identity columns)
    phase_ref: [1, D_out]  f32  per-column phase (pi/2 for the cosine branch)
    o_ref:     [T, D_out]  f32  columns = [identity | sin(s*x) | sin(s*x+pi/2)]
                                (scale-major / input-dim-minor, as in torch)
    """
    x = x_ref[...]                                     # [T, D]
    rep = _replicate_lanes(x, n_rep)                   # [T, D_out]
    arg = rep * scale_ref[...] + phase_ref[...]        # fused scale + phase
    enc = jnp.sin(arg)                                 # single fused sin
    if enable_identity:
        # Identity columns have scale=1, phase=0 -> arg == x there; select it.
        # (The wasted sin on those 3 lanes is free: EUP has slack.)
        col = lax.broadcasted_iota(jnp.int32, (1, arg.shape[-1]), 1)
        enc = jnp.where(col < n_in, arg, enc)
    o_ref[...] = enc                                   # one full-tile store


def sinusoidal_encode(x, *, min_deg=0, max_deg=10, enable_identity=True,
                      tile_n=8192):
    """Pallas implementation of SinusoidalEncoder.forward.

    Args:
        x: [..., n_input_dims] float32
    Returns:
        [..., n_output_dims] float32,
        n_output_dims = (int(enable_identity) + 2*(max_deg-min_deg+1)) * D
    """
    x = jnp.asarray(x, jnp.float32)
    D = x.shape[-1]

    if max_deg == min_deg:
        return x

    L = max_deg - min_deg + 1
    n_rep = int(enable_identity) + 2 * L
    D_out = n_rep * D

    batch_shape = x.shape[:-1]
    N = int(np.prod(batch_shape)) if batch_shape else 1
    if N == 0:
        return jnp.zeros(batch_shape + (D_out,), jnp.float32)

    x2 = x.reshape(N, D)   # row-major collapse: no data movement

    # Per-column constants, passed as kernel INPUTS (not captured constants).
    scales = (2.0 ** np.arange(min_deg, max_deg + 1)).astype(np.float32)
    scale_enc = np.repeat(scales, D).astype(np.float32)          # [L*D], scale-major
    half_pi = np.float32(0.5 * np.pi)
    if enable_identity:
        scale_row = np.concatenate(
            [np.ones(D, np.float32), scale_enc, scale_enc])
        phase_row = np.concatenate(
            [np.zeros(D + L * D, np.float32),
             np.full(L * D, half_pi, np.float32)])
    else:
        scale_row = np.concatenate([scale_enc, scale_enc])
        phase_row = np.concatenate(
            [np.zeros(L * D, np.float32),
             np.full(L * D, half_pi, np.float32)])
    scale_row = jnp.asarray(scale_row.reshape(1, D_out))
    phase_row = jnp.asarray(phase_row.reshape(1, D_out))

    # Row tile: multiple of 8 (sublane) or the full row extent for small N.
    # Each [T, *] f32 block lane-pads to 128 -> T*512 B in VMEM; see header.
    tile_n = max(8, (int(tile_n) // 8) * 8)
    tile_rows = N if N <= tile_n else tile_n
    grid = (pl.cdiv(N, tile_rows),)

    kernel = functools.partial(
        _sinusoidal_kernel, n_rep=n_rep, n_in=D,
        enable_identity=bool(enable_identity))

    cost = pl.CostEstimate(
        flops=3 * N * D_out,                  # replicate + mul + add per column
        transcendentals=N * 2 * L * D,        # one sin per encoded element
        bytes_accessed=N * (D + D_out) * 4,   # one read of x, one write of out
    )

    out = pl.pallas_call(
        kernel,
        out_shape=jax.ShapeDtypeStruct((N, D_out), jnp.float32),
        grid=grid,
        in_specs=[
            pl.BlockSpec((tile_rows, D), lambda i: (i, 0)),
            pl.BlockSpec((1, D_out), lambda i: (0, 0)),
            pl.BlockSpec((1, D_out), lambda i: (0, 0)),
        ],
        out_specs=pl.BlockSpec((tile_rows, D_out), lambda i: (i, 0)),
        compiler_params=pltpu.CompilerParams(
            dimension_semantics=("parallel",),
            vmem_limit_bytes=48 * 1024 * 1024),
        cost_estimate=cost,
    )(x2, scale_row, phase_row)

    return out.reshape(batch_shape + (D_out,))


def _reference_encode(x, *, min_deg=0, max_deg=10, enable_identity=True):
    """Pure-JAX transcription of the PyTorch forward (for verification)."""
    if max_deg == min_deg:
        return x
    scales = jnp.array([2.0 ** i for i in range(min_deg, max_deg + 1)],
                       jnp.float32)
    D = x.shape[-1]
    L = max_deg - min_deg + 1
    xb = (x[..., None, :] * scales[:, None]).reshape(x.shape[:-1] + (L * D,))
    encoded = jnp.sin(jnp.concatenate([xb, xb + 0.5 * jnp.pi], axis=-1))
    if enable_identity:
        encoded = jnp.concatenate([x, encoded], axis=-1)
    return encoded


if __name__ == "__main__":
    # Module defaults: n_input_dims=3, min_deg=0, max_deg=10, enable_identity=True
    # -> n_output_dims = (1 + 11*2) * 3 = 69.
    # Coordinates in [-1, 1] (typical normalized NeRF inputs).  The sin
    # arguments reach ~2^10 radians, so the absolute tolerance below covers
    # f32 range-reduction differences between the kernel's and XLA's sin
    # implementations at that magnitude; the pre-sin arguments themselves are
    # bit-exact (power-of-two scaling is exact in f32).
    key = jax.random.PRNGKey(0)
    x = jax.random.uniform(key, (2, 100, 3), dtype=jnp.float32,
                           minval=-1.0, maxval=1.0)

    out = jax.block_until_ready(
        sinusoidal_encode(x, min_deg=0, max_deg=10, enable_identity=True))
    assert out.shape == (2, 100, 69), out.shape
    assert out.dtype == jnp.float32
    ref = _reference_encode(x, min_deg=0, max_deg=10, enable_identity=True)
    np.testing.assert_allclose(np.asarray(out), np.asarray(ref),
                               rtol=1e-5, atol=1e-3)

    # Multi-block grid with a partial trailing block + identity disabled.
    x2 = jax.random.uniform(jax.random.fold_in(key, 1), (1000, 3),
                            dtype=jnp.float32, minval=-1.0, maxval=1.0)
    out2 = jax.block_until_ready(
        sinusoidal_encode(x2, enable_identity=False, tile_n=64))
    assert out2.shape == (1000, 66), out2.shape
    ref2 = _reference_encode(x2, enable_identity=False)
    np.testing.assert_allclose(np.asarray(out2), np.asarray(ref2),
                               rtol=1e-5, atol=1e-3)

    print("KERNEL_OK")
</pallas_src>

<mosaic_0001>
module attributes {stable_mosaic.version = 11 : i64} {
  func.func @_sinusoidal_kernel(%arg0: i32, %arg1: memref<200x3xf32, #tpu.memory_space<vmem>>, %arg2: memref<1x69xf32, #tpu.memory_space<vmem>>, %arg3: memref<1x69xf32, #tpu.memory_space<vmem>>, %arg4: memref<200x69xf32, #tpu.memory_space<vmem>>) attributes {dimension_semantics = [#tpu.dimension_semantics<parallel>], iteration_bounds = array<i64: 1>, scalar_prefetch = 0 : i64, scratch_operands = 0 : i64, tpu.core_type = #tpu.core_type<tc>, window_params = [{transform_indices = @transform_0, window_bounds = array<i64: 200, 3>}, {pipeline_mode = #tpu.pipeline_mode<synchronous>, transform_indices = @transform_1, window_bounds = array<i64: 1, 69>}, {pipeline_mode = #tpu.pipeline_mode<synchronous>, transform_indices = @transform_2, window_bounds = array<i64: 1, 69>}, {transform_indices = @transform_3, window_bounds = array<i64: 200, 69>}]} {
    %c0 = arith.constant 0 : index
    %c0_0 = arith.constant 0 : index
    %0 = vector.load %arg1[%c0, %c0_0] : memref<200x3xf32, #tpu.memory_space<vmem>>, vector<200x3xf32>
    %1 = tpu.concatenate %0, %0 in 1 : vector<200x3xf32>, vector<200x3xf32> -> vector<200x6xf32>
    %2 = tpu.concatenate %1, %1 in 1 : vector<200x6xf32>, vector<200x6xf32> -> vector<200x12xf32>
    %3 = tpu.concatenate %2, %2 in 1 : vector<200x12xf32>, vector<200x12xf32> -> vector<200x24xf32>
    %4 = tpu.concatenate %3, %3 in 1 : vector<200x24xf32>, vector<200x24xf32> -> vector<200x48xf32>
    %5 = tpu.concatenate %0, %1, %2, %4 in 1 : vector<200x3xf32>, vector<200x6xf32>, vector<200x12xf32>, vector<200x48xf32> -> vector<200x69xf32>
    %c0_1 = arith.constant 0 : index
    %c0_2 = arith.constant 0 : index
    %6 = vector.load %arg2[%c0_1, %c0_2] : memref<1x69xf32, #tpu.memory_space<vmem>>, vector<1x69xf32>
    %7 = vector.broadcast %6 : vector<1x69xf32> to vector<200x69xf32>
    %8 = arith.mulf %5, %7 : vector<200x69xf32>
    %c0_3 = arith.constant 0 : index
    %c0_4 = arith.constant 0 : index
    %9 = vector.load %arg3[%c0_3, %c0_4] : memref<1x69xf32, #tpu.memory_space<vmem>>, vector<1x69xf32>
    %10 = vector.broadcast %9 : vector<1x69xf32> to vector<200x69xf32>
    %11 = arith.addf %8, %10 : vector<200x69xf32>
    %12 = math.sin %11 : vector<200x69xf32>
    %13 = tpu.iota {dimensions = array<i32: 1>} : vector<1x69xi32>
    %c3_i32 = arith.constant 3 : i32
    %14 = vector.broadcast %c3_i32 : i32 to vector<1x69xi32>
    %15 = arith.cmpi slt, %13, %14 : vector<1x69xi32>
    %16 = vector.shape_cast %15 : vector<1x69xi1> to vector<1x69xi1>
    %17 = vector.broadcast %16 : vector<1x69xi1> to vector<200x69xi1>
    %18 = arith.select %17, %11, %12 : vector<200x69xi1>, vector<200x69xf32>
    %c0_5 = arith.constant 0 : index
    %c0_6 = arith.constant 0 : index
    %19 = vector.load %arg4[%c0_5, %c0_6] : memref<200x69xf32, #tpu.memory_space<vmem>>, vector<200x69xf32>
    tpu.vector_store %arg4[%c0_5, %c0_6], %18 {strides = array<i32>} : memref<200x69xf32, #tpu.memory_space<vmem>>, vector<200x69xf32>,
    return
  }
  func.func @transform_0(%arg0: i32) -> (i32, i32) {
    %c0_i32 = arith.constant 0 : i32
    %c0_i32_0 = arith.constant 0 : i32
    return %arg0, %c0_i32 : i32, i32
  }
  func.func @transform_1(%arg0: i32) -> (i32, i32) {
    %c0_i32 = arith.constant 0 : i32
    %c0_i32_0 = arith.constant 0 : i32
    %c0_i32_1 = arith.constant 0 : i32
    return %c0_i32, %c0_i32_0 : i32, i32
  }
  func.func @transform_2(%arg0: i32) -> (i32, i32) {
    %c0_i32 = arith.constant 0 : i32
    %c0_i32_0 = arith.constant 0 : i32
    %c0_i32_1 = arith.constant 0 : i32
    return %c0_i32, %c0_i32_0 : i32, i32
  }
  func.func @transform_3(%arg0: i32) -> (i32, i32) {
    %c0_i32 = arith.constant 0 : i32
    %c0_i32_0 = arith.constant 0 : i32
    return %arg0, %c0_i32 : i32, i32
  }
}

</mosaic_0001>

<llo_original>
// kernel: tpu_custom_call.1
$region0: #{tpu_custom_call.1}
  #allocation0 [shape = 'u32[]', space=smem, size = 0x4, offset = 0x4, fixed_abs, tag = 'smem constant byte address 0x4 - core index']
  #allocation1 [shape = 'u32[144,128]{1,0:T(1,128)}', space=vmem, size = 0x12000, scoped, tag = 'internal scratch']
  %s0 = inlined_call_operand.vmem [shape: f32[200,3], index: 0, kind: input, shape index: {}]
  %s1 = inlined_call_operand.vmem [shape: f32[1,69], index: 1, kind: input, shape index: {}]
  %s2 = inlined_call_operand.vmem [shape: f32[1,69], index: 2, kind: input, shape index: {}]
  %s3 = inlined_call_operand.vmem [shape: f32[200,69], index: 3, kind: output, shape index: {}]
  %s4 = sld [smem:[#allocation0]]
  $region22: #{tpu_custom_call.1} parent=0
    _
  %s6 = ssub.s32 1, %s4
  %s7 = scalar_select 0, %s6, %s4
  // Predicated region
  $region2: #{tpu_custom_call.1} parent=0 // pred_check
    _
  $region3: #{tpu_custom_call.1} parent=0 // pred_check_branch
    %9 = sbr.rel (0) target = $region5
  $region4: #{tpu_custom_call.1} parent=0 // pred_region
    _
  $region5: #{tpu_custom_call.1} parent=0 // pred_fallthru
    _
  // Predicated region
  $region6: #{tpu_custom_call.1} parent=0 // pred_check
    _
  $region7: #{tpu_custom_call.1} parent=0 // pred_check_branch
    %11 = sbr.rel (0) target = $region9
  $region8: #{tpu_custom_call.1} parent=0 // pred_region
    _
  $region9: #{tpu_custom_call.1} parent=0 // pred_fallthru
    _
  // Predicated region
  $region10: #{tpu_custom_call.1} parent=0 // pred_check
    _
  $region11: #{tpu_custom_call.1} parent=0 // pred_check_branch
    %13 = sbr.rel (0) target = $region13
  $region12: #{tpu_custom_call.1} parent=0 // pred_region
    _
  $region13: #{tpu_custom_call.1} parent=0 // pred_fallthru
    _
  %v14 = vld [vmem:[%s0] sm:$0xff]
  %v15 = vld [vmem:[%s0 + $0x8] sm:$0xff]
  %v16 = vld [vmem:[%s0 + $0x10] sm:$0xff]
  %v17 = vld [vmem:[%s0 + $0x18] sm:$0xff]
  %v18 = vld [vmem:[%s0 + $0x20] sm:$0xff]
  %v19 = vld [vmem:[%s0 + $0x28] sm:$0xff]
  %v20 = vld [vmem:[%s0 + $0x30] sm:$0xff]
  %v21 = vld [vmem:[%s0 + $0x38] sm:$0xff]
  %v22 = vld [vmem:[%s0 + $0x40] sm:$0xff]
  %v23 = vld [vmem:[%s0 + $0x48] sm:$0xff]
  %v24 = vld [vmem:[%s0 + $0x50] sm:$0xff]
  %v25 = vld [vmem:[%s0 + $0x58] sm:$0xff]
  %v26 = vld [vmem:[%s0 + $0x60] sm:$0xff]
  %v27 = vld [vmem:[%s0 + $0x68] sm:$0xff]
  %v28 = vld [vmem:[%s0 + $0x70] sm:$0xff]
  %v29 = vld [vmem:[%s0 + $0x78] sm:$0xff]
  %v30 = vld [vmem:[%s0 + $0x80] sm:$0xff]
  %v31 = vld [vmem:[%s0 + $0x88] sm:$0xff]
  %v32 = vld [vmem:[%s0 + $0x90] sm:$0xff]
  %v33 = vld [vmem:[%s0 + $0x98] sm:$0xff]
  %v34 = vld [vmem:[%s0 + $0xa0] sm:$0xff]
  %v35 = vld [vmem:[%s0 + $0xa8] sm:$0xff]
  %v36 = vld [vmem:[%s0 + $0xb0] sm:$0xff]
  %v37 = vld [vmem:[%s0 + $0xb8] sm:$0xff]
  %v38 = vld [vmem:[%s0 + $0xc0] sm:$0xff]
  %64 = vrot.lane.b32.xlu0 %v14, 3
  %v65 = vpop.permute.xlu0 %64
  %66 = vrot.lane.b32.xlu0 %v15, 3
  %v67 = vpop.permute.xlu0 %66
  %68 = vrot.lane.b32.xlu0 %v16, 3
  %v69 = vpop.permute.xlu0 %68
  %70 = vrot.lane.b32.xlu0 %v17, 3
  %v71 = vpop.permute.xlu0 %70
  %72 = vrot.lane.b32.xlu0 %v18, 3
  %v73 = vpop.permute.xlu0 %72
  %74 = vrot.lane.b32.xlu0 %v19, 3
  %v75 = vpop.permute.xlu0 %74
  %76 = vrot.lane.b32.xlu0 %v20, 3
  %v77 = vpop.permute.xlu0 %76
  %78 = vrot.lane.b32.xlu0 %v21, 3
  %v79 = vpop.permute.xlu0 %78
  %80 = vrot.lane.b32.xlu0 %v22, 3
  %v81 = vpop.permute.xlu0 %80
  %82 = vrot.lane.b32.xlu0 %v23, 3
  %v83 = vpop.permute.xlu0 %82
  %84 = vrot.lane.b32.xlu0 %v24, 3
  %v85 = vpop.permute.xlu0 %84
  %86 = vrot.lane.b32.xlu0 %v25, 3
  %v87 = vpop.permute.xlu0 %86
  %88 = vrot.lane.b32.xlu0 %v26, 3
  %v89 = vpop.permute.xlu0 %88
  %90 = vrot.lane.b32.xlu0 %v27, 3
  %v91 = vpop.permute.xlu0 %90
  %92 = vrot.lane.b32.xlu0 %v28, 3
  %v93 = vpop.permute.xlu0 %92
  %94 = vrot.lane.b32.xlu0 %v29, 3
  %v95 = vpop.permute.xlu0 %94
  %96 = vrot.lane.b32.xlu0 %v30, 3
  %v97 = vpop.permute.xlu0 %96
  %98 = vrot.lane.b32.xlu0 %v31, 3
  %v99 = vpop.permute.xlu0 %98
  %100 = vrot.lane.b32.xlu0 %v32, 3
  %v101 = vpop.permute.xlu0 %100
  %102 = vrot.lane.b32.xlu0 %v33, 3
  %v103 = vpop.permute.xlu0 %102
  %104 = vrot.lane.b32.xlu0 %v34, 3
  %v105 = vpop.permute.xlu0 %104
  %106 = vrot.lane.b32.xlu0 %v35, 3
  %v107 = vpop.permute.xlu0 %106
  %108 = vrot.lane.b32.xlu0 %v36, 3
  %v109 = vpop.permute.xlu0 %108
  %110 = vrot.lane.b32.xlu0 %v37, 3
  %v111 = vpop.permute.xlu0 %110
  %112 = vrot.lane.b32.xlu0 %v38, 3
  %v113 = vpop.permute.xlu0 %112
  %vm139 = vcmask 23552
  %v140 = vsel %vm139, %v14, %v65
  %v141 = vsel %vm139, %v15, %v67
  %v142 = vsel %vm139, %v16, %v69
  %v143 = vsel %vm139, %v17, %v71
  %v144 = vsel %vm139, %v18, %v73
  %v145 = vsel %vm139, %v19, %v75
  %v146 = vsel %vm139, %v20, %v77
  %v147 = vsel %vm139, %v21, %v79
  %v148 = vsel %vm139, %v22, %v81
  %v149 = vsel %vm139, %v23, %v83
  %v150 = vsel %vm139, %v24, %v85
  %v151 = vsel %vm139, %v25, %v87
  %v152 = vsel %vm139, %v26, %v89
  %v153 = vsel %vm139, %v27, %v91
  %v154 = vsel %vm139, %v28, %v93
  %v155 = vsel %vm139, %v29, %v95
  %v156 = vsel %vm139, %v30, %v97
  %v157 = vsel %vm139, %v31, %v99
  %v158 = vsel %vm139, %v32, %v101
  %v159 = vsel %vm139, %v33, %v103
  %v160 = vsel %vm139, %v34, %v105
  %v161 = vsel %vm139, %v35, %v107
  %v162 = vsel %vm139, %v36, %v109
  %v163 = vsel %vm139, %v37, %v111
  %v164 = vsel %vm139, %v38, %v113
  %190 = vrot.lane.b32.xlu0 %v140, 6
  %v191 = vpop.permute.xlu0 %190
  %192 = vrot.lane.b32.xlu0 %v141, 6
  %v193 = vpop.permute.xlu0 %192
  %194 = vrot.lane.b32.xlu0 %v142, 6
  %v195 = vpop.permute.xlu0 %194
  %196 = vrot.lane.b32.xlu0 %v143, 6
  %v197 = vpop.permute.xlu0 %196
  %198 = vrot.lane.b32.xlu0 %v144, 6
  %v199 = vpop.permute.xlu0 %198
  %200 = vrot.lane.b32.xlu0 %v145, 6
  %v201 = vpop.permute.xlu0 %200
  %202 = vrot.lane.b32.xlu0 %v146, 6
  %v203 = vpop.permute.xlu0 %202
  %204 = vrot.lane.b32.xlu0 %v147, 6
  %v205 = vpop.permute.xlu0 %204
  %206 = vrot.lane.b32.xlu0 %v148, 6
  %v207 = vpop.permute.xlu0 %206
  %208 = vrot.lane.b32.xlu0 %v149, 6
  %v209 = vpop.permute.xlu0 %208
  %210 = vrot.lane.b32.xlu0 %v150, 6
  %v211 = vpop.permute.xlu0 %210
  %212 = vrot.lane.b32.xlu0 %v151, 6
  %v213 = vpop.permute.xlu0 %212
  %214 = vrot.lane.b32.xlu0 %v152, 6
  %v215 = vpop.permute.xlu0 %214
  %216 = vrot.lane.b32.xlu0 %v153, 6
  %v217 = vpop.permute.xlu0 %216
  %218 = vrot.lane.b32.xlu0 %v154, 6
  %v219 = vpop.permute.xlu0 %218
  %220 = vrot.lane.b32.xlu0 %v155, 6
  %v221 = vpop.permute.xlu0 %220
  %222 = vrot.lane.b32.xlu0 %v156, 6
  %v223 = vpop.permute.xlu0 %222
  %224 = vrot.lane.b32.xlu0 %v157, 6
  %v225 = vpop.permute.xlu0 %224
  %226 = vrot.lane.b32.xlu0 %v158, 6
  %v227 = vpop.permute.xlu0 %226
  %228 = vrot.lane.b32.xlu0 %v159, 6
  %v229 = vpop.permute.xlu0 %228
  %230 = vrot.lane.b32.xlu0 %v160, 6
  %v231 = vpop.permute.xlu0 %230
  %232 = vrot.lane.b32.xlu0 %v161, 6
  %v233 = vpop.permute.xlu0 %232
  %234 = vrot.lane.b32.xlu0 %v162, 6
  %v235 = vpop.permute.xlu0 %234
  %236 = vrot.lane.b32.xlu0 %v163, 6
  %v237 = vpop.permute.xlu0 %236
  %238 = vrot.lane.b32.xlu0 %v164, 6
  %v239 = vpop.permute.xlu0 %238
  %vm265 = vcmask 48128
  %v266 = vsel %vm265, %v140, %v191
  %v267 = vsel %vm265, %v141, %v193
  %v268 = vsel %vm265, %v142, %v195
  %v269 = vsel %vm265, %v143, %v197
  %v270 = vsel %vm265, %v144, %v199
  %v271 = vsel %vm265, %v145, %v201
  %v272 = vsel %vm265, %v146, %v203
  %v273 = vsel %vm265, %v147, %v205
  %v274 = vsel %vm265, %v148, %v207
  %v275 = vsel %vm265, %v149, %v209
  %v276 = vsel %vm265, %v150, %v211
  %v277 = vsel %vm265, %v151, %v213
  %v278 = vsel %vm265, %v152, %v215
  %v279 = vsel %vm265, %v153, %v217
  %v280 = vsel %vm265, %v154, %v219
  %v281 = vsel %vm265, %v155, %v221
  %v282 = vsel %vm265, %v156, %v223
  %v283 = vsel %vm265, %v157, %v225
  %v284 = vsel %vm265, %v158, %v227
  %v285 = vsel %vm265, %v159, %v229
  %v286 = vsel %vm265, %v160, %v231
  %v287 = vsel %vm265, %v161, %v233
  %v288 = vsel %vm265, %v162, %v235
  %v289 = vsel %vm265, %v163, %v237
  %v290 = vsel %vm265, %v164, %v239
  %316 = vrot.lane.b32.xlu0 %v266, 12
  %v317 = vpop.permute.xlu0 %316
  %318 = vrot.lane.b32.xlu0 %v267, 12
  %v319 = vpop.permute.xlu0 %318
  %320 = vrot.lane.b32.xlu0 %v268, 12
  %v321 = vpop.permute.xlu0 %320
  %322 = vrot.lane.b32.xlu0 %v269, 12
  %v323 = vpop.permute.xlu0 %322
  %324 = vrot.lane.b32.xlu0 %v270, 12
  %v325 = vpop.permute.xlu0 %324
  %326 = vrot.lane.b32.xlu0 %v271, 12
  %v327 = vpop.permute.xlu0 %326
  %328 = vrot.lane.b32.xlu0 %v272, 12
  %v329 = vpop.permute.xlu0 %328
  %330 = vrot.lane.b32.xlu0 %v273, 12
  %v331 = vpop.permute.xlu0 %330
  %332 = vrot.lane.b32.xlu0 %v274, 12
  %v333 = vpop.permute.xlu0 %332
  %334 = vrot.lane.b32.xlu0 %v275, 12
  %v335 = vpop.permute.xlu0 %334
  %336 = vrot.lane.b32.xlu0 %v276, 12
  %v337 = vpop.permute.xlu0 %336
  %338 = vrot.lane.b32.xlu0 %v277, 12
  %v339 = vpop.permute.xlu0 %338
  %340 = vrot.lane.b32.xlu0 %v278, 12
  %v341 = vpop.permute.xlu0 %340
  %342 = vrot.lane.b32.xlu0 %v279, 12
  %v343 = vpop.permute.xlu0 %342
  %344 = vrot.lane.b32.xlu0 %v280, 12
  %v345 = vpop.permute.xlu0 %344
  %346 = vrot.lane.b32.xlu0 %v281, 12
  %v347 = vpop.permute.xlu0 %346
  %348 = vrot.lane.b32.xlu0 %v282, 12
  %v349 = vpop.permute.xlu0 %348
  %350 = vrot.lane.b32.xlu0 %v283, 12
  %v351 = vpop.permute.xlu0 %350
  %352 = vrot.lane.b32.xlu0 %v284, 12
  %v353 = vpop.permute.xlu0 %352
  %354 = vrot.lane.b32.xlu0 %v285, 12
  %v355 = vpop.permute.xlu0 %354
  %356 = vrot.lane.b32.xlu0 %v286, 12
  %v357 = vpop.permute.xlu0 %356
  %358 = vrot.lane.b32.xlu0 %v287, 12
  %v359 = vpop.permute.xlu0 %358
  %360 = vrot.lane.b32.xlu0 %v288, 12
  %v361 = vpop.permute.xlu0 %360
  %362 = vrot.lane.b32.xlu0 %v289, 12
  %v363 = vpop.permute.xlu0 %362
  %364 = vrot.lane.b32.xlu0 %v290, 12
  %v365 = vpop.permute.xlu0 %364
  %vm391 = vcmask 97280
  %v392 = vsel %vm391, %v266, %v317
  %v393 = vsel %vm391, %v267, %v319
  %v394 = vsel %vm391, %v268, %v321
  %v395 = vsel %vm391, %v269, %v323
  %v396 = vsel %vm391, %v270, %v325
  %v397 = vsel %vm391, %v271, %v327
  %v398 = vsel %vm391, %v272, %v329
  %v399 = vsel %vm391, %v273, %v331
  %v400 = vsel %vm391, %v274, %v333
  %v401 = vsel %vm391, %v275, %v335
  %v402 = vsel %vm391, %v276, %v337
  %v403 = vsel %vm391, %v277, %v339
  %v404 = vsel %vm391, %v278, %v341
  %v405 = vsel %vm391, %v279, %v343
  %v406 = vsel %vm391, %v280, %v345
  %v407 = vsel %vm391, %v281, %v347
  %v408 = vsel %vm391, %v282, %v349
  %v409 = vsel %vm391, %v283, %v351
  %v410 = vsel %vm391, %v284, %v353
  %v411 = vsel %vm391, %v285, %v355
  %v412 = vsel %vm391, %v286, %v357
  %v413 = vsel %vm391, %v287, %v359
  %v414 = vsel %vm391, %v288, %v361
  %v415 = vsel %vm391, %v289, %v363
  %v416 = vsel %vm391, %v290, %v365
  %442 = vrot.lane.b32.xlu0 %v392, 24
  %v443 = vpop.permute.xlu0 %442
  %444 = vrot.lane.b32.xlu0 %v393, 24
  %v445 = vpop.permute.xlu0 %444
  %446 = vrot.lane.b32.xlu0 %v394, 24
  %v447 = vpop.permute.xlu0 %446
  %448 = vrot.lane.b32.xlu0 %v395, 24
  %v449 = vpop.permute.xlu0 %448
  %450 = vrot.lane.b32.xlu0 %v396, 24
  %v451 = vpop.permute.xlu0 %450
  %452 = vrot.lane.b32.xlu0 %v397, 24
  %v453 = vpop.permute.xlu0 %452
  %454 = vrot.lane.b32.xlu0 %v398, 24
  %v455 = vpop.permute.xlu0 %454
  %456 = vrot.lane.b32.xlu0 %v399, 24
  %v457 = vpop.permute.xlu0 %456
  %458 = vrot.lane.b32.xlu0 %v400, 24
  %v459 = vpop.permute.xlu0 %458
  %460 = vrot.lane.b32.xlu0 %v401, 24
  %v461 = vpop.permute.xlu0 %460
  %462 = vrot.lane.b32.xlu0 %v402, 24
  %v463 = vpop.permute.xlu0 %462
  %464 = vrot.lane.b32.xlu0 %v403, 24
  %v465 = vpop.permute.xlu0 %464
  %466 = vrot.lane.b32.xlu0 %v404, 24
  %v467 = vpop.permute.xlu0 %466
  %468 = vrot.lane.b32.xlu0 %v405, 24
  %v469 = vpop.permute.xlu0 %468
  %470 = vrot.lane.b32.xlu0 %v406, 24
  %v471 = vpop.permute.xlu0 %470
  %472 = vrot.lane.b32.xlu0 %v407, 24
  %v473 = vpop.permute.xlu0 %472
  %474 = vrot.lane.b32.xlu0 %v408, 24
  %v475 = vpop.permute.xlu0 %474
  %476 = vrot.lane.b32.xlu0 %v409, 24
  %v477 = vpop.permute.xlu0 %476
  %478 = vrot.lane.b32.xlu0 %v410, 24
  %v479 = vpop.permute.xlu0 %478
  %480 = vrot.lane.b32.xlu0 %v411, 24
  %v481 = vpop.permute.xlu0 %480
  %482 = vrot.lane.b32.xlu0 %v412, 24
  %v483 = vpop.permute.xlu0 %482
  %484 = vrot.lane.b32.xlu0 %v413, 24
  %v485 = vpop.permute.xlu0 %484
  %486 = vrot.lane.b32.xlu0 %v414, 24
  %v487 = vpop.permute.xlu0 %486
  %488 = vrot.lane.b32.xlu0 %v415, 24
  %v489 = vpop.permute.xlu0 %488
  %490 = vrot.lane.b32.xlu0 %v416, 24
  %v491 = vpop.permute.xlu0 %490
  %vm517 = vcmask 195584
  %v518 = vsel %vm517, %v392, %v443
  %v519 = vsel %vm517, %v393, %v445
  %v520 = vsel %vm517, %v394, %v447
  %v521 = vsel %vm517, %v395, %v449
  %v522 = vsel %vm517, %v396, %v451
  %v523 = vsel %vm517, %v397, %v453
  %v524 = vsel %vm517, %v398, %v455
  %v525 = vsel %vm517, %v399, %v457
  %v526 = vsel %vm517, %v400, %v459
  %v527 = vsel %vm517, %v401, %v461
  %v528 = vsel %vm517, %v402, %v463
  %v529 = vsel %vm517, %v403, %v465
  %v530 = vsel %vm517, %v404, %v467
  %v531 = vsel %vm517, %v405, %v469
  %v532 = vsel %vm517, %v406, %v471
  %v533 = vsel %vm517, %v407, %v473
  %v534 = vsel %vm517, %v408, %v475
  %v535 = vsel %vm517, %v409, %v477
  %v536 = vsel %vm517, %v410, %v479
  %v537 = vsel %vm517, %v411, %v481
  %v538 = vsel %vm517, %v412, %v483
  %v539 = vsel %vm517, %v413, %v485
  %v540 = vsel %vm517, %v414, %v487
  %v541 = vsel %vm517, %v415, %v489
  %v542 = vsel %vm517, %v416, %v491
  %543 = vrot.lane.b32.xlu0 %v140, 3
  %v544 = vpop.permute.xlu0 %543
  %545 = vrot.lane.b32.xlu0 %v141, 3
  %v546 = vpop.permute.xlu0 %545
  %547 = vrot.lane.b32.xlu0 %v142, 3
  %v548 = vpop.permute.xlu0 %547
  %549 = vrot.lane.b32.xlu0 %v143, 3
  %v550 = vpop.permute.xlu0 %549
  %551 = vrot.lane.b32.xlu0 %v144, 3
  %v552 = vpop.permute.xlu0 %551
  %553 = vrot.lane.b32.xlu0 %v145, 3
  %v554 = vpop.permute.xlu0 %553
  %555 = vrot.lane.b32.xlu0 %v146, 3
  %v556 = vpop.permute.xlu0 %555
  %557 = vrot.lane.b32.xlu0 %v147, 3
  %v558 = vpop.permute.xlu0 %557
  %559 = vrot.lane.b32.xlu0 %v148, 3
  %v560 = vpop.permute.xlu0 %559
  %561 = vrot.lane.b32.xlu0 %v149, 3
  %v562 = vpop.permute.xlu0 %561
  %563 = vrot.lane.b32.xlu0 %v150, 3
  %v564 = vpop.permute.xlu0 %563
  %565 = vrot.lane.b32.xlu0 %v151, 3
  %v566 = vpop.permute.xlu0 %565
  %567 = vrot.lane.b32.xlu0 %v152, 3
  %v568 = vpop.permute.xlu0 %567
  %569 = vrot.lane.b32.xlu0 %v153, 3
  %v570 = vpop.permute.xlu0 %569
  %571 = vrot.lane.b32.xlu0 %v154, 3
  %v572 = vpop.permute.xlu0 %571
  %573 = vrot.lane.b32.xlu0 %v155, 3
  %v574 = vpop.permute.xlu0 %573
  %575 = vrot.lane.b32.xlu0 %v156, 3
  %v576 = vpop.permute.xlu0 %575
  %577 = vrot.lane.b32.xlu0 %v157, 3
  %v578 = vpop.permute.xlu0 %577
  %579 = vrot.lane.b32.xlu0 %v158, 3
  %v580 = vpop.permute.xlu0 %579
  %581 = vrot.lane.b32.xlu0 %v159, 3
  %v582 = vpop.permute.xlu0 %581
  %583 = vrot.lane.b32.xlu0 %v160, 3
  %v584 = vpop.permute.xlu0 %583
  %585 = vrot.lane.b32.xlu0 %v161, 3
  %v586 = vpop.permute.xlu0 %585
  %587 = vrot.lane.b32.xlu0 %v162, 3
  %v588 = vpop.permute.xlu0 %587
  %589 = vrot.lane.b32.xlu0 %v163, 3
  %v590 = vpop.permute.xlu0 %589
  %591 = vrot.lane.b32.xlu0 %v164, 3
  %v592 = vpop.permute.xlu0 %591
  %618 = vrot.lane.b32.xlu0 %v266, 9
  %v619 = vpop.permute.xlu0 %618
  %620 = vrot.lane.b32.xlu0 %v267, 9
  %v621 = vpop.permute.xlu0 %620
  %622 = vrot.lane.b32.xlu0 %v268, 9
  %v623 = vpop.permute.xlu0 %622
  %624 = vrot.lane.b32.xlu0 %v269, 9
  %v625 = vpop.permute.xlu0 %624
  %626 = vrot.lane.b32.xlu0 %v270, 9
  %v627 = vpop.permute.xlu0 %626
  %628 = vrot.lane.b32.xlu0 %v271, 9
  %v629 = vpop.permute.xlu0 %628
  %630 = vrot.lane.b32.xlu0 %v272, 9
  %v631 = vpop.permute.xlu0 %630
  %632 = vrot.lane.b32.xlu0 %v273, 9
  %v633 = vpop.permute.xlu0 %632
  %634 = vrot.lane.b32.xlu0 %v274, 9
  %v635 = vpop.permute.xlu0 %634
  %636 = vrot.lane.b32.xlu0 %v275, 9
  %v637 = vpop.permute.xlu0 %636
  %638 = vrot.lane.b32.xlu0 %v276, 9
  %v639 = vpop.permute.xlu0 %638
  %640 = vrot.lane.b32.xlu0 %v277, 9
  %v641 = vpop.permute.xlu0 %640
  %642 = vrot.lane.b32.xlu0 %v278, 9
  %v643 = vpop.permute.xlu0 %642
  %644 = vrot.lane.b32.xlu0 %v279, 9
  %v645 = vpop.permute.xlu0 %644
  %646 = vrot.lane.b32.xlu0 %v280, 9
  %v647 = vpop.permute.xlu0 %646
  %648 = vrot.lane.b32.xlu0 %v281, 9
  %v649 = vpop.permute.xlu0 %648
  %650 = vrot.lane.b32.xlu0 %v282, 9
  %v651 = vpop.permute.xlu0 %650
  %652 = vrot.lane.b32.xlu0 %v283, 9
  %v653 = vpop.permute.xlu0 %652
  %654 = vrot.lane.b32.xlu0 %v284, 9
  %v655 = vpop.permute.xlu0 %654
  %656 = vrot.lane.b32.xlu0 %v285, 9
  %v657 = vpop.permute.xlu0 %656
  %658 = vrot.lane.b32.xlu0 %v286, 9
  %v659 = vpop.permute.xlu0 %658
  %660 = vrot.lane.b32.xlu0 %v287, 9
  %v661 = vpop.permute.xlu0 %660
  %662 = vrot.lane.b32.xlu0 %v288, 9
  %v663 = vpop.permute.xlu0 %662
  %664 = vrot.lane.b32.xlu0 %v289, 9
  %v665 = vpop.permute.xlu0 %664
  %666 = vrot.lane.b32.xlu0 %v290, 9
  %v667 = vpop.permute.xlu0 %666
  %718 = vrot.lane.b32.xlu0 %v518, 21
  %v719 = vpop.permute.xlu0 %718
  %720 = vrot.lane.b32.xlu0 %v519, 21
  %v721 = vpop.permute.xlu0 %720
  %722 = vrot.lane.b32.xlu0 %v520, 21
  %v723 = vpop.permute.xlu0 %722
  %724 = vrot.lane.b32.xlu0 %v521, 21
  %v725 = vpop.permute.xlu0 %724
  %726 = vrot.lane.b32.xlu0 %v522, 21
  %v727 = vpop.permute.xlu0 %726
  %728 = vrot.lane.b32.xlu0 %v523, 21
  %v729 = vpop.permute.xlu0 %728
  %730 = vrot.lane.b32.xlu0 %v524, 21
  %v731 = vpop.permute.xlu0 %730
  %732 = vrot.lane.b32.xlu0 %v525, 21
  %v733 = vpop.permute.xlu0 %732
  %734 = vrot.lane.b32.xlu0 %v526, 21
  %v735 = vpop.permute.xlu0 %734
  %736 = vrot.lane.b32.xlu0 %v527, 21
  %v737 = vpop.permute.xlu0 %736
  %738 = vrot.lane.b32.xlu0 %v528, 21
  %v739 = vpop.permute.xlu0 %738
  %740 = vrot.lane.b32.xlu0 %v529, 21
  %v741 = vpop.permute.xlu0 %740
  %742 = vrot.lane.b32.xlu0 %v530, 21
  %v743 = vpop.permute.xlu0 %742
  %744 = vrot.lane.b32.xlu0 %v531, 21
  %v745 = vpop.permute.xlu0 %744
  %746 = vrot.lane.b32.xlu0 %v532, 21
  %v747 = vpop.permute.xlu0 %746
  %748 = vrot.lane.b32.xlu0 %v533, 21
  %v749 = vpop.permute.xlu0 %748
  %750 = vrot.lane.b32.xlu0 %v534, 21
  %v751 = vpop.permute.xlu0 %750
  %752 = vrot.lane.b32.xlu0 %v535, 21
  %v753 = vpop.permute.xlu0 %752
  %754 = vrot.lane.b32.xlu0 %v536, 21
  %v755 = vpop.permute.xlu0 %754
  %756 = vrot.lane.b32.xlu0 %v537, 21
  %v757 = vpop.permute.xlu0 %756
  %758 = vrot.lane.b32.xlu0 %v538, 21
  %v759 = vpop.permute.xlu0 %758
  %760 = vrot.lane.b32.xlu0 %v539, 21
  %v761 = vpop.permute.xlu0 %760
  %762 = vrot.lane.b32.xlu0 %v540, 21
  %v763 = vpop.permute.xlu0 %762
  %764 = vrot.lane.b32.xlu0 %v541, 21
  %v765 = vpop.permute.xlu0 %764
  %766 = vrot.lane.b32.xlu0 %v542, 21
  %v767 = vpop.permute.xlu0 %766
  %v793 = vsel %vm139, %v14, %v544
  %v794 = vsel %vm139, %v15, %v546
  %v795 = vsel %vm139, %v16, %v548
  %v796 = vsel %vm139, %v17, %v550
  %v797 = vsel %vm139, %v18, %v552
  %v798 = vsel %vm139, %v19, %v554
  %v799 = vsel %vm139, %v20, %v556
  %v800 = vsel %vm139, %v21, %v558
  %v801 = vsel %vm139, %v22, %v560
  %v802 = vsel %vm139, %v23, %v562
  %v803 = vsel %vm139, %v24, %v564
  %v804 = vsel %vm139, %v25, %v566
  %v805 = vsel %vm139, %v26, %v568
  %v806 = vsel %vm139, %v27, %v570
  %v807 = vsel %vm139, %v28, %v572
  %v808 = vsel %vm139, %v29, %v574
  %v809 = vsel %vm139, %v30, %v576
  %v810 = vsel %vm139, %v31, %v578
  %v811 = vsel %vm139, %v32, %v580
  %v812 = vsel %vm139, %v33, %v582
  %v813 = vsel %vm139, %v34, %v584
  %v814 = vsel %vm139, %v35, %v586
  %v815 = vsel %vm139, %v36, %v588
  %v816 = vsel %vm139, %v37, %v590
  %v817 = vsel %vm139, %v38, %v592
  %vm818 = vcmask 72704
  %v819 = vsel %vm818, %v793, %v619
  %v820 = vsel %vm818, %v794, %v621
  %v821 = vsel %vm818, %v795, %v623
  %v822 = vsel %vm818, %v796, %v625
  %v823 = vsel %vm818, %v797, %v627
  %v824 = vsel %vm818, %v798, %v629
  %v825 = vsel %vm818, %v799, %v631
  %v826 = vsel %vm818, %v800, %v633
  %v827 = vsel %vm818, %v801, %v635
  %v828 = vsel %vm818, %v802, %v637
  %v829 = vsel %vm818, %v803, %v639
  %v830 = vsel %vm818, %v804, %v641
  %v831 = vsel %vm818, %v805, %v643
  %v832 = vsel %vm818, %v806, %v645
  %v833 = vsel %vm818, %v807, %v647
  %v834 = vsel %vm818, %v808, %v649
  %v835 = vsel %vm818, %v809, %v651
  %v836 = vsel %vm818, %v810, %v653
  %v837 = vsel %vm818, %v811, %v655
  %v838 = vsel %vm818, %v812, %v657
  %v839 = vsel %vm818, %v813, %v659
  %v840 = vsel %vm818, %v814, %v661
  %v841 = vsel %vm818, %v815, %v663
  %v842 = vsel %vm818, %v816, %v665
  %v843 = vsel %vm818, %v817, %v667
  %vm844 = vcmask 171008
  %v845 = vsel %vm844, %v819, %v719
  %v846 = vsel %vm844, %v820, %v721
  %v847 = vsel %vm844, %v821, %v723
  %v848 = vsel %vm844, %v822, %v725
  %v849 = vsel %vm844, %v823, %v727
  %v850 = vsel %vm844, %v824, %v729
  %v851 = vsel %vm844, %v825, %v731
  %v852 = vsel %vm844, %v826, %v733
  %v853 = vsel %vm844, %v827, %v735
  %v854 = vsel %vm844, %v828, %v737
  %v855 = vsel %vm844, %v829, %v739
  %v856 = vsel %vm844, %v830, %v741
  %v857 = vsel %vm844, %v831, %v743
  %v858 = vsel %vm844, %v832, %v745
  %v859 = vsel %vm844, %v833, %v747
  %v860 = vsel %vm844, %v834, %v749
  %v861 = vsel %vm844, %v835, %v751
  %v862 = vsel %vm844, %v836, %v753
  %v863 = vsel %vm844, %v837, %v755
  %v864 = vsel %vm844, %v838, %v757
  %v865 = vsel %vm844, %v839, %v759
  %v866 = vsel %vm844, %v840, %v761
  %v867 = vsel %vm844, %v841, %v763
  %v868 = vsel %vm844, %v842, %v765
  %v869 = vsel %vm844, %v843, %v767
  %v870 = vld [vmem:[%s1] sm:$0x1]
  %v872 = vlaneseq
  %v873 = vshrl.u32 %v872, 7
  %v874 = vsub.s32 0, %v873
  %v875 = vrot.slane %v870, %v874
  %v877 = vmul.f32 %v845, %v875
  %v878 = vmul.f32 %v846, %v875
  %v879 = vmul.f32 %v847, %v875
  %v880 = vmul.f32 %v848, %v875
  %v881 = vmul.f32 %v849, %v875
  %v882 = vmul.f32 %v850, %v875
  %v883 = vmul.f32 %v851, %v875
  %v884 = vmul.f32 %v852, %v875
  %v885 = vmul.f32 %v853, %v875
  %v886 = vmul.f32 %v854, %v875
  %v887 = vmul.f32 %v855, %v875
  %v888 = vmul.f32 %v856, %v875
  %v889 = vmul.f32 %v857, %v875
  %v890 = vmul.f32 %v858, %v875
  %v891 = vmul.f32 %v859, %v875
  %v892 = vmul.f32 %v860, %v875
  %v893 = vmul.f32 %v861, %v875
  %v894 = vmul.f32 %v862, %v875
  %v895 = vmul.f32 %v863, %v875
  %v896 = vmul.f32 %v864, %v875
  %v897 = vmul.f32 %v865, %v875
  %v898 = vmul.f32 %v866, %v875
  %v899 = vmul.f32 %v867, %v875
  %v900 = vmul.f32 %v868, %v875
  %v901 = vmul.f32 %v869, %v875
  %v902 = vld [vmem:[%s2] sm:$0x1]
  %v904 = vlaneseq
  %v905 = vshrl.u32 %v904, 7
  %v906 = vsub.s32 0, %v905
  %v907 = vrot.slane %v902, %v906
  %v909 = vadd.f32 %v877, %v907
  %v910 = vadd.f32 %v878, %v907
  %v911 = vadd.f32 %v879, %v907
  %v912 = vadd.f32 %v880, %v907
  %v913 = vadd.f32 %v881, %v907
  %v914 = vadd.f32 %v882, %v907
  %v915 = vadd.f32 %v883, %v907
  %v916 = vadd.f32 %v884, %v907
  %v917 = vadd.f32 %v885, %v907
  %v918 = vadd.f32 %v886, %v907
  %v919 = vadd.f32 %v887, %v907
  %v920 = vadd.f32 %v888, %v907
  %v921 = vadd.f32 %v889, %v907
  %v922 = vadd.f32 %v890, %v907
  %v923 = vadd.f32 %v891, %v907
  %v924 = vadd.f32 %v892, %v907
  %v925 = vadd.f32 %v893, %v907
  %v926 = vadd.f32 %v894, %v907
  %v927 = vadd.f32 %v895, %v907
  %v928 = vadd.f32 %v896, %v907
  %v929 = vadd.f32 %v897, %v907
  %v930 = vadd.f32 %v898, %v907
  %v931 = vadd.f32 %v899, %v907
  %v932 = vadd.f32 %v900, %v907
  %v933 = vadd.f32 %v901, %v907
  %v934 = vand.u32 2147483647, %v909
  %vm935 = vcmp.le.f32.partialorder %v934, 0.7853982
  %vm936 = vcmp.lt.s32.totalorder %v909, 0
  %v937 = vand.u32 %v909, 2139095040
  %v938 = vshrl.u32 %v937, 23
  %v939 = vsub.s32 %v938, 127
  %v940 = vand.u32 2147483647, %v909
  %v941 = vand.u32 %v940, 8388607
  %v942 = vor.u32 %v941, 8388608
  %v943 = vsub.s32 0, %v942
  %v944 = vadd.s32 %v939, 1
  %vm945 = vcmp.gt.s32.totalorder %v944, 0
  %v946 = vsel %vm945, %v944, 0
  %v947 = vshrl.u32 %v946, 5
  %v948 = vand.u32 %v946, 31
  %v949 = vsub.s32 32, %v948
  %v950 = vshrl.u32 683565275, %v949
  %v951 = vshll.u32 683565275, %v948
  %v952 = vshrl.u32 2475754826, %v949
  %v953 = vor.u32 %v951, %v952
  %v954 = vshll.u32 2475754826, %v948
  %v955 = vshrl.u32 2131351028, %v949
  %v956 = vor.u32 %v954, %v955
  %v957 = vshll.u32 2131351028, %v948
  %v958 = vshrl.u32 2102212464, %v949
  %v959 = vor.u32 %v957, %v958
  %v960 = vshll.u32 2102212464, %v948
  %v961 = vshrl.u32 920167782, %v949
  %v962 = vor.u32 %v960, %v961
  %v963 = vshll.u32 920167782, %v948
  %v964 = vshrl.u32 1326507024, %v949
  %v965 = vor.u32 %v963, %v964
  %vm966 = vcmp.lt.s32.totalorder %v947, 1
  %vm967 = vcmp.lt.s32.totalorder %v947, 2
  %vm968 = vcmp.lt.s32.totalorder %v947, 3
  %vm969 = vcmp.lt.s32.totalorder %v947, 4
  %v970 = vsel %vm966, %v950, %v953
  %v971 = vsel %vm969, %v959, 2102212464
  %v972 = vsel %vm968, %v956, %v971
  %v973 = vsel %vm967, %v970, %v972
  %v974 = vsel %vm966, %v953, %v956
  %v975 = vsel %vm969, %v962, 920167782
  %v976 = vsel %vm968, %v959, %v975
  %v977 = vsel %vm967, %v974, %v976
  %v978 = vsel %vm966, %v956, %v959
  %v979 = vsel %vm969, %v965, 1326507024
  %v980 = vsel %vm968, %v962, %v979
  %v981 = vsel %vm967, %v978, %v980
  %v982 = vshll.u32 %v942, 8
  %v983 = vmul.u32.u64.compose %v982, %v981
  %v984 = vextract.low.u32 %v983
  %v985 = vextract.high.u32 %v983
  %v986 = vmul.u32.u64.compose %v982, %v977
  %v987 = vextract.low.u32 %v986
  %v988 = vextract.high.u32 %v986
  %v989 = vmul.u32 %v982, %v973
  %v990 = vadd.s32 %v985, %v987
  %vm991 = vc.u32 %v985, %v987
  %v992 = vadd.s32 %v988, 1
  %v993 = vsel %vm991, %v992, %v988
  %v994 = vadd.s32 %v989, %v993
  %v995 = vadd.s32 %v994, 536870912
  %v996 = vshrl.u32 %v995, 30
  %v997 = vshll.u32 %v996, 30
  %v998 = vsub.s32 %v994, %v997
  %vm999 = vcmp.lt.s32.totalorder %v998, 0
  %v1000 = vsub.s32 0, %v998
  %v1001 = vsel %vm999, %v1000, %v998
  %v1002 = vclz %v1001
  %v1003 = vsub.s32 %v1002, 2
  %vm1004 = vcmp.gt.s32.totalorder 0, %v1003
  %v1005 = vsel %vm1004, 0, %v1003
  %v1006 = vsub.s32 32, %v1005
  %v1007 = vshll.u32 %v998, %v1005
  %v1008 = vshrl.u32 %v990, %v1006
  %v1009 = vor.u32 %v1007, %v1008
  %v1010 = vsub.s32 4294967266, %v1005
  %v1011 = vadd.s32 %v1010, 127
  %v1012 = vshll.u32 %v1011, 23
  %v1013 = vor.u32 4788187, %v1012
  %v1014 = vand.u32 2147483647, %v1013
  %v1016 = vcvt.s32.f32 %v1009
  %v1017 = vmul.f32 %v1016, %v1014
  %v1018 = vxor.u32 %v1017, 2147483648
  %v1019 = vsel %vm936, %v1018, %v1017
  %v1020 = vsub.s32 4, %v996
  %v1021 = vsel %vm936, %v1020, %v996
  %v1022 = vsel %vm935, %v909, %v1019
  %v1023 = vsel %vm935, 0, %v1021
  %v1024 = vcosq.f32.pop %v1022
  %v1025 = vsinq.f32.pop %v1022
  %vm1026 = vweird.f32 %v909
  %v1027 = vadd.s32 %v1023, 3
  %v1028 = vand.u32 %v1027, 3
  %vm1029 = vcmp.lt.s32.totalorder %v1028, 2
  %vm1030 = vcmp.eq.s32.totalorder %v1028, 0
  %v1031 = vxor.u32 %v1025, 2147483648
  %v1032 = vsel %vm1030, %v1024, %v1031
  %vm1033 = vcmp.eq.s32.totalorder %v1028, 2
  %v1034 = vxor.u32 %v1024, 2147483648
  %v1035 = vsel %vm1033, %v1034, %v1025
  %v1036 = vsel %vm1029, %v1032, %v1035
  %v1037 = vsel %vm1026, nan, %v1036
  %v1038 = vand.u32 2147483647, %v910
  %vm1039 = vcmp.le.f32.partialorder %v1038, 0.7853982
  %vm1040 = vcmp.lt.s32.totalorder %v910, 0
  %v1041 = vand.u32 %v910, 2139095040
  %v1042 = vshrl.u32 %v1041, 23
  %v1043 = vsub.s32 %v1042, 127
  %v1044 = vand.u32 2147483647, %v910
  %v1045 = vand.u32 %v1044, 8388607
  %v1046 = vor.u32 %v1045, 8388608
  %v1047 = vsub.s32 0, %v1046
  %v1048 = vadd.s32 %v1043, 1
  %vm1049 = vcmp.gt.s32.totalorder %v1048, 0
  %v1050 = vsel %vm1049, %v1048, 0
  %v1051 = vshrl.u32 %v1050, 5
  %v1052 = vand.u32 %v1050, 31
  %v1053 = vsub.s32 32, %v1052
  %v1054 = vshrl.u32 683565275, %v1053
  %v1055 = vshll.u32 683565275, %v1052
  %v1056 = vshrl.u32 2475754826, %v1053
  %v1057 = vor.u32 %v1055, %v1056
  %v1058 = vshll.u32 2475754826, %v1052
  %v1059 = vshrl.u32 2131351028, %v1053
  %v1060 = vor.u32 %v1058, %v1059
  %v1061 = vshll.u32 2131351028, %v1052
  %v1062 = vshrl.u32 2102212464, %v1053
  %v1063 = vor.u32 %v1061, %v1062
  %v1064 = vshll.u32 2102212464, %v1052
  %v1065 = vshrl.u32 920167782, %v1053
  %v1066 = vor.u32 %v1064, %v1065
  %v1067 = vshll.u32 920167782, %v1052
  %v1068 = vshrl.u32 1326507024, %v1053
  %v1069 = vor.u32 %v1067, %v1068
  %vm1070 = vcmp.lt.s32.totalorder %v1051, 1
  %vm1071 = vcmp.lt.s32.totalorder %v1051, 2
  %vm1072 = vcmp.lt.s32.totalorder %v1051, 3
  %vm1073 = vcmp.lt.s32.totalorder %v1051, 4
  %v1074 = vsel %vm1070, %v1054, %v1057
  %v1075 = vsel %vm1073, %v1063, 2102212464
  %v1076 = vsel %vm1072, %v1060, %v1075
  %v1077 = vsel %vm1071, %v1074, %v1076
  %v1078 = vsel %vm1070, %v1057, %v1060
  %v1079 = vsel %vm1073, %v1066, 920167782
  %v1080 = vsel %vm1072, %v1063, %v1079
  %v1081 = vsel %vm1071, %v1078, %v1080
  %v1082 = vsel %vm1070, %v1060, %v1063
  %v1083 = vsel %vm1073, %v1069, 1326507024
  %v1084 = vsel %vm1072, %v1066, %v1083
  %v1085 = vsel %vm1071, %v1082, %v1084
  %v1086 = vshll.u32 %v1046, 8
  %v1087 = vmul.u32.u64.compose %v1086, %v1085
  %v1088 = vextract.low.u32 %v1087
  %v1089 = vextract.high.u32 %v1087
  %v1090 = vmul.u32.u64.compose %v1086, %v1081
  %v1091 = vextract.low.u32 %v1090
  %v1092 = vextract.high.u32 %v1090
  %v1093 = vmul.u32 %v1086, %v1077
  %v1094 = vadd.s32 %v1089, %v1091
  %vm1095 = vc.u32 %v1089, %v1091
  %v1096 = vadd.s32 %v1092, 1
  %v1097 = vsel %vm1095, %v1096, %v1092
  %v1098 = vadd.s32 %v1093, %v1097
  %v1099 = vadd.s32 %v1098, 536870912
  %v1100 = vshrl.u32 %v1099, 30
  %v1101 = vshll.u32 %v1100, 30
  %v1102 = vsub.s32 %v1098, %v1101
  %vm1103 = vcmp.lt.s32.totalorder %v1102, 0
  %v1104 = vsub.s32 0, %v1102
  %v1105 = vsel %vm1103, %v1104, %v1102
  %v1106 = vclz %v1105
  %v1107 = vsub.s32 %v1106, 2
  %vm1108 = vcmp.gt.s32.totalorder 0, %v1107
  %v1109 = vsel %vm1108, 0, %v1107
  %v1110 = vsub.s32 32, %v1109
  %v1111 = vshll.u32 %v1102, %v1109
  %v1112 = vshrl.u32 %v1094, %v1110
  %v1113 = vor.u32 %v1111, %v1112
  %v1114 = vsub.s32 4294967266, %v1109
  %v1115 = vadd.s32 %v1114, 127
  %v1116 = vshll.u32 %v1115, 23
  %v1117 = vor.u32 4788187, %v1116
  %v1118 = vand.u32 2147483647, %v1117
  %v1120 = vcvt.s32.f32 %v1113
  %v1121 = vmul.f32 %v1120, %v1118
  %v1122 = vxor.u32 %v1121, 2147483648
  %v1123 = vsel %vm1040, %v1122, %v1121
  %v1124 = vsub.s32 4, %v1100
  %v1125 = vsel %vm1040, %v1124, %v1100
  %v1126 = vsel %vm1039, %v910, %v1123
  %v1127 = vsel %vm1039, 0, %v1125
  %v1128 = vcosq.f32.pop %v1126
  %v1129 = vsinq.f32.pop %v1126
  %vm1130 = vweird.f32 %v910
  %v1131 = vadd.s32 %v1127, 3
  %v1132 = vand.u32 %v1131, 3
  %vm1133 = vcmp.lt.s32.totalorder %v1132, 2
  %vm1134 = vcmp.eq.s32.totalorder %v1132, 0
  %v1135 = vxor.u32 %v1129, 2147483648
  %v1136 = vsel %vm1134, %v1128, %v1135
  %vm1137 = vcmp.eq.s32.totalorder %v1132, 2
  %v1138 = vxor.u32 %v1128, 2147483648
  %v1139 = vsel %vm1137, %v1138, %v1129
  %v1140 = vsel %vm1133, %v1136, %v1139
  %v1141 = vsel %vm1130, nan, %v1140
  %v1142 = vand.u32 2147483647, %v911
  %vm1143 = vcmp.le.f32.partialorder %v1142, 0.7853982
  %vm1144 = vcmp.lt.s32.totalorder %v911, 0
  %v1145 = vand.u32 %v911, 2139095040
  %v1146 = vshrl.u32 %v1145, 23
  %v1147 = vsub.s32 %v1146, 127
  %v1148 = vand.u32 2147483647, %v911
  %v1149 = vand.u32 %v1148, 8388607
  %v1150 = vor.u32 %v1149, 8388608
  %v1151 = vsub.s32 0, %v1150
  %v1152 = vadd.s32 %v1147, 1
  %vm1153 = vcmp.gt.s32.totalorder %v1152, 0
  %v1154 = vsel %vm1153, %v1152, 0
  %v1155 = vshrl.u32 %v1154, 5
  %v1156 = vand.u32 %v1154, 31
  %v1157 = vsub.s32 32, %v1156
  %v1158 = vshrl.u32 683565275, %v1157
  %v1159 = vshll.u32 683565275, %v1156
  %v1160 = vshrl.u32 2475754826, %v1157
  %v1161 = vor.u32 %v1159, %v1160
  %v1162 = vshll.u32 2475754826, %v1156
  %v1163 = vshrl.u32 2131351028, %v1157
  %v1164 = vor.u32 %v1162, %v1163
  %v1165 = vshll.u32 2131351028, %v1156
  %v1166 = vshrl.u32 2102212464, %v1157
  %v1167 = vor.u32 %v1165, %v1166
  %v1168 = vshll.u32 2102212464, %v1156
  %v1169 = vshrl.u32 920167782, %v1157
  %v1170 = vor.u32 %v1168, %v1169
  %v1171 = vshll.u32 920167782, %v1156
  %v1172 = vshrl.u32 1326507024, %v1157
  %v1173 = vor.u32 %v1171, %v1172
  %vm1174 = vcmp.lt.s32.totalorder %v1155, 1
  %vm1175 = vcmp.lt.s32.totalorder %v1155, 2
  %vm1176 = vcmp.lt.s32.totalorder %v1155, 3
  %vm1177 = vcmp.lt.s32.totalorder %v1155, 4
  %v1178 = vsel %vm1174, %v1158, %v1161
  %v1179 = vsel %vm1177, %v1167, 2102212464
  %v1180 = vsel %vm1176, %v1164, %v1179
  %v1181 = vsel %vm1175, %v1178, %v1180
  %v1182 = vsel %vm1174, %v1161, %v1164
  %v1183 = vsel %vm1177, %v1170, 920167782
  %v1184 = vsel %vm1176, %v1167, %v1183
  %v1185 = vsel %vm1175, %v1182, %v1184
  %v1186 = vsel %vm1174, %v1164, %v1167
  %v1187 = vsel %vm1177, %v1173, 1326507024
  %v1188 = vsel %vm1176, %v1170, %v1187
  %v1189 = vsel %vm1175, %v1186, %v1188
  %v1190 = vshll.u32 %v1150, 8
  %v1191 = vmul.u32.u64.compose %v1190, %v1189
  %v1192 = vextract.low.u32 %v1191
  %v1193 = vextract.high.u32 %v1191
  %v1194 = vmul.u32.u64.compose %v1190, %v1185
  %v1195 = vextract.low.u32 %v1194
  %v1196 = vextract.high.u32 %v1194
  %v1197 = vmul.u32 %v1190, %v1181
  %v1198 = vadd.s32 %v1193, %v1195
  %vm1199 = vc.u32 %v1193, %v1195
  %v1200 = vadd.s32 %v1196, 1
  %v1201 = vsel %vm1199, %v1200, %v1196
  %v1202 = vadd.s32 %v1197, %v1201
  %v1203 = vadd.s32 %v1202, 536870912
  %v1204 = vshrl.u32 %v1203, 30
  %v1205 = vshll.u32 %v1204, 30
  %v1206 = vsub.s32 %v1202, %v1205
  %vm1207 = vcmp.lt.s32.totalorder %v1206, 0
  %v1208 = vsub.s32 0, %v1206
  %v1209 = vsel %vm1207, %v1208, %v1206
  %v1210 = vclz %v1209
  %v1211 = vsub.s32 %v1210, 2
  %vm1212 = vcmp.gt.s32.totalorder 0, %v1211
  %v1213 = vsel %vm1212, 0, %v1211
  %v1214 = vsub.s32 32, %v1213
  %v1215 = vshll.u32 %v1206, %v1213
  %v1216 = vshrl.u32 %v1198, %v1214
  %v1217 = vor.u32 %v1215, %v1216
  %v1218 = vsub.s32 4294967266, %v1213
  %v1219 = vadd.s32 %v1218, 127
  %v1220 = vshll.u32 %v1219, 23
  %v1221 = vor.u32 4788187, %v1220
  %v1222 = vand.u32 2147483647, %v1221
  %v1224 = vcvt.s32.f32 %v1217
  %v1225 = vmul.f32 %v1224, %v1222
  %v1226 = vxor.u32 %v1225, 2147483648
  %v1227 = vsel %vm1144, %v1226, %v1225
  %v1228 = vsub.s32 4, %v1204
  %v1229 = vsel %vm1144, %v1228, %v1204
  %v1230 = vsel %vm1143, %v911, %v1227
  %v1231 = vsel %vm1143, 0, %v1229
  %v1232 = vcosq.f32.pop %v1230
  %v1233 = vsinq.f32.pop %v1230
  %vm1234 = vweird.f32 %v911
  %v1235 = vadd.s32 %v1231, 3
  %v1236 = vand.u32 %v1235, 3
  %vm1237 = vcmp.lt.s32.totalorder %v1236, 2
  %vm1238 = vcmp.eq.s32.totalorder %v1236, 0
  %v1239 = vxor.u32 %v1233, 2147483648
  %v1240 = vsel %vm1238, %v1232, %v1239
  %vm1241 = vcmp.eq.s32.totalorder %v1236, 2
  %v1242 = vxor.u32 %v1232, 2147483648
  %v1243 = vsel %vm1241, %v1242, %v1233
  %v1244 = vsel %vm1237, %v1240, %v1243
  %v1245 = vsel %vm1234, nan, %v1244
  %v1246 = vand.u32 2147483647, %v912
  %vm1247 = vcmp.le.f32.partialorder %v1246, 0.7853982
  %vm1248 = vcmp.lt.s32.totalorder %v912, 0
  %v1249 = vand.u32 %v912, 2139095040
  %v1250 = vshrl.u32 %v1249, 23
  %v1251 = vsub.s32 %v1250, 127
  %v1252 = vand.u32 2147483647, %v912
  %v1253 = vand.u32 %v1252, 8388607
  %v1254 = vor.u32 %v1253, 8388608
  %v1255 = vsub.s32 0, %v1254
  %v1256 = vadd.s32 %v1251, 1
  %vm1257 = vcmp.gt.s32.totalorder %v1256, 0
  %v1258 = vsel %vm1257, %v1256, 0
  %v1259 = vshrl.u32 %v1258, 5
  %v1260 = vand.u32 %v1258, 31
  %v1261 = vsub.s32 32, %v1260
  %v1262 = vshrl.u32 683565275, %v1261
  %v1263 = vshll.u32 683565275, %v1260
  %v1264 = vshrl.u32 2475754826, %v1261
  %v1265 = vor.u32 %v1263, %v1264
  %v1266 = vshll.u32 2475754826, %v1260
  %v1267 = vshrl.u32 2131351028, %v1261
  %v1268 = vor.u32 %v1266, %v1267
  %v1269 = vshll.u32 2131351028, %v1260
  %v1270 = vshrl.u32 2102212464, %v1261
  %v1271 = vor.u32 %v1269, %v1270
  %v1272 = vshll.u32 2102212464, %v1260
  %v1273 = vshrl.u32 920167782, %v1261
  %v1274 = vor.u32 %v1272, %v1273
  %v1275 = vshll.u32 920167782, %v1260
  %v1276 = vshrl.u32 1326507024, %v1261
  %v1277 = vor.u32 %v1275, %v1276
  %vm1278 = vcmp.lt.s32.totalorder %v1259, 1
  %vm1279 = vcmp.lt.s32.totalorder %v1259, 2
  %vm1280 = vcmp.lt.s32.totalorder %v1259, 3
  %vm1281 = vcmp.lt.s32.totalorder %v1259, 4
  %v1282 = vsel %vm1278, %v1262, %v1265
  %v1283 = vsel %vm1281, %v1271, 2102212464
  %v1284 = vsel %vm1280, %v1268, %v1283
  %v1285 = vsel %vm1279, %v1282, %v1284
  %v1286 = vsel %vm1278, %v1265, %v1268
  %v1287 = vsel %vm1281, %v1274, 920167782
  %v1288 = vsel %vm1280, %v1271, %v1287
  %v1289 = vsel %vm1279, %v1286, %v1288
  %v1290 = vsel %vm1278, %v1268, %v1271
  %v1291 = vsel %vm1281, %v1277, 1326507024
  %v1292 = vsel %vm1280, %v1274, %v1291
  %v1293 = vsel %vm1279, %v1290, %v1292
  %v1294 = vshll.u32 %v1254, 8
  %v1295 = vmul.u32.u64.compose %v1294, %v1293
  %v1296 = vextract.low.u32 %v1295
  %v1297 = vextract.high.u32 %v1295
  %v1298 = vmul.u32.u64.compose %v1294, %v1289
  %v1299 = vextract.low.u32 %v1298
  %v1300 = vextract.high.u32 %v1298
  %v1301 = vmul.u32 %v1294, %v1285
  %v1302 = vadd.s32 %v1297, %v1299
  %vm1303 = vc.u32 %v1297, %v1299
  %v1304 = vadd.s32 %v1300, 1
  %v1305 = vsel %vm1303, %v1304, %v1300
  %v1306 = vadd.s32 %v1301, %v1305
  %v1307 = vadd.s32 %v1306, 536870912
  %v1308 = vshrl.u32 %v1307, 30
  %v1309 = vshll.u32 %v1308, 30
  %v1310 = vsub.s32 %v1306, %v1309
  %vm1311 = vcmp.lt.s32.totalorder %v1310, 0
  %v1312 = vsub.s32 0, %v1310
  %v1313 = vsel %vm1311, %v1312, %v1310
  %v1314 = vclz %v1313
  %v1315 = vsub.s32 %v1314, 2
  %vm1316 = vcmp.gt.s32.totalorder 0, %v1315
  %v1317 = vsel %vm1316, 0, %v1315
  %v1318 = vsub.s32 32, %v1317
  %v1319 = vshll.u32 %v1310, %v1317
  %v1320 = vshrl.u32 %v1302, %v1318
  %v1321 = vor.u32 %v1319, %v1320
  %v1322 = vsub.s32 4294967266, %v1317
  %v1323 = vadd.s32 %v1322, 127
  %v1324 = vshll.u32 %v1323, 23
  %v1325 = vor.u32 4788187, %v1324
  %v1326 = vand.u32 2147483647, %v1325
  %v1328 = vcvt.s32.f32 %v1321
  %v1329 = vmul.f32 %v1328, %v1326
  %v1330 = vxor.u32 %v1329, 2147483648
  %v1331 = vsel %vm1248, %v1330, %v1329
  %v1332 = vsub.s32 4, %v1308
  %v1333 = vsel %vm1248, %v1332, %v1308
  %v1334 = vsel %vm1247, %v912, %v1331
  %v1335 = vsel %vm1247, 0, %v1333
  %v1336 = vcosq.f32.pop %v1334
  %v1337 = vsinq.f32.pop %v1334
  %vm1338 = vweird.f32 %v912
  %v1339 = vadd.s32 %v1335, 3
  %v1340 = vand.u32 %v1339, 3
  %vm1341 = vcmp.lt.s32.totalorder %v1340, 2
  %vm1342 = vcmp.eq.s32.totalorder %v1340, 0
  %v1343 = vxor.u32 %v1337, 2147483648
  %v1344 = vsel %vm1342, %v1336, %v1343
  %vm1345 = vcmp.eq.s32.totalorder %v1340, 2
  %v1346 = vxor.u32 %v1336, 2147483648
  %v1347 = vsel %vm1345, %v1346, %v1337
  %v1348 = vsel %vm1341, %v1344, %v1347
  %v1349 = vsel %vm1338, nan, %v1348
  %v1350 = vand.u32 2147483647, %v913
  %vm1351 = vcmp.le.f32.partialorder %v1350, 0.7853982
  %vm1352 = vcmp.lt.s32.totalorder %v913, 0
  %v1353 = vand.u32 %v913, 2139095040
  %v1354 = vshrl.u32 %v1353, 23
  %v1355 = vsub.s32 %v1354, 127
  %v1356 = vand.u32 2147483647, %v913
  %v1357 = vand.u32 %v1356, 8388607
  %v1358 = vor.u32 %v1357, 8388608
  %v1359 = vsub.s32 0, %v1358
  %v1360 = vadd.s32 %v1355, 1
  %vm1361 = vcmp.gt.s32.totalorder %v1360, 0
  %v1362 = vsel %vm1361, %v1360, 0
  %v1363 = vshrl.u32 %v1362, 5
  %v1364 = vand.u32 %v1362, 31
  %v1365 = vsub.s32 32, %v1364
  %v1366 = vshrl.u32 683565275, %v1365
  %v1367 = vshll.u32 683565275, %v1364
  %v1368 = vshrl.u32 2475754826, %v1365
  %v1369 = vor.u32 %v1367, %v1368
  %v1370 = vshll.u32 2475754826, %v1364
  %v1371 = vshrl.u32 2131351028, %v1365
  %v1372 = vor.u32 %v1370, %v1371
  %v1373 = vshll.u32 2131351028, %v1364
  %v1374 = vshrl.u32 2102212464, %v1365
  %v1375 = vor.u32 %v1373, %v1374
  %v1376 = vshll.u32 2102212464, %v1364
  %v1377 = vshrl.u32 920167782, %v1365
  %v1378 = vor.u32 %v1376, %v1377
  %v1379 = vshll.u32 920167782, %v1364
  %v1380 = vshrl.u32 1326507024, %v1365
  %v1381 = vor.u32 %v1379, %v1380
  %vm1382 = vcmp.lt.s32.totalorder %v1363, 1
  %vm1383 = vcmp.lt.s32.totalorder %v1363, 2
  %vm1384 = vcmp.lt.s32.totalorder %v1363, 3
  %vm1385 = vcmp.lt.s32.totalorder %v1363, 4
  %v1386 = vsel %vm1382, %v1366, %v1369
  %v1387 = vsel %vm1385, %v1375, 2102212464
  %v1388 = vsel %vm1384, %v1372, %v1387
  %v1389 = vsel %vm1383, %v1386, %v1388
  %v1390 = vsel %vm1382, %v1369, %v1372
  %v1391 = vsel %vm1385, %v1378, 920167782
  %v1392 = vsel %vm1384, %v1375, %v1391
  %v1393 = vsel %vm1383, %v1390, %v1392
  %v1394 = vsel %vm1382, %v1372, %v1375
  %v1395 = vsel %vm1385, %v1381, 1326507024
  %v1396 = vsel %vm1384, %v1378, %v1395
  %v1397 = vsel %vm1383, %v1394, %v1396
  %v1398 = vshll.u32 %v1358, 8
  %v1399 = vmul.u32.u64.compose %v1398, %v1397
  %v1400 = vextract.low.u32 %v1399
  %v1401 = vextract.high.u32 %v1399
  %v1402 = vmul.u32.u64.compose %v1398, %v1393
  %v1403 = vextract.low.u32 %v1402
  %v1404 = vextract.high.u32 %v1402
  %v1405 = vmul.u32 %v1398, %v1389
  %v1406 = vadd.s32 %v1401, %v1403
  %vm1407 = vc.u32 %v1401, %v1403
  %v1408 = vadd.s32 %v1404, 1
  %v1409 = vsel %vm1407, %v1408, %v1404
  %v1410 = vadd.s32 %v1405, %v1409
  %v1411 = vadd.s32 %v1410, 536870912
  %v1412 = vshrl.u32 %v1411, 30
  %v1413 = vshll.u32 %v1412, 30
  %v1414 = vsub.s32 %v1410, %v1413
  %vm1415 = vcmp.lt.s32.totalorder %v1414, 0
  %v1416 = vsub.s32 0, %v1414
  %v1417 = vsel %vm1415, %v1416, %v1414
  %v1418 = vclz %v1417
  %v1419 = vsub.s32 %v1418, 2
  %vm1420 = vcmp.gt.s32.totalorder 0, %v1419
  %v1421 = vsel %vm1420, 0, %v1419
  %v1422 = vsub.s32 32, %v1421
  %v1423 = vshll.u32 %v1414, %v1421
  %v1424 = vshrl.u32 %v1406, %v1422
  %v1425 = vor.u32 %v1423, %v1424
  %v1426 = vsub.s32 4294967266, %v1421
  %v1427 = vadd.s32 %v1426, 127
  %v1428 = vshll.u32 %v1427, 23
  %v1429 = vor.u32 4788187, %v1428
  %v1430 = vand.u32 2147483647, %v1429
  %v1432 = vcvt.s32.f32 %v1425
  %v1433 = vmul.f32 %v1432, %v1430
  %v1434 = vxor.u32 %v1433, 2147483648
  %v1435 = vsel %vm1352, %v1434, %v1433
  %v1436 = vsub.s32 4, %v1412
  %v1437 = vsel %vm1352, %v1436, %v1412
  %v1438 = vsel %vm1351, %v913, %v1435
  %v1439 = vsel %vm1351, 0, %v1437
  %v1440 = vcosq.f32.pop %v1438
  %v1441 = vsinq.f32.pop %v1438
  %vm1442 = vweird.f32 %v913
  %v1443 = vadd.s32 %v1439, 3
  %v1444 = vand.u32 %v1443, 3
  %vm1445 = vcmp.lt.s32.totalorder %v1444, 2
  %vm1446 = vcmp.eq.s32.totalorder %v1444, 0
  %v1447 = vxor.u32 %v1441, 2147483648
  %v1448 = vsel %vm1446, %v1440, %v1447
  %vm1449 = vcmp.eq.s32.totalorder %v1444, 2
  %v1450 = vxor.u32 %v1440, 2147483648
  %v1451 = vsel %vm1449, %v1450, %v1441
  %v1452 = vsel %vm1445, %v1448, %v1451
  %v1453 = vsel %vm1442, nan, %v1452
  %v1454 = vand.u32 2147483647, %v914
  %vm1455 = vcmp.le.f32.partialorder %v1454, 0.7853982
  %vm1456 = vcmp.lt.s32.totalorder %v914, 0
  %v1457 = vand.u32 %v914, 2139095040
  %v1458 = vshrl.u32 %v1457, 23
  %v1459 = vsub.s32 %v1458, 127
  %v1460 = vand.u32 2147483647, %v914
  %v1461 = vand.u32 %v1460, 8388607
  %v1462 = vor.u32 %v1461, 8388608
  %v1463 = vsub.s32 0, %v1462
  %v1464 = vadd.s32 %v1459, 1
  %vm1465 = vcmp.gt.s32.totalorder %v1464, 0
  %v1466 = vsel %vm1465, %v1464, 0
  %v1467 = vshrl.u32 %v1466, 5
  %v1468 = vand.u32 %v1466, 31
  %v1469 = vsub.s32 32, %v1468
  %v1470 = vshrl.u32 683565275, %v1469
  %v1471 = vshll.u32 683565275, %v1468
  %v1472 = vshrl.u32 2475754826, %v1469
  %v1473 = vor.u32 %v1471, %v1472
  %v1474 = vshll.u32 2475754826, %v1468
  %v1475 = vshrl.u32 2131351028, %v1469
  %v1476 = vor.u32 %v1474, %v1475
  %v1477 = vshll.u32 2131351028, %v1468
  %v1478 = vshrl.u32 2102212464, %v1469
  %v1479 = vor.u32 %v1477, %v1478
  %v1480 = vshll.u32 2102212464, %v1468
  %v1481 = vshrl.u32 920167782, %v1469
  %v1482 = vor.u32 %v1480, %v1481
  %v1483 = vshll.u32 920167782, %v1468
  %v1484 = vshrl.u32 1326507024, %v1469
  %v1485 = vor.u32 %v1483, %v1484
  %vm1486 = vcmp.lt.s32.totalorder %v1467, 1
  %vm1487 = vcmp.lt.s32.totalorder %v1467, 2
  %vm1488 = vcmp.lt.s32.totalorder %v1467, 3
  %vm1489 = vcmp.lt.s32.totalorder %v1467, 4
  %v1490 = vsel %vm1486, %v1470, %v1473
  %v1491 = vsel %vm1489, %v1479, 2102212464
  %v1492 = vsel %vm1488, %v1476, %v1491
  %v1493 = vsel %vm1487, %v1490, %v1492
  %v1494 = vsel %vm1486, %v1473, %v1476
  %v1495 = vsel %vm1489, %v1482, 920167782
  %v1496 = vsel %vm1488, %v1479, %v1495
  %v1497 = vsel %vm1487, %v1494, %v1496
  %v1498 = vsel %vm1486, %v1476, %v1479
  %v1499 = vsel %vm1489, %v1485, 1326507024
  %v1500 = vsel %vm1488, %v1482, %v1499
  %v1501 = vsel %vm1487, %v1498, %v1500
  %v1502 = vshll.u32 %v1462, 8
  %v1503 = vmul.u32.u64.compose %v1502, %v1501
  %v1504 = vextract.low.u32 %v1503
  %v1505 = vextract.high.u32 %v1503
  %v1506 = vmul.u32.u64.compose %v1502, %v1497
  %v1507 = vextract.low.u32 %v1506
  %v1508 = vextract.high.u32 %v1506
  %v1509 = vmul.u32 %v1502, %v1493
  %v1510 = vadd.s32 %v1505, %v1507
  %vm1511 = vc.u32 %v1505, %v1507
  %v1512 = vadd.s32 %v1508, 1
  %v1513 = vsel %vm1511, %v1512, %v1508
  %v1514 = vadd.s32 %v1509, %v1513
  %v1515 = vadd.s32 %v1514, 536870912
  %v1516 = vshrl.u32 %v1515, 30
  %v1517 = vshll.u32 %v1516, 30
  %v1518 = vsub.s32 %v1514, %v1517
  %vm1519 = vcmp.lt.s32.totalorder %v1518, 0
  %v1520 = vsub.s32 0, %v1518
  %v1521 = vsel %vm1519, %v1520, %v1518
  %v1522 = vclz %v1521
  %v1523 = vsub.s32 %v1522, 2
  %vm1524 = vcmp.gt.s32.totalorder 0, %v1523
  %v1525 = vsel %vm1524, 0, %v1523
  %v1526 = vsub.s32 32, %v1525
  %v1527 = vshll.u32 %v1518, %v1525
  %v1528 = vshrl.u32 %v1510, %v1526
  %v1529 = vor.u32 %v1527, %v1528
  %v1530 = vsub.s32 4294967266, %v1525
  %v1531 = vadd.s32 %v1530, 127
  %v1532 = vshll.u32 %v1531, 23
  %v1533 = vor.u32 4788187, %v1532
  %v1534 = vand.u32 2147483647, %v1533
  %v1536 = vcvt.s32.f32 %v1529
  %v1537 = vmul.f32 %v1536, %v1534
  %v1538 = vxor.u32 %v1537, 2147483648
  %v1539 = vsel %vm1456, %v1538, %v1537
  %v1540 = vsub.s32 4, %v1516
  %v1541 = vsel %vm1456, %v1540, %v1516
  %v1542 = vsel %vm1455, %v914, %v1539
  %v1543 = vsel %vm1455, 0, %v1541
  %v1544 = vcosq.f32.pop %v1542
  %v1545 = vsinq.f32.pop %v1542
  %vm1546 = vweird.f32 %v914
  %v1547 = vadd.s32 %v1543, 3
  %v1548 = vand.u32 %v1547, 3
  %vm1549 = vcmp.lt.s32.totalorder %v1548, 2
  %vm1550 = vcmp.eq.s32.totalorder %v1548, 0
  %v1551 = vxor.u32 %v1545, 2147483648
  %v1552 = vsel %vm1550, %v1544, %v1551
  %vm1553 = vcmp.eq.s32.totalorder %v1548, 2
  %v1554 = vxor.u32 %v1544, 2147483648
  %v1555 = vsel %vm1553, %v1554, %v1545
  %v1556 = vsel %vm1549, %v1552, %v1555
  %v1557 = vsel %vm1546, nan, %v1556
  %v1558 = vand.u32 2147483647, %v915
  %vm1559 = vcmp.le.f32.partialorder %v1558, 0.7853982
  %vm1560 = vcmp.lt.s32.totalorder %v915, 0
  %v1561 = vand.u32 %v915, 2139095040
  %v1562 = vshrl.u32 %v1561, 23
  %v1563 = vsub.s32 %v1562, 127
  %v1564 = vand.u32 2147483647, %v915
  %v1565 = vand.u32 %v1564, 8388607
  %v1566 = vor.u32 %v1565, 8388608
  %v1567 = vsub.s32 0, %v1566
  %v1568 = vadd.s32 %v1563, 1
  %vm1569 = vcmp.gt.s32.totalorder %v1568, 0
  %v1570 = vsel %vm1569, %v1568, 0
  %v1571 = vshrl.u32 %v1570, 5
  %v1572 = vand.u32 %v1570, 31
  %v1573 = vsub.s32 32, %v1572
  %v1574 = vshrl.u32 683565275, %v1573
  %v1575 = vshll.u32 683565275, %v1572
  %v1576 = vshrl.u32 2475754826, %v1573
  %v1577 = vor.u32 %v1575, %v1576
  %v1578 = vshll.u32 2475754826, %v1572
  %v1579 = vshrl.u32 2131351028, %v1573
  %v1580 = vor.u32 %v1578, %v1579
  %v1581 = vshll.u32 2131351028, %v1572
  %v1582 = vshrl.u32 2102212464, %v1573
  %v1583 = vor.u32 %v1581, %v1582
  %v1584 = vshll.u32 2102212464, %v1572
  %v1585 = vshrl.u32 920167782, %v1573
  %v1586 = vor.u32 %v1584, %v1585
  %v1587 = vshll.u32 920167782, %v1572
  %v1588 = vshrl.u32 1326507024, %v1573
  %v1589 = vor.u32 %v1587, %v1588
  %vm1590 = vcmp.lt.s32.totalorder %v1571, 1
  %vm1591 = vcmp.lt.s32.totalorder %v1571, 2
  %vm1592 = vcmp.lt.s32.totalorder %v1571, 3
  %vm1593 = vcmp.lt.s32.totalorder %v1571, 4
  %v1594 = vsel %vm1590, %v1574, %v1577
  %v1595 = vsel %vm1593, %v1583, 2102212464
  %v1596 = vsel %vm1592, %v1580, %v1595
  %v1597 = vsel %vm1591, %v1594, %v1596
  %v1598 = vsel %vm1590, %v1577, %v1580
  %v1599 = vsel %vm1593, %v1586, 920167782
  %v1600 = vsel %vm1592, %v1583, %v1599
  %v1601 = vsel %vm1591, %v1598, %v1600
  %v1602 = vsel %vm1590, %v1580, %v1583
  %v1603 = vsel %vm1593, %v1589, 1326507024
  %v1604 = vsel %vm1592, %v1586, %v1603
  %v1605 = vsel %vm1591, %v1602, %v1604
  %v1606 = vshll.u32 %v1566, 8
  %v1607 = vmul.u32.u64.compose %v1606, %v1605
  %v1608 = vextract.low.u32 %v1607
  %v1609 = vextract.high.u32 %v1607
  %v1610 = vmul.u32.u64.compose %v1606, %v1601
  %v1611 = vextract.low.u32 %v1610
  %v1612 = vextract.high.u32 %v1610
  %v1613 = vmul.u32 %v1606, %v1597
  %v1614 = vadd.s32 %v1609, %v1611
  %vm1615 = vc.u32 %v1609, %v1611
  %v1616 = vadd.s32 %v1612, 1
  %v1617 = vsel %vm1615, %v1616, %v1612
  %v1618 = vadd.s32 %v1613, %v1617
  %v1619 = vadd.s32 %v1618, 536870912
  %v1620 = vshrl.u32 %v1619, 30
  %v1621 = vshll.u32 %v1620, 30
  %v1622 = vsub.s32 %v1618, %v1621
  %vm1623 = vcmp.lt.s32.totalorder %v1622, 0
  %v1624 = vsub.s32 0, %v1622
  %v1625 = vsel %vm1623, %v1624, %v1622
  %v1626 = vclz %v1625
  %v1627 = vsub.s32 %v1626, 2
  %vm1628 = vcmp.gt.s32.totalorder 0, %v1627
  %v1629 = vsel %vm1628, 0, %v1627
  %v1630 = vsub.s32 32, %v1629
  %v1631 = vshll.u32 %v1622, %v1629
  %v1632 = vshrl.u32 %v1614, %v1630
  %v1633 = vor.u32 %v1631, %v1632
  %v1634 = vsub.s32 4294967266, %v1629
  %v1635 = vadd.s32 %v1634, 127
  %v1636 = vshll.u32 %v1635, 23
  %v1637 = vor.u32 4788187, %v1636
  %v1638 = vand.u32 2147483647, %v1637
  %v1640 = vcvt.s32.f32 %v1633
  %v1641 = vmul.f32 %v1640, %v1638
  %v1642 = vxor.u32 %v1641, 2147483648
  %v1643 = vsel %vm1560, %v1642, %v1641
  %v1644 = vsub.s32 4, %v1620
  %v1645 = vsel %vm1560, %v1644, %v1620
  %v1646 = vsel %vm1559, %v915, %v1643
  %v1647 = vsel %vm1559, 0, %v1645
  %v1648 = vcosq.f32.pop %v1646
  %v1649 = vsinq.f32.pop %v1646
  %vm1650 = vweird.f32 %v915
  %v1651 = vadd.s32 %v1647, 3
  %v1652 = vand.u32 %v1651, 3
  %vm1653 = vcmp.lt.s32.totalorder %v1652, 2
  %vm1654 = vcmp.eq.s32.totalorder %v1652, 0
  %v1655 = vxor.u32 %v1649, 2147483648
  %v1656 = vsel %vm1654, %v1648, %v1655
  %vm1657 = vcmp.eq.s32.totalorder %v1652, 2
  %v1658 = vxor.u32 %v1648, 2147483648
  %v1659 = vsel %vm1657, %v1658, %v1649
  %v1660 = vsel %vm1653, %v1656, %v1659
  %v1661 = vsel %vm1650, nan, %v1660
  %v1662 = vand.u32 2147483647, %v916
  %vm1663 = vcmp.le.f32.partialorder %v1662, 0.7853982
  %vm1664 = vcmp.lt.s32.totalorder %v916, 0
  %v1665 = vand.u32 %v916, 2139095040
  %v1666 = vshrl.u32 %v1665, 23
  %v1667 = vsub.s32 %v1666, 127
  %v1668 = vand.u32 2147483647, %v916
  %v1669 = vand.u32 %v1668, 8388607
  %v1670 = vor.u32 %v1669, 8388608
  %v1671 = vsub.s32 0, %v1670
  %v1672 = vadd.s32 %v1667, 1
  %vm1673 = vcmp.gt.s32.totalorder %v1672, 0
  %v1674 = vsel %vm1673, %v1672, 0
  %v1675 = vshrl.u32 %v1674, 5
  %v1676 = vand.u32 %v1674, 31
  %v1677 = vsub.s32 32, %v1676
  %v1678 = vshrl.u32 683565275, %v1677
  %v1679 = vshll.u32 683565275, %v1676
  %v1680 = vshrl.u32 2475754826, %v1677
  %v1681 = vor.u32 %v1679, %v1680
  %v1682 = vshll.u32 2475754826, %v1676
  %v1683 = vshrl.u32 2131351028, %v1677
  %v1684 = vor.u32 %v1682, %v1683
  %v1685 = vshll.u32 2131351028, %v1676
  %v1686 = vshrl.u32 2102212464, %v1677
  %v1687 = vor.u32 %v1685, %v1686
  %v1688 = vshll.u32 2102212464, %v1676
  %v1689 = vshrl.u32 920167782, %v1677
  %v1690 = vor.u32 %v1688, %v1689
  %v1691 = vshll.u32 920167782, %v1676
  %v1692 = vshrl.u32 1326507024, %v1677
  %v1693 = vor.u32 %v1691, %v1692
  %vm1694 = vcmp.lt.s32.totalorder %v1675, 1
  %vm1695 = vcmp.lt.s32.totalorder %v1675, 2
  %vm1696 = vcmp.lt.s32.totalorder %v1675, 3
  %vm1697 = vcmp.lt.s32.totalorder %v1675, 4
  %v1698 = vsel %vm1694, %v1678, %v1681
  %v1699 = vsel %vm1697, %v1687, 2102212464
  %v1700 = vsel %vm1696, %v1684, %v1699
  %v1701 = vsel %vm1695, %v1698, %v1700
  %v1702 = vsel %vm1694, %v1681, %v1684
  %v1703 = vsel %vm1697, %v1690, 920167782
  %v1704 = vsel %vm1696, %v1687, %v1703
  %v1705 = vsel %vm1695, %v1702, %v1704
  %v1706 = vsel %vm1694, %v1684, %v1687
  %v1707 = vsel %vm1697, %v1693, 1326507024
  %v1708 = vsel %vm1696, %v1690, %v1707
  %v1709 = vsel %vm1695, %v1706, %v1708
  %v1710 = vshll.u32 %v1670, 8
  %v1711 = vmul.u32.u64.compose %v1710, %v1709
  %v1712 = vextract.low.u32 %v1711
  %v1713 = vextract.high.u32 %v1711
  %v1714 = vmul.u32.u64.compose %v1710, %v1705
  %v1715 = vextract.low.u32 %v1714
  %v1716 = vextract.high.u32 %v1714
  %v1717 = vmul.u32 %v1710, %v1701
  %v1718 = vadd.s32 %v1713, %v1715
  %vm1719 = vc.u32 %v1713, %v1715
  %v1720 = vadd.s32 %v1716, 1
  %v1721 = vsel %vm1719, %v1720, %v1716
  %v1722 = vadd.s32 %v1717, %v1721
  %v1723 = vadd.s32 %v1722, 536870912
  %v1724 = vshrl.u32 %v1723, 30
  %v1725 = vshll.u32 %v1724, 30
  %v1726 = vsub.s32 %v1722, %v1725
  %vm1727 = vcmp.lt.s32.totalorder %v1726, 0
  %v1728 = vsub.s32 0, %v1726
  %v1729 = vsel %vm1727, %v1728, %v1726
  %v1730 = vclz %v1729
  %v1731 = vsub.s32 %v1730, 2
  %vm1732 = vcmp.gt.s32.totalorder 0, %v1731
  %v1733 = vsel %vm1732, 0, %v1731
  %v1734 = vsub.s32 32, %v1733
  %v1735 = vshll.u32 %v1726, %v1733
  %v1736 = vshrl.u32 %v1718, %v1734
  %v1737 = vor.u32 %v1735, %v1736
  %v1738 = vsub.s32 4294967266, %v1733
  %v1739 = vadd.s32 %v1738, 127
  %v1740 = vshll.u32 %v1739, 23
  %v1741 = vor.u32 4788187, %v1740
  %v1742 = vand.u32 2147483647, %v1741
  %v1744 = vcvt.s32.f32 %v1737
  %v1745 = vmul.f32 %v1744, %v1742
  %v1746 = vxor.u32 %v1745, 2147483648
  %v1747 = vsel %vm1664, %v1746, %v1745
  %v1748 = vsub.s32 4, %v1724
  %v1749 = vsel %vm1664, %v1748, %v1724
  %v1750 = vsel %vm1663, %v916, %v1747
  %v1751 = vsel %vm1663, 0, %v1749
  %v1752 = vcosq.f32.pop %v1750
  %v1753 = vsinq.f32.pop %v1750
  %vm1754 = vweird.f32 %v916
  %v1755 = vadd.s32 %v1751, 3
  %v1756 = vand.u32 %v1755, 3
  %vm1757 = vcmp.lt.s32.totalorder %v1756, 2
  %vm1758 = vcmp.eq.s32.totalorder %v1756, 0
  %v1759 = vxor.u32 %v1753, 2147483648
  %v1760 = vsel %vm1758, %v1752, %v1759
  %vm1761 = vcmp.eq.s32.totalorder %v1756, 2
  %v1762 = vxor.u32 %v1752, 2147483648
  %v1763 = vsel %vm1761, %v1762, %v1753
  %v1764 = vsel %vm1757, %v1760, %v1763
  %v1765 = vsel %vm1754, nan, %v1764
  %v1766 = vand.u32 2147483647, %v917
  %vm1767 = vcmp.le.f32.partialorder %v1766, 0.7853982
  %vm1768 = vcmp.lt.s32.totalorder %v917, 0
  %v1769 = vand.u32 %v917, 2139095040
  %v1770 = vshrl.u32 %v1769, 23
  %v1771 = vsub.s32 %v1770, 127
  %v1772 = vand.u32 2147483647, %v917
  %v1773 = vand.u32 %v1772, 8388607
  %v1774 = vor.u32 %v1773, 8388608
  %v1775 = vsub.s32 0, %v1774
  %v1776 = vadd.s32 %v1771, 1
  %vm1777 = vcmp.gt.s32.totalorder %v1776, 0
  %v1778 = vsel %vm1777, %v1776, 0
  %v1779 = vshrl.u32 %v1778, 5
  %v1780 = vand.u32 %v1778, 31
  %v1781 = vsub.s32 32, %v1780
  %v1782 = vshrl.u32 683565275, %v1781
  %v1783 = vshll.u32 683565275, %v1780
  %v1784 = vshrl.u32 2475754826, %v1781
  %v1785 = vor.u32 %v1783, %v1784
  %v1786 = vshll.u32 2475754826, %v1780
  %v1787 = vshrl.u32 2131351028, %v1781
  %v1788 = vor.u32 %v1786, %v1787
  %v1789 = vshll.u32 2131351028, %v1780
  %v1790 = vshrl.u32 2102212464, %v1781
  %v1791 = vor.u32 %v1789, %v1790
  %v1792 = vshll.u32 2102212464, %v1780
  %v1793 = vshrl.u32 920167782, %v1781
  %v1794 = vor.u32 %v1792, %v1793
  %v1795 = vshll.u32 920167782, %v1780
  %v1796 = vshrl.u32 1326507024, %v1781
  %v1797 = vor.u32 %v1795, %v1796
  %vm1798 = vcmp.lt.s32.totalorder %v1779, 1
  %vm1799 = vcmp.lt.s32.totalorder %v1779, 2
  %vm1800 = vcmp.lt.s32.totalorder %v1779, 3
  %vm1801 = vcmp.lt.s32.totalorder %v1779, 4
  %v1802 = vsel %vm1798, %v1782, %v1785
  %v1803 = vsel %vm1801, %v1791, 2102212464
  %v1804 = vsel %vm1800, %v1788, %v1803
  %v1805 = vsel %vm1799, %v1802, %v1804
  %v1806 = vsel %vm1798, %v1785, %v1788
  %v1807 = vsel %vm1801, %v1794, 920167782
  %v1808 = vsel %vm1800, %v1791, %v1807
  %v1809 = vsel %vm1799, %v1806, %v1808
  %v1810 = vsel %vm1798, %v1788, %v1791
  %v1811 = vsel %vm1801, %v1797, 1326507024
  %v1812 = vsel %vm1800, %v1794, %v1811
  %v1813 = vsel %vm1799, %v1810, %v1812
  %v1814 = vshll.u32 %v1774, 8
  %v1815 = vmul.u32.u64.compose %v1814, %v1813
  %v1816 = vextract.low.u32 %v1815
  %v1817 = vextract.high.u32 %v1815
  %v1818 = vmul.u32.u64.compose %v1814, %v1809
  %v1819 = vextract.low.u32 %v1818
  %v1820 = vextract.high.u32 %v1818
  %v1821 = vmul.u32 %v1814, %v1805
  %v1822 = vadd.s32 %v1817, %v1819
  %vm1823 = vc.u32 %v1817, %v1819
  %v1824 = vadd.s32 %v1820, 1
  %v1825 = vsel %vm1823, %v1824, %v1820
  %v1826 = vadd.s32 %v1821, %v1825
  %v1827 = vadd.s32 %v1826, 536870912
  %v1828 = vshrl.u32 %v1827, 30
  %v1829 = vshll.u32 %v1828, 30
  %v1830 = vsub.s32 %v1826, %v1829
  %vm1831 = vcmp.lt.s32.totalorder %v1830, 0
  %v1832 = vsub.s32 0, %v1830
  %v1833 = vsel %vm1831, %v1832, %v1830
  %v1834 = vclz %v1833
  %v1835 = vsub.s32 %v1834, 2
  %vm1836 = vcmp.gt.s32.totalorder 0, %v1835
  %v1837 = vsel %vm1836, 0, %v1835
  %v1838 = vsub.s32 32, %v1837
  %v1839 = vshll.u32 %v1830, %v1837
  %v1840 = vshrl.u32 %v1822, %v1838
  %v1841 = vor.u32 %v1839, %v1840
  %v1842 = vsub.s32 4294967266, %v1837
  %v1843 = vadd.s32 %v1842, 127
  %v1844 = vshll.u32 %v1843, 23
  %v1845 = vor.u32 4788187, %v1844
  %v1846 = vand.u32 2147483647, %v1845
  %v1848 = vcvt.s32.f32 %v1841
  %v1849 = vmul.f32 %v1848, %v1846
  %v1850 = vxor.u32 %v1849, 2147483648
  %v1851 = vsel %vm1768, %v1850, %v1849
  %v1852 = vsub.s32 4, %v1828
  %v1853 = vsel %vm1768, %v1852, %v1828
  %v1854 = vsel %vm1767, %v917, %v1851
  %v1855 = vsel %vm1767, 0, %v1853
  %v1856 = vcosq.f32.pop %v1854
  %v1857 = vsinq.f32.pop %v1854
  %vm1858 = vweird.f32 %v917
  %v1859 = vadd.s32 %v1855, 3
  %v1860 = vand.u32 %v1859, 3
  %vm1861 = vcmp.lt.s32.totalorder %v1860, 2
  %vm1862 = vcmp.eq.s32.totalorder %v1860, 0
  %v1863 = vxor.u32 %v1857, 2147483648
  %v1864 = vsel %vm1862, %v1856, %v1863
  %vm1865 = vcmp.eq.s32.totalorder %v1860, 2
  %v1866 = vxor.u32 %v1856, 2147483648
  %v1867 = vsel %vm1865, %v1866, %v1857
  %v1868 = vsel %vm1861, %v1864, %v1867
  %v1869 = vsel %vm1858, nan, %v1868
  %v1870 = vand.u32 2147483647, %v918
  %vm1871 = vcmp.le.f32.partialorder %v1870, 0.7853982
  %vm1872 = vcmp.lt.s32.totalorder %v918, 0
  %v1873 = vand.u32 %v918, 2139095040
  %v1874 = vshrl.u32 %v1873, 23
  %v1875 = vsub.s32 %v1874, 127
  %v1876 = vand.u32 2147483647, %v918
  %v1877 = vand.u32 %v1876, 8388607
  %v1878 = vor.u32 %v1877, 8388608
  %v1879 = vsub.s32 0, %v1878
  %v1880 = vadd.s32 %v1875, 1
  %vm1881 = vcmp.gt.s32.totalorder %v1880, 0
  %v1882 = vsel %vm1881, %v1880, 0
  %v1883 = vshrl.u32 %v1882, 5
  %v1884 = vand.u32 %v1882, 31
  %v1885 = vsub.s32 32, %v1884
  %v1886 = vshrl.u32 683565275, %v1885
  %v1887 = vshll.u32 683565275, %v1884
  %v1888 = vshrl.u32 2475754826, %v1885
  %v1889 = vor.u32 %v1887, %v1888
  %v1890 = vshll.u32 2475754826, %v1884
  %v1891 = vshrl.u32 2131351028, %v1885
  %v1892 = vor.u32 %v1890, %v1891
  %v1893 = vshll.u32 2131351028, %v1884
  %v1894 = vshrl.u32 2102212464, %v1885
  %v1895 = vor.u32 %v1893, %v1894
  %v1896 = vshll.u32 2102212464, %v1884
  %v1897 = vshrl.u32 920167782, %v1885
  %v1898 = vor.u32 %v1896, %v1897
  %v1899 = vshll.u32 920167782, %v1884
  %v1900 = vshrl.u32 1326507024, %v1885
  %v1901 = vor.u32 %v1899, %v1900
  %vm1902 = vcmp.lt.s32.totalorder %v1883, 1
  %vm1903 = vcmp.lt.s32.totalorder %v1883, 2
  %vm1904 = vcmp.lt.s32.totalorder %v1883, 3
  %vm1905 = vcmp.lt.s32.totalorder %v1883, 4
  %v1906 = vsel %vm1902, %v1886, %v1889
  %v1907 = vsel %vm1905, %v1895, 2102212464
  %v1908 = vsel %vm1904, %v1892, %v1907
  %v1909 = vsel %vm1903, %v1906, %v1908
  %v1910 = vsel %vm1902, %v1889, %v1892
  %v1911 = vsel %vm1905, %v1898, 920167782
  %v1912 = vsel %vm1904, %v1895, %v1911
  %v1913 = vsel %vm1903, %v1910, %v1912
  %v1914 = vsel %vm1902, %v1892, %v1895
  %v1915 = vsel %vm1905, %v1901, 1326507024
  %v1916 = vsel %vm1904, %v1898, %v1915
  %v1917 = vsel %vm1903, %v1914, %v1916
  %v1918 = vshll.u32 %v1878, 8
  %v1919 = vmul.u32.u64.compose %v1918, %v1917
  %v1920 = vextract.low.u32 %v1919
  %v1921 = vextract.high.u32 %v1919
  %v1922 = vmul.u32.u64.compose %v1918, %v1913
  %v1923 = vextract.low.u32 %v1922
  %v1924 = vextract.high.u32 %v1922
  %v1925 = vmul.u32 %v1918, %v1909
  %v1926 = vadd.s32 %v1921, %v1923
  %vm1927 = vc.u32 %v1921, %v1923
  %v1928 = vadd.s32 %v1924, 1
  %v1929 = vsel %vm1927, %v1928, %v1924
  %v1930 = vadd.s32 %v1925, %v1929
  %v1931 = vadd.s32 %v1930, 536870912
  %v1932 = vshrl.u32 %v1931, 30
  %v1933 = vshll.u32 %v1932, 30
  %v1934 = vsub.s32 %v1930, %v1933
  %vm1935 = vcmp.lt.s32.totalorder %v1934, 0
  %v1936 = vsub.s32 0, %v1934
  %v1937 = vsel %vm1935, %v1936, %v1934
  %v1938 = vclz %v1937
  %v1939 = vsub.s32 %v1938, 2
  %vm1940 = vcmp.gt.s32.totalorder 0, %v1939
  %v1941 = vsel %vm1940, 0, %v1939
  %v1942 = vsub.s32 32, %v1941
  %v1943 = vshll.u32 %v1934, %v1941
  %v1944 = vshrl.u32 %v1926, %v1942
  %v1945 = vor.u32 %v1943, %v1944
  %v1946 = vsub.s32 4294967266, %v1941
  %v1947 = vadd.s32 %v1946, 127
  %v1948 = vshll.u32 %v1947, 23
  %v1949 = vor.u32 4788187, %v1948
  %v1950 = vand.u32 2147483647, %v1949
  %v1952 = vcvt.s32.f32 %v1945
  %v1953 = vmul.f32 %v1952, %v1950
  %v1954 = vxor.u32 %v1953, 2147483648
  %v1955 = vsel %vm1872, %v1954, %v1953
  %v1956 = vsub.s32 4, %v1932
  %v1957 = vsel %vm1872, %v1956, %v1932
  %v1958 = vsel %vm1871, %v918, %v1955
  %v1959 = vsel %vm1871, 0, %v1957
  %v1960 = vcosq.f32.pop %v1958
  %v1961 = vsinq.f32.pop %v1958
  %vm1962 = vweird.f32 %v918
  %v1963 = vadd.s32 %v1959, 3
  %v1964 = vand.u32 %v1963, 3
  %vm1965 = vcmp.lt.s32.totalorder %v1964, 2
  %vm1966 = vcmp.eq.s32.totalorder %v1964, 0
  %v1967 = vxor.u32 %v1961, 2147483648
  %v1968 = vsel %vm1966, %v1960, %v1967
  %vm1969 = vcmp.eq.s32.totalorder %v1964, 2
  %v1970 = vxor.u32 %v1960, 2147483648
  %v1971 = vsel %vm1969, %v1970, %v1961
  %v1972 = vsel %vm1965, %v1968, %v1971
  %v1973 = vsel %vm1962, nan, %v1972
  %v1974 = vand.u32 2147483647, %v919
  %vm1975 = vcmp.le.f32.partialorder %v1974, 0.7853982
  %vm1976 = vcmp.lt.s32.totalorder %v919, 0
  %v1977 = vand.u32 %v919, 2139095040
  %v1978 = vshrl.u32 %v1977, 23
  %v1979 = vsub.s32 %v1978, 127
  %v1980 = vand.u32 2147483647, %v919
  %v1981 = vand.u32 %v1980, 8388607
  %v1982 = vor.u32 %v1981, 8388608
  %v1983 = vsub.s32 0, %v1982
  %v1984 = vadd.s32 %v1979, 1
  %vm1985 = vcmp.gt.s32.totalorder %v1984, 0
  %v1986 = vsel %vm1985, %v1984, 0
  %v1987 = vshrl.u32 %v1986, 5
  %v1988 = vand.u32 %v1986, 31
  %v1989 = vsub.s32 32, %v1988
  %v1990 = vshrl.u32 683565275, %v1989
  %v1991 = vshll.u32 683565275, %v1988
  %v1992 = vshrl.u32 2475754826, %v1989
  %v1993 = vor.u32 %v1991, %v1992
  %v1994 = vshll.u32 2475754826, %v1988
  %v1995 = vshrl.u32 2131351028, %v1989
  %v1996 = vor.u32 %v1994, %v1995
  %v1997 = vshll.u32 2131351028, %v1988
  %v1998 = vshrl.u32 2102212464, %v1989
  %v1999 = vor.u32 %v1997, %v1998
  %v2000 = vshll.u32 2102212464, %v1988
  %v2001 = vshrl.u32 920167782, %v1989
  %v2002 = vor.u32 %v2000, %v2001
  %v2003 = vshll.u32 920167782, %v1988
  %v2004 = vshrl.u32 1326507024, %v1989
  %v2005 = vor.u32 %v2003, %v2004
  %vm2006 = vcmp.lt.s32.totalorder %v1987, 1
  %vm2007 = vcmp.lt.s32.totalorder %v1987, 2
  %vm2008 = vcmp.lt.s32.totalorder %v1987, 3
  %vm2009 = vcmp.lt.s32.totalorder %v1987, 4
  %v2010 = vsel %vm2006, %v1990, %v1993
  %v2011 = vsel %vm2009, %v1999, 2102212464
  %v2012 = vsel %vm2008, %v1996, %v2011
  %v2013 = vsel %vm2007, %v2010, %v2012
  %v2014 = vsel %vm2006, %v1993, %v1996
  %v2015 = vsel %vm2009, %v2002, 920167782
  %v2016 = vsel %vm2008, %v1999, %v2015
  %v2017 = vsel %vm2007, %v2014, %v2016
  %v2018 = vsel %vm2006, %v1996, %v1999
  %v2019 = vsel %vm2009, %v2005, 1326507024
  %v2020 = vsel %vm2008, %v2002, %v2019
  %v2021 = vsel %vm2007, %v2018, %v2020
  %v2022 = vshll.u32 %v1982, 8
  %v2023 = vmul.u32.u64.compose %v2022, %v2021
  %v2024 = vextract.low.u32 %v2023
  %v2025 = vextract.high.u32 %v2023
  %v2026 = vmul.u32.u64.compose %v2022, %v2017
  %v2027 = vextract.low.u32 %v2026
  %v2028 = vextract.high.u32 %v2026
  %v2029 = vmul.u32 %v2022, %v2013
  %v2030 = vadd.s32 %v2025, %v2027
  %vm2031 = vc.u32 %v2025, %v2027
  %v2032 = vadd.s32 %v2028, 1
  %v2033 = vsel %vm2031, %v2032, %v2028
  %v2034 = vadd.s32 %v2029, %v2033
  %v2035 = vadd.s32 %v2034, 536870912
  %v2036 = vshrl.u32 %v2035, 30
  %v2037 = vshll.u32 %v2036, 30
  %v2038 = vsub.s32 %v2034, %v2037
  %vm2039 = vcmp.lt.s32.totalorder %v2038, 0
  %v2040 = vsub.s32 0, %v2038
  %v2041 = vsel %vm2039, %v2040, %v2038
  %v2042 = vclz %v2041
  %v2043 = vsub.s32 %v2042, 2
  %vm2044 = vcmp.gt.s32.totalorder 0, %v2043
  %v2045 = vsel %vm2044, 0, %v2043
  %v2046 = vsub.s32 32, %v2045
  %v2047 = vshll.u32 %v2038, %v2045
  %v2048 = vshrl.u32 %v2030, %v2046
  %v2049 = vor.u32 %v2047, %v2048
  %v2050 = vsub.s32 4294967266, %v2045
  %v2051 = vadd.s32 %v2050, 127
  %v2052 = vshll.u32 %v2051, 23
  %v2053 = vor.u32 4788187, %v2052
  %v2054 = vand.u32 2147483647, %v2053
  %v2056 = vcvt.s32.f32 %v2049
  %v2057 = vmul.f32 %v2056, %v2054
  %v2058 = vxor.u32 %v2057, 2147483648
  %v2059 = vsel %vm1976, %v2058, %v2057
  %v2060 = vsub.s32 4, %v2036
  %v2061 = vsel %vm1976, %v2060, %v2036
  %v2062 = vsel %vm1975, %v919, %v2059
  %v2063 = vsel %vm1975, 0, %v2061
  %v2064 = vcosq.f32.pop %v2062
  %v2065 = vsinq.f32.pop %v2062
  %vm2066 = vweird.f32 %v919
  %v2067 = vadd.s32 %v2063, 3
  %v2068 = vand.u32 %v2067, 3
  %vm2069 = vcmp.lt.s32.totalorder %v2068, 2
  %vm2070 = vcmp.eq.s32.totalorder %v2068, 0
  %v2071 = vxor.u32 %v2065, 2147483648
  %v2072 = vsel %vm2070, %v2064, %v2071
  %vm2073 = vcmp.eq.s32.totalorder %v2068, 2
  %v2074 = vxor.u32 %v2064, 2147483648
  %v2075 = vsel %vm2073, %v2074, %v2065
  %v2076 = vsel %vm2069, %v2072, %v2075
  %v2077 = vsel %vm2066, nan, %v2076
  %v2078 = vand.u32 2147483647, %v920
  %vm2079 = vcmp.le.f32.partialorder %v2078, 0.7853982
  %vm2080 = vcmp.lt.s32.totalorder %v920, 0
  %v2081 = vand.u32 %v920, 2139095040
  %v2082 = vshrl.u32 %v2081, 23
  %v2083 = vsub.s32 %v2082, 127
  %v2084 = vand.u32 2147483647, %v920
  %v2085 = vand.u32 %v2084, 8388607
  %v2086 = vor.u32 %v2085, 8388608
  %v2087 = vsub.s32 0, %v2086
  %v2088 = vadd.s32 %v2083, 1
  %vm2089 = vcmp.gt.s32.totalorder %v2088, 0
  %v2090 = vsel %vm2089, %v2088, 0
  %v2091 = vshrl.u32 %v2090, 5
  %v2092 = vand.u32 %v2090, 31
  %v2093 = vsub.s32 32, %v2092
  %v2094 = vshrl.u32 683565275, %v2093
  %v2095 = vshll.u32 683565275, %v2092
  %v2096 = vshrl.u32 2475754826, %v2093
  %v2097 = vor.u32 %v2095, %v2096
  %v2098 = vshll.u32 2475754826, %v2092
  %v2099 = vshrl.u32 2131351028, %v2093
  %v2100 = vor.u32 %v2098, %v2099
  %v2101 = vshll.u32 2131351028, %v2092
  %v2102 = vshrl.u32 2102212464, %v2093
  %v2103 = vor.u32 %v2101, %v2102
  %v2104 = vshll.u32 2102212464, %v2092
  %v2105 = vshrl.u32 920167782, %v2093
  %v2106 = vor.u32 %v2104, %v2105
  %v2107 = vshll.u32 920167782, %v2092
  %v2108 = vshrl.u32 1326507024, %v2093
  %v2109 = vor.u32 %v2107, %v2108
  %vm2110 = vcmp.lt.s32.totalorder %v2091, 1
  %vm2111 = vcmp.lt.s32.totalorder %v2091, 2
  %vm2112 = vcmp.lt.s32.totalorder %v2091, 3
  %vm2113 = vcmp.lt.s32.totalorder %v2091, 4
  %v2114 = vsel %vm2110, %v2094, %v2097
  %v2115 = vsel %vm2113, %v2103, 2102212464
  %v2116 = vsel %vm2112, %v2100, %v2115
  %v2117 = vsel %vm2111, %v2114, %v2116
  %v2118 = vsel %vm2110, %v2097, %v2100
  %v2119 = vsel %vm2113, %v2106, 920167782
  %v2120 = vsel %vm2112, %v2103, %v2119
  %v2121 = vsel %vm2111, %v2118, %v2120
  %v2122 = vsel %vm2110, %v2100, %v2103
  %v2123 = vsel %vm2113, %v2109, 1326507024
  %v2124 = vsel %vm2112, %v2106, %v2123
  %v2125 = vsel %vm2111, %v2122, %v2124
  %v2126 = vshll.u32 %v2086, 8
  %v2127 = vmul.u32.u64.compose %v2126, %v2125
  %v2128 = vextract.low.u32 %v2127
  %v2129 = vextract.high.u32 %v2127
  %v2130 = vmul.u32.u64.compose %v2126, %v2121
  %v2131 = vextract.low.u32 %v2130
  %v2132 = vextract.high.u32 %v2130
  %v2133 = vmul.u32 %v2126, %v2117
  %v2134 = vadd.s32 %v2129, %v2131
  %vm2135 = vc.u32 %v2129, %v2131
  %v2136 = vadd.s32 %v2132, 1
  %v2137 = vsel %vm2135, %v2136, %v2132
  %v2138 = vadd.s32 %v2133, %v2137
  %v2139 = vadd.s32 %v2138, 536870912
  %v2140 = vshrl.u32 %v2139, 30
  %v2141 = vshll.u32 %v2140, 30
  %v2142 = vsub.s32 %v2138, %v2141
  %vm2143 = vcmp.lt.s32.totalorder %v2142, 0
  %v2144 = vsub.s32 0, %v2142
  %v2145 = vsel %vm2143, %v2144, %v2142
  %v2146 = vclz %v2145
  %v2147 = vsub.s32 %v2146, 2
  %vm2148 = vcmp.gt.s32.totalorder 0, %v2147
  %v2149 = vsel %vm2148, 0, %v2147
  %v2150 = vsub.s32 32, %v2149
  %v2151 = vshll.u32 %v2142, %v2149
  %v2152 = vshrl.u32 %v2134, %v2150
  %v2153 = vor.u32 %v2151, %v2152
  %v2154 = vsub.s32 4294967266, %v2149
  %v2155 = vadd.s32 %v2154, 127
  %v2156 = vshll.u32 %v2155, 23
  %v2157 = vor.u32 4788187, %v2156
  %v2158 = vand.u32 2147483647, %v2157
  %v2160 = vcvt.s32.f32 %v2153
  %v2161 = vmul.f32 %v2160, %v2158
  %v2162 = vxor.u32 %v2161, 2147483648
  %v2163 = vsel %vm2080, %v2162, %v2161
  %v2164 = vsub.s32 4, %v2140
  %v2165 = vsel %vm2080, %v2164, %v2140
  %v2166 = vsel %vm2079, %v920, %v2163
  %v2167 = vsel %vm2079, 0, %v2165
  %v2168 = vcosq.f32.pop %v2166
  %v2169 = vsinq.f32.pop %v2166
  %vm2170 = vweird.f32 %v920
  %v2171 = vadd.s32 %v2167, 3
  %v2172 = vand.u32 %v2171, 3
  %vm2173 = vcmp.lt.s32.totalorder %v2172, 2
  %vm2174 = vcmp.eq.s32.totalorder %v2172, 0
  %v2175 = vxor.u32 %v2169, 2147483648
  %v2176 = vsel %vm2174, %v2168, %v2175
  %vm2177 = vcmp.eq.s32.totalorder %v2172, 2
  %v2178 = vxor.u32 %v2168, 2147483648
  %v2179 = vsel %vm2177, %v2178, %v2169
  %v2180 = vsel %vm2173, %v2176, %v2179
  %v2181 = vsel %vm2170, nan, %v2180
  %v2182 = vand.u32 2147483647, %v921
  %vm2183 = vcmp.le.f32.partialorder %v2182, 0.7853982
  %vm2184 = vcmp.lt.s32.totalorder %v921, 0
  %v2185 = vand.u32 %v921, 2139095040
  %v2186 = vshrl.u32 %v2185, 23
  %v2187 = vsub.s32 %v2186, 127
  %v2188 = vand.u32 2147483647, %v921
  %v2189 = vand.u32 %v2188, 8388607
  %v2190 = vor.u32 %v2189, 8388608
  %v2191 = vsub.s32 0, %v2190
  %v2192 = vadd.s32 %v2187, 1
  %vm2193 = vcmp.gt.s32.totalorder %v2192, 0
  %v2194 = vsel %vm2193, %v2192, 0
  %v2195 = vshrl.u32 %v2194, 5
  %v2196 = vand.u32 %v2194, 31
  %v2197 = vsub.s32 32, %v2196
  %v2198 = vshrl.u32 683565275, %v2197
  %v2199 = vshll.u32 683565275, %v2196
  %v2200 = vshrl.u32 2475754826, %v2197
  %v2201 = vor.u32 %v2199, %v2200
  %v2202 = vshll.u32 2475754826, %v2196
  %v2203 = vshrl.u32 2131351028, %v2197
  %v2204 = vor.u32 %v2202, %v2203
  %v2205 = vshll.u32 2131351028, %v2196
  %v2206 = vshrl.u32 2102212464, %v2197
  %v2207 = vor.u32 %v2205, %v2206
  %v2208 = vshll.u32 2102212464, %v2196
  %v2209 = vshrl.u32 920167782, %v2197
  %v2210 = vor.u32 %v2208, %v2209
  %v2211 = vshll.u32 920167782, %v2196
  %v2212 = vshrl.u32 1326507024, %v2197
  %v2213 = vor.u32 %v2211, %v2212
  %vm2214 = vcmp.lt.s32.totalorder %v2195, 1
  %vm2215 = vcmp.lt.s32.totalorder %v2195, 2
  %vm2216 = vcmp.lt.s32.totalorder %v2195, 3
  %vm2217 = vcmp.lt.s32.totalorder %v2195, 4
  %v2218 = vsel %vm2214, %v2198, %v2201
  %v2219 = vsel %vm2217, %v2207, 2102212464
  %v2220 = vsel %vm2216, %v2204, %v2219
  %v2221 = vsel %vm2215, %v2218, %v2220
  %v2222 = vsel %vm2214, %v2201, %v2204
  %v2223 = vsel %vm2217, %v2210, 920167782
  %v2224 = vsel %vm2216, %v2207, %v2223
  %v2225 = vsel %vm2215, %v2222, %v2224
  %v2226 = vsel %vm2214, %v2204, %v2207
  %v2227 = vsel %vm2217, %v2213, 1326507024
  %v2228 = vsel %vm2216, %v2210, %v2227
  %v2229 = vsel %vm2215, %v2226, %v2228
  %v2230 = vshll.u32 %v2190, 8
  %v2231 = vmul.u32.u64.compose %v2230, %v2229
  %v2232 = vextract.low.u32 %v2231
  %v2233 = vextract.high.u32 %v2231
  %v2234 = vmul.u32.u64.compose %v2230, %v2225
  %v2235 = vextract.low.u32 %v2234
  %v2236 = vextract.high.u32 %v2234
  %v2237 = vmul.u32 %v2230, %v2221
  %v2238 = vadd.s32 %v2233, %v2235
  %vm2239 = vc.u32 %v2233, %v2235
  %v2240 = vadd.s32 %v2236, 1
  %v2241 = vsel %vm2239, %v2240, %v2236
  %v2242 = vadd.s32 %v2237, %v2241
  %v2243 = vadd.s32 %v2242, 536870912
  %v2244 = vshrl.u32 %v2243, 30
  %v2245 = vshll.u32 %v2244, 30
  %v2246 = vsub.s32 %v2242, %v2245
  %vm2247 = vcmp.lt.s32.totalorder %v2246, 0
  %v2248 = vsub.s32 0, %v2246
  %v2249 = vsel %vm2247, %v2248, %v2246
  %v2250 = vclz %v2249
  %v2251 = vsub.s32 %v2250, 2
  %vm2252 = vcmp.gt.s32.totalorder 0, %v2251
  %v2253 = vsel %vm2252, 0, %v2251
  %v2254 = vsub.s32 32, %v2253
  %v2255 = vshll.u32 %v2246, %v2253
  %v2256 = vshrl.u32 %v2238, %v2254
  %v2257 = vor.u32 %v2255, %v2256
  %v2258 = vsub.s32 4294967266, %v2253
  %v2259 = vadd.s32 %v2258, 127
  %v2260 = vshll.u32 %v2259, 23
  %v2261 = vor.u32 4788187, %v2260
  %v2262 = vand.u32 2147483647, %v2261
  %v2264 = vcvt.s32.f32 %v2257
  %v2265 = vmul.f32 %v2264, %v2262
  %v2266 = vxor.u32 %v2265, 2147483648
  %v2267 = vsel %vm2184, %v2266, %v2265
  %v2268 = vsub.s32 4, %v2244
  %v2269 = vsel %vm2184, %v2268, %v2244
  %v2270 = vsel %vm2183, %v921, %v2267
  %v2271 = vsel %vm2183, 0, %v2269
  %v2272 = vcosq.f32.pop %v2270
  %v2273 = vsinq.f32.pop %v2270
  %vm2274 = vweird.f32 %v921
  %v2275 = vadd.s32 %v2271, 3
  %v2276 = vand.u32 %v2275, 3
  %vm2277 = vcmp.lt.s32.totalorder %v2276, 2
  %vm2278 = vcmp.eq.s32.totalorder %v2276, 0
  %v2279 = vxor.u32 %v2273, 2147483648
  %v2280 = vsel %vm2278, %v2272, %v2279
  %vm2281 = vcmp.eq.s32.totalorder %v2276, 2
  %v2282 = vxor.u32 %v2272, 2147483648
  %v2283 = vsel %vm2281, %v2282, %v2273
  %v2284 = vsel %vm2277, %v2280, %v2283
  %v2285 = vsel %vm2274, nan, %v2284
  %v2286 = vand.u32 2147483647, %v922
  %vm2287 = vcmp.le.f32.partialorder %v2286, 0.7853982
  %vm2288 = vcmp.lt.s32.totalorder %v922, 0
  %v2289 = vand.u32 %v922, 2139095040
  %v2290 = vshrl.u32 %v2289, 23
  %v2291 = vsub.s32 %v2290, 127
  %v2292 = vand.u32 2147483647, %v922
  %v2293 = vand.u32 %v2292, 8388607
  %v2294 = vor.u32 %v2293, 8388608
  %v2295 = vsub.s32 0, %v2294
  %v2296 = vadd.s32 %v2291, 1
  %vm2297 = vcmp.gt.s32.totalorder %v2296, 0
  %v2298 = vsel %vm2297, %v2296, 0
  %v2299 = vshrl.u32 %v2298, 5
  %v2300 = vand.u32 %v2298, 31
  %v2301 = vsub.s32 32, %v2300
  %v2302 = vshrl.u32 683565275, %v2301
  %v2303 = vshll.u32 683565275, %v2300
  %v2304 = vshrl.u32 2475754826, %v2301
  %v2305 = vor.u32 %v2303, %v2304
  %v2306 = vshll.u32 2475754826, %v2300
  %v2307 = vshrl.u32 2131351028, %v2301
  %v2308 = vor.u32 %v2306, %v2307
  %v2309 = vshll.u32 2131351028, %v2300
  %v2310 = vshrl.u32 2102212464, %v2301
  %v2311 = vor.u32 %v2309, %v2310
  %v2312 = vshll.u32 2102212464, %v2300
  %v2313 = vshrl.u32 920167782, %v2301
  %v2314 = vor.u32 %v2312, %v2313
  %v2315 = vshll.u32 920167782, %v2300
  %v2316 = vshrl.u32 1326507024, %v2301
  %v2317 = vor.u32 %v2315, %v2316
  %vm2318 = vcmp.lt.s32.totalorder %v2299, 1
  %vm2319 = vcmp.lt.s32.totalorder %v2299, 2
  %vm2320 = vcmp.lt.s32.totalorder %v2299, 3
  %vm2321 = vcmp.lt.s32.totalorder %v2299, 4
  %v2322 = vsel %vm2318, %v2302, %v2305
  %v2323 = vsel %vm2321, %v2311, 2102212464
  %v2324 = vsel %vm2320, %v2308, %v2323
  %v2325 = vsel %vm2319, %v2322, %v2324
  %v2326 = vsel %vm2318, %v2305, %v2308
  %v2327 = vsel %vm2321, %v2314, 920167782
  %v2328 = vsel %vm2320, %v2311, %v2327
  %v2329 = vsel %vm2319, %v2326, %v2328
  %v2330 = vsel %vm2318, %v2308, %v2311
  %v2331 = vsel %vm2321, %v2317, 1326507024
  %v2332 = vsel %vm2320, %v2314, %v2331
  %v2333 = vsel %vm2319, %v2330, %v2332
  %v2334 = vshll.u32 %v2294, 8
  %v2335 = vmul.u32.u64.compose %v2334, %v2333
  %v2336 = vextract.low.u32 %v2335
  %v2337 = vextract.high.u32 %v2335
  %v2338 = vmul.u32.u64.compose %v2334, %v2329
  %v2339 = vextract.low.u32 %v2338
  %v2340 = vextract.high.u32 %v2338
  %v2341 = vmul.u32 %v2334, %v2325
  %v2342 = vadd.s32 %v2337, %v2339
  %vm2343 = vc.u32 %v2337, %v2339
  %v2344 = vadd.s32 %v2340, 1
  %v2345 = vsel %vm2343, %v2344, %v2340
  %v2346 = vadd.s32 %v2341, %v2345
  %v2347 = vadd.s32 %v2346, 536870912
  %v2348 = vshrl.u32 %v2347, 30
  %v2349 = vshll.u32 %v2348, 30
  %v2350 = vsub.s32 %v2346, %v2349
  %vm2351 = vcmp.lt.s32.totalorder %v2350, 0
  %v2352 = vsub.s32 0, %v2350
  %v2353 = vsel %vm2351, %v2352, %v2350
  %v2354 = vclz %v2353
  %v2355 = vsub.s32 %v2354, 2
  %vm2356 = vcmp.gt.s32.totalorder 0, %v2355
  %v2357 = vsel %vm2356, 0, %v2355
  %v2358 = vsub.s32 32, %v2357
  %v2359 = vshll.u32 %v2350, %v2357
  %v2360 = vshrl.u32 %v2342, %v2358
  %v2361 = vor.u32 %v2359, %v2360
  %v2362 = vsub.s32 4294967266, %v2357
  %v2363 = vadd.s32 %v2362, 127
  %v2364 = vshll.u32 %v2363, 23
  %v2365 = vor.u32 4788187, %v2364
  %v2366 = vand.u32 2147483647, %v2365
  %v2368 = vcvt.s32.f32 %v2361
  %v2369 = vmul.f32 %v2368, %v2366
  %v2370 = vxor.u32 %v2369, 2147483648
  %v2371 = vsel %vm2288, %v2370, %v2369
  %v2372 = vsub.s32 4, %v2348
  %v2373 = vsel %vm2288, %v2372, %v2348
  %v2374 = vsel %vm2287, %v922, %v2371
  %v2375 = vsel %vm2287, 0, %v2373
  %v2376 = vcosq.f32.pop %v2374
  %v2377 = vsinq.f32.pop %v2374
  %vm2378 = vweird.f32 %v922
  %v2379 = vadd.s32 %v2375, 3
  %v2380 = vand.u32 %v2379, 3
  %vm2381 = vcmp.lt.s32.totalorder %v2380, 2
  %vm2382 = vcmp.eq.s32.totalorder %v2380, 0
  %v2383 = vxor.u32 %v2377, 2147483648
  %v2384 = vsel %vm2382, %v2376, %v2383
  %vm2385 = vcmp.eq.s32.totalorder %v2380, 2
  %v2386 = vxor.u32 %v2376, 2147483648
  %v2387 = vsel %vm2385, %v2386, %v2377
  %v2388 = vsel %vm2381, %v2384, %v2387
  %v2389 = vsel %vm2378, nan, %v2388
  %v2390 = vand.u32 2147483647, %v923
  %vm2391 = vcmp.le.f32.partialorder %v2390, 0.7853982
  %vm2392 = vcmp.lt.s32.totalorder %v923, 0
  %v2393 = vand.u32 %v923, 2139095040
  %v2394 = vshrl.u32 %v2393, 23
  %v2395 = vsub.s32 %v2394, 127
  %v2396 = vand.u32 2147483647, %v923
  %v2397 = vand.u32 %v2396, 8388607
  %v2398 = vor.u32 %v2397, 8388608
  %v2399 = vsub.s32 0, %v2398
  %v2400 = vadd.s32 %v2395, 1
  %vm2401 = vcmp.gt.s32.totalorder %v2400, 0
  %v2402 = vsel %vm2401, %v2400, 0
  %v2403 = vshrl.u32 %v2402, 5
  %v2404 = vand.u32 %v2402, 31
  %v2405 = vsub.s32 32, %v2404
  %v2406 = vshrl.u32 683565275, %v2405
  %v2407 = vshll.u32 683565275, %v2404
  %v2408 = vshrl.u32 2475754826, %v2405
  %v2409 = vor.u32 %v2407, %v2408
  %v2410 = vshll.u32 2475754826, %v2404
  %v2411 = vshrl.u32 2131351028, %v2405
  %v2412 = vor.u32 %v2410, %v2411
  %v2413 = vshll.u32 2131351028, %v2404
  %v2414 = vshrl.u32 2102212464, %v2405
  %v2415 = vor.u32 %v2413, %v2414
  %v2416 = vshll.u32 2102212464, %v2404
  %v2417 = vshrl.u32 920167782, %v2405
  %v2418 = vor.u32 %v2416, %v2417
  %v2419 = vshll.u32 920167782, %v2404
  %v2420 = vshrl.u32 1326507024, %v2405
  %v2421 = vor.u32 %v2419, %v2420
  %vm2422 = vcmp.lt.s32.totalorder %v2403, 1
  %vm2423 = vcmp.lt.s32.totalorder %v2403, 2
  %vm2424 = vcmp.lt.s32.totalorder %v2403, 3
  %vm2425 = vcmp.lt.s32.totalorder %v2403, 4
  %v2426 = vsel %vm2422, %v2406, %v2409
  %v2427 = vsel %vm2425, %v2415, 2102212464
  %v2428 = vsel %vm2424, %v2412, %v2427
  %v2429 = vsel %vm2423, %v2426, %v2428
  %v2430 = vsel %vm2422, %v2409, %v2412
  %v2431 = vsel %vm2425, %v2418, 920167782
  %v2432 = vsel %vm2424, %v2415, %v2431
  %v2433 = vsel %vm2423, %v2430, %v2432
  %v2434 = vsel %vm2422, %v2412, %v2415
  %v2435 = vsel %vm2425, %v2421, 1326507024
  %v2436 = vsel %vm2424, %v2418, %v2435
  %v2437 = vsel %vm2423, %v2434, %v2436
  %v2438 = vshll.u32 %v2398, 8
  %v2439 = vmul.u32.u64.compose %v2438, %v2437
  %v2440 = vextract.low.u32 %v2439
  %v2441 = vextract.high.u32 %v2439
  %v2442 = vmul.u32.u64.compose %v2438, %v2433
  %v2443 = vextract.low.u32 %v2442
  %v2444 = vextract.high.u32 %v2442
  %v2445 = vmul.u32 %v2438, %v2429
  %v2446 = vadd.s32 %v2441, %v2443
  %vm2447 = vc.u32 %v2441, %v2443
  %v2448 = vadd.s32 %v2444, 1
  %v2449 = vsel %vm2447, %v2448, %v2444
  %v2450 = vadd.s32 %v2445, %v2449
  %v2451 = vadd.s32 %v2450, 536870912
  %v2452 = vshrl.u32 %v2451, 30
  %v2453 = vshll.u32 %v2452, 30
  %v2454 = vsub.s32 %v2450, %v2453
  %vm2455 = vcmp.lt.s32.totalorder %v2454, 0
  %v2456 = vsub.s32 0, %v2454
  %v2457 = vsel %vm2455, %v2456, %v2454
  %v2458 = vclz %v2457
  %v2459 = vsub.s32 %v2458, 2
  %vm2460 = vcmp.gt.s32.totalorder 0, %v2459
  %v2461 = vsel %vm2460, 0, %v2459
  %v2462 = vsub.s32 32, %v2461
  %v2463 = vshll.u32 %v2454, %v2461
  %v2464 = vshrl.u32 %v2446, %v2462
  %v2465 = vor.u32 %v2463, %v2464
  %v2466 = vsub.s32 4294967266, %v2461
  %v2467 = vadd.s32 %v2466, 127
  %v2468 = vshll.u32 %v2467, 23
  %v2469 = vor.u32 4788187, %v2468
  %v2470 = vand.u32 2147483647, %v2469
  %v2472 = vcvt.s32.f32 %v2465
  %v2473 = vmul.f32 %v2472, %v2470
  %v2474 = vxor.u32 %v2473, 2147483648
  %v2475 = vsel %vm2392, %v2474, %v2473
  %v2476 = vsub.s32 4, %v2452
  %v2477 = vsel %vm2392, %v2476, %v2452
  %v2478 = vsel %vm2391, %v923, %v2475
  %v2479 = vsel %vm2391, 0, %v2477
  %v2480 = vcosq.f32.pop %v2478
  %v2481 = vsinq.f32.pop %v2478
  %vm2482 = vweird.f32 %v923
  %v2483 = vadd.s32 %v2479, 3
  %v2484 = vand.u32 %v2483, 3
  %vm2485 = vcmp.lt.s32.totalorder %v2484, 2
  %vm2486 = vcmp.eq.s32.totalorder %v2484, 0
  %v2487 = vxor.u32 %v2481, 2147483648
  %v2488 = vsel %vm2486, %v2480, %v2487
  %vm2489 = vcmp.eq.s32.totalorder %v2484, 2
  %v2490 = vxor.u32 %v2480, 2147483648
  %v2491 = vsel %vm2489, %v2490, %v2481
  %v2492 = vsel %vm2485, %v2488, %v2491
  %v2493 = vsel %vm2482, nan, %v2492
  %v2494 = vand.u32 2147483647, %v924
  %vm2495 = vcmp.le.f32.partialorder %v2494, 0.7853982
  %vm2496 = vcmp.lt.s32.totalorder %v924, 0
  %v2497 = vand.u32 %v924, 2139095040
  %v2498 = vshrl.u32 %v2497, 23
  %v2499 = vsub.s32 %v2498, 127
  %v2500 = vand.u32 2147483647, %v924
  %v2501 = vand.u32 %v2500, 8388607
  %v2502 = vor.u32 %v2501, 8388608
  %v2503 = vsub.s32 0, %v2502
  %v2504 = vadd.s32 %v2499, 1
  %vm2505 = vcmp.gt.s32.totalorder %v2504, 0
  %v2506 = vsel %vm2505, %v2504, 0
  %v2507 = vshrl.u32 %v2506, 5
  %v2508 = vand.u32 %v2506, 31
  %v2509 = vsub.s32 32, %v2508
  %v2510 = vshrl.u32 683565275, %v2509
  %v2511 = vshll.u32 683565275, %v2508
  %v2512 = vshrl.u32 2475754826, %v2509
  %v2513 = vor.u32 %v2511, %v2512
  %v2514 = vshll.u32 2475754826, %v2508
  %v2515 = vshrl.u32 2131351028, %v2509
  %v2516 = vor.u32 %v2514, %v2515
  %v2517 = vshll.u32 2131351028, %v2508
  %v2518 = vshrl.u32 2102212464, %v2509
  %v2519 = vor.u32 %v2517, %v2518
  %v2520 = vshll.u32 2102212464, %v2508
  %v2521 = vshrl.u32 920167782, %v2509
  %v2522 = vor.u32 %v2520, %v2521
  %v2523 = vshll.u32 920167782, %v2508
  %v2524 = vshrl.u32 1326507024, %v2509
  %v2525 = vor.u32 %v2523, %v2524
  %vm2526 = vcmp.lt.s32.totalorder %v2507, 1
  %vm2527 = vcmp.lt.s32.totalorder %v2507, 2
  %vm2528 = vcmp.lt.s32.totalorder %v2507, 3
  %vm2529 = vcmp.lt.s32.totalorder %v2507, 4
  %v2530 = vsel %vm2526, %v2510, %v2513
  %v2531 = vsel %vm2529, %v2519, 2102212464
  %v2532 = vsel %vm2528, %v2516, %v2531
  %v2533 = vsel %vm2527, %v2530, %v2532
  %v2534 = vsel %vm2526, %v2513, %v2516
  %v2535 = vsel %vm2529, %v2522, 920167782
  %v2536 = vsel %vm2528, %v2519, %v2535
  %v2537 = vsel %vm2527, %v2534, %v2536
  %v2538 = vsel %vm2526, %v2516, %v2519
  %v2539 = vsel %vm2529, %v2525, 1326507024
  %v2540 = vsel %vm2528, %v2522, %v2539
  %v2541 = vsel %vm2527, %v2538, %v2540
  %v2542 = vshll.u32 %v2502, 8
  %v2543 = vmul.u32.u64.compose %v2542, %v2541
  %v2544 = vextract.low.u32 %v2543
  %v2545 = vextract.high.u32 %v2543
  %v2546 = vmul.u32.u64.compose %v2542, %v2537
  %v2547 = vextract.low.u32 %v2546
  %v2548 = vextract.high.u32 %v2546
  %v2549 = vmul.u32 %v2542, %v2533
  %v2550 = vadd.s32 %v2545, %v2547
  %vm2551 = vc.u32 %v2545, %v2547
  %v2552 = vadd.s32 %v2548, 1
  %v2553 = vsel %vm2551, %v2552, %v2548
  %v2554 = vadd.s32 %v2549, %v2553
  %v2555 = vadd.s32 %v2554, 536870912
  %v2556 = vshrl.u32 %v2555, 30
  %v2557 = vshll.u32 %v2556, 30
  %v2558 = vsub.s32 %v2554, %v2557
  %vm2559 = vcmp.lt.s32.totalorder %v2558, 0
  %v2560 = vsub.s32 0, %v2558
  %v2561 = vsel %vm2559, %v2560, %v2558
  %v2562 = vclz %v2561
  %v2563 = vsub.s32 %v2562, 2
  %vm2564 = vcmp.gt.s32.totalorder 0, %v2563
  %v2565 = vsel %vm2564, 0, %v2563
  %v2566 = vsub.s32 32, %v2565
  %v2567 = vshll.u32 %v2558, %v2565
  %v2568 = vshrl.u32 %v2550, %v2566
  %v2569 = vor.u32 %v2567, %v2568
  %v2570 = vsub.s32 4294967266, %v2565
  %v2571 = vadd.s32 %v2570, 127
  %v2572 = vshll.u32 %v2571, 23
  %v2573 = vor.u32 4788187, %v2572
  %v2574 = vand.u32 2147483647, %v2573
  %v2576 = vcvt.s32.f32 %v2569
  %v2577 = vmul.f32 %v2576, %v2574
  %v2578 = vxor.u32 %v2577, 2147483648
  %v2579 = vsel %vm2496, %v2578, %v2577
  %v2580 = vsub.s32 4, %v2556
  %v2581 = vsel %vm2496, %v2580, %v2556
  %v2582 = vsel %vm2495, %v924, %v2579
  %v2583 = vsel %vm2495, 0, %v2581
  %v2584 = vcosq.f32.pop %v2582
  %v2585 = vsinq.f32.pop %v2582
  %vm2586 = vweird.f32 %v924
  %v2587 = vadd.s32 %v2583, 3
  %v2588 = vand.u32 %v2587, 3
  %vm2589 = vcmp.lt.s32.totalorder %v2588, 2
  %vm2590 = vcmp.eq.s32.totalorder %v2588, 0
  %v2591 = vxor.u32 %v2585, 2147483648
  %v2592 = vsel %vm2590, %v2584, %v2591
  %vm2593 = vcmp.eq.s32.totalorder %v2588, 2
  %v2594 = vxor.u32 %v2584, 2147483648
  %v2595 = vsel %vm2593, %v2594, %v2585
  %v2596 = vsel %vm2589, %v2592, %v2595
  %v2597 = vsel %vm2586, nan, %v2596
  %v2598 = vand.u32 2147483647, %v925
  %vm2599 = vcmp.le.f32.partialorder %v2598, 0.7853982
  %vm2600 = vcmp.lt.s32.totalorder %v925, 0
  %v2601 = vand.u32 %v925, 2139095040
  %v2602 = vshrl.u32 %v2601, 23
  %v2603 = vsub.s32 %v2602, 127
  %v2604 = vand.u32 2147483647, %v925
  %v2605 = vand.u32 %v2604, 8388607
  %v2606 = vor.u32 %v2605, 8388608
  %v2607 = vsub.s32 0, %v2606
  %v2608 = vadd.s32 %v2603, 1
  %vm2609 = vcmp.gt.s32.totalorder %v2608, 0
  %v2610 = vsel %vm2609, %v2608, 0
  %v2611 = vshrl.u32 %v2610, 5
  %v2612 = vand.u32 %v2610, 31
  %v2613 = vsub.s32 32, %v2612
  %v2614 = vshrl.u32 683565275, %v2613
  %v2615 = vshll.u32 683565275, %v2612
  %v2616 = vshrl.u32 2475754826, %v2613
  %v2617 = vor.u32 %v2615, %v2616
  %v2618 = vshll.u32 2475754826, %v2612
  %v2619 = vshrl.u32 2131351028, %v2613
  %v2620 = vor.u32 %v2618, %v2619
  %v2621 = vshll.u32 2131351028, %v2612
  %v2622 = vshrl.u32 2102212464, %v2613
  %v2623 = vor.u32 %v2621, %v2622
  %v2624 = vshll.u32 2102212464, %v2612
  %v2625 = vshrl.u32 920167782, %v2613
  %v2626 = vor.u32 %v2624, %v2625
  %v2627 = vshll.u32 920167782, %v2612
  %v2628 = vshrl.u32 1326507024, %v2613
  %v2629 = vor.u32 %v2627, %v2628
  %vm2630 = vcmp.lt.s32.totalorder %v2611, 1
  %vm2631 = vcmp.lt.s32.totalorder %v2611, 2
  %vm2632 = vcmp.lt.s32.totalorder %v2611, 3
  %vm2633 = vcmp.lt.s32.totalorder %v2611, 4
  %v2634 = vsel %vm2630, %v2614, %v2617
  %v2635 = vsel %vm2633, %v2623, 2102212464
  %v2636 = vsel %vm2632, %v2620, %v2635
  %v2637 = vsel %vm2631, %v2634, %v2636
  %v2638 = vsel %vm2630, %v2617, %v2620
  %v2639 = vsel %vm2633, %v2626, 920167782
  %v2640 = vsel %vm2632, %v2623, %v2639
  %v2641 = vsel %vm2631, %v2638, %v2640
  %v2642 = vsel %vm2630, %v2620, %v2623
  %v2643 = vsel %vm2633, %v2629, 1326507024
  %v2644 = vsel %vm2632, %v2626, %v2643
  %v2645 = vsel %vm2631, %v2642, %v2644
  %v2646 = vshll.u32 %v2606, 8
  %v2647 = vmul.u32.u64.compose %v2646, %v2645
  %v2648 = vextract.low.u32 %v2647
  %v2649 = vextract.high.u32 %v2647
  %v2650 = vmul.u32.u64.compose %v2646, %v2641
  %v2651 = vextract.low.u32 %v2650
  %v2652 = vextract.high.u32 %v2650
  %v2653 = vmul.u32 %v2646, %v2637
  %v2654 = vadd.s32 %v2649, %v2651
  %vm2655 = vc.u32 %v2649, %v2651
  %v2656 = vadd.s32 %v2652, 1
  %v2657 = vsel %vm2655, %v2656, %v2652
  %v2658 = vadd.s32 %v2653, %v2657
  %v2659 = vadd.s32 %v2658, 536870912
  %v2660 = vshrl.u32 %v2659, 30
  %v2661 = vshll.u32 %v2660, 30
  %v2662 = vsub.s32 %v2658, %v2661
  %vm2663 = vcmp.lt.s32.totalorder %v2662, 0
  %v2664 = vsub.s32 0, %v2662
  %v2665 = vsel %vm2663, %v2664, %v2662
  %v2666 = vclz %v2665
  %v2667 = vsub.s32 %v2666, 2
  %vm2668 = vcmp.gt.s32.totalorder 0, %v2667
  %v2669 = vsel %vm2668, 0, %v2667
  %v2670 = vsub.s32 32, %v2669
  %v2671 = vshll.u32 %v2662, %v2669
  %v2672 = vshrl.u32 %v2654, %v2670
  %v2673 = vor.u32 %v2671, %v2672
  %v2674 = vsub.s32 4294967266, %v2669
  %v2675 = vadd.s32 %v2674, 127
  %v2676 = vshll.u32 %v2675, 23
  %v2677 = vor.u32 4788187, %v2676
  %v2678 = vand.u32 2147483647, %v2677
  %v2680 = vcvt.s32.f32 %v2673
  %v2681 = vmul.f32 %v2680, %v2678
  %v2682 = vxor.u32 %v2681, 2147483648
  %v2683 = vsel %vm2600, %v2682, %v2681
  %v2684 = vsub.s32 4, %v2660
  %v2685 = vsel %vm2600, %v2684, %v2660
  %v2686 = vsel %vm2599, %v925, %v2683
  %v2687 = vsel %vm2599, 0, %v2685
  %v2688 = vcosq.f32.pop %v2686
  %v2689 = vsinq.f32.pop %v2686
  %vm2690 = vweird.f32 %v925
  %v2691 = vadd.s32 %v2687, 3
  %v2692 = vand.u32 %v2691, 3
  %vm2693 = vcmp.lt.s32.totalorder %v2692, 2
  %vm2694 = vcmp.eq.s32.totalorder %v2692, 0
  %v2695 = vxor.u32 %v2689, 2147483648
  %v2696 = vsel %vm2694, %v2688, %v2695
  %vm2697 = vcmp.eq.s32.totalorder %v2692, 2
  %v2698 = vxor.u32 %v2688, 2147483648
  %v2699 = vsel %vm2697, %v2698, %v2689
  %v2700 = vsel %vm2693, %v2696, %v2699
  %v2701 = vsel %vm2690, nan, %v2700
  %v2702 = vand.u32 2147483647, %v926
  %vm2703 = vcmp.le.f32.partialorder %v2702, 0.7853982
  %vm2704 = vcmp.lt.s32.totalorder %v926, 0
  %v2705 = vand.u32 %v926, 2139095040
  %v2706 = vshrl.u32 %v2705, 23
  %v2707 = vsub.s32 %v2706, 127
  %v2708 = vand.u32 2147483647, %v926
  %v2709 = vand.u32 %v2708, 8388607
  %v2710 = vor.u32 %v2709, 8388608
  %v2711 = vsub.s32 0, %v2710
  %v2712 = vadd.s32 %v2707, 1
  %vm2713 = vcmp.gt.s32.totalorder %v2712, 0
  %v2714 = vsel %vm2713, %v2712, 0
  %v2715 = vshrl.u32 %v2714, 5
  %v2716 = vand.u32 %v2714, 31
  %v2717 = vsub.s32 32, %v2716
  %v2718 = vshrl.u32 683565275, %v2717
  %v2719 = vshll.u32 683565275, %v2716
  %v2720 = vshrl.u32 2475754826, %v2717
  %v2721 = vor.u32 %v2719, %v2720
  %v2722 = vshll.u32 2475754826, %v2716
  %v2723 = vshrl.u32 2131351028, %v2717
  %v2724 = vor.u32 %v2722, %v2723
  %v2725 = vshll.u32 2131351028, %v2716
  %v2726 = vshrl.u32 2102212464, %v2717
  %v2727 = vor.u32 %v2725, %v2726
  %v2728 = vshll.u32 2102212464, %v2716
  %v2729 = vshrl.u32 920167782, %v2717
  %v2730 = vor.u32 %v2728, %v2729
  %v2731 = vshll.u32 920167782, %v2716
  %v2732 = vshrl.u32 1326507024, %v2717
  %v2733 = vor.u32 %v2731, %v2732
  %vm2734 = vcmp.lt.s32.totalorder %v2715, 1
  %vm2735 = vcmp.lt.s32.totalorder %v2715, 2
  %vm2736 = vcmp.lt.s32.totalorder %v2715, 3
  %vm2737 = vcmp.lt.s32.totalorder %v2715, 4
  %v2738 = vsel %vm2734, %v2718, %v2721
  %v2739 = vsel %vm2737, %v2727, 2102212464
  %v2740 = vsel %vm2736, %v2724, %v2739
  %v2741 = vsel %vm2735, %v2738, %v2740
  %v2742 = vsel %vm2734, %v2721, %v2724
  %v2743 = vsel %vm2737, %v2730, 920167782
  %v2744 = vsel %vm2736, %v2727, %v2743
  %v2745 = vsel %vm2735, %v2742, %v2744
  %v2746 = vsel %vm2734, %v2724, %v2727
  %v2747 = vsel %vm2737, %v2733, 1326507024
  %v2748 = vsel %vm2736, %v2730, %v2747
  %v2749 = vsel %vm2735, %v2746, %v2748
  %v2750 = vshll.u32 %v2710, 8
  %v2751 = vmul.u32.u64.compose %v2750, %v2749
  %v2752 = vextract.low.u32 %v2751
  %v2753 = vextract.high.u32 %v2751
  %v2754 = vmul.u32.u64.compose %v2750, %v2745
  %v2755 = vextract.low.u32 %v2754
  %v2756 = vextract.high.u32 %v2754
  %v2757 = vmul.u32 %v2750, %v2741
  %v2758 = vadd.s32 %v2753, %v2755
  %vm2759 = vc.u32 %v2753, %v2755
  %v2760 = vadd.s32 %v2756, 1
  %v2761 = vsel %vm2759, %v2760, %v2756
  %v2762 = vadd.s32 %v2757, %v2761
  %v2763 = vadd.s32 %v2762, 536870912
  %v2764 = vshrl.u32 %v2763, 30
  %v2765 = vshll.u32 %v2764, 30
  %v2766 = vsub.s32 %v2762, %v2765
  %vm2767 = vcmp.lt.s32.totalorder %v2766, 0
  %v2768 = vsub.s32 0, %v2766
  %v2769 = vsel %vm2767, %v2768, %v2766
  %v2770 = vclz %v2769
  %v2771 = vsub.s32 %v2770, 2
  %vm2772 = vcmp.gt.s32.totalorder 0, %v2771
  %v2773 = vsel %vm2772, 0, %v2771
  %v2774 = vsub.s32 32, %v2773
  %v2775 = vshll.u32 %v2766, %v2773
  %v2776 = vshrl.u32 %v2758, %v2774
  %v2777 = vor.u32 %v2775, %v2776
  %v2778 = vsub.s32 4294967266, %v2773
  %v2779 = vadd.s32 %v2778, 127
  %v2780 = vshll.u32 %v2779, 23
  %v2781 = vor.u32 4788187, %v2780
  %v2782 = vand.u32 2147483647, %v2781
  %v2784 = vcvt.s32.f32 %v2777
  %v2785 = vmul.f32 %v2784, %v2782
  %v2786 = vxor.u32 %v2785, 2147483648
  %v2787 = vsel %vm2704, %v2786, %v2785
  %v2788 = vsub.s32 4, %v2764
  %v2789 = vsel %vm2704, %v2788, %v2764
  %v2790 = vsel %vm2703, %v926, %v2787
  %v2791 = vsel %vm2703, 0, %v2789
  %v2792 = vcosq.f32.pop %v2790
  %v2793 = vsinq.f32.pop %v2790
  %vm2794 = vweird.f32 %v926
  %v2795 = vadd.s32 %v2791, 3
  %v2796 = vand.u32 %v2795, 3
  %vm2797 = vcmp.lt.s32.totalorder %v2796, 2
  %vm2798 = vcmp.eq.s32.totalorder %v2796, 0
  %v2799 = vxor.u32 %v2793, 2147483648
  %v2800 = vsel %vm2798, %v2792, %v2799
  %vm2801 = vcmp.eq.s32.totalorder %v2796, 2
  %v2802 = vxor.u32 %v2792, 2147483648
  %v2803 = vsel %vm2801, %v2802, %v2793
  %v2804 = vsel %vm2797, %v2800, %v2803
  %v2805 = vsel %vm2794, nan, %v2804
  %v2806 = vand.u32 2147483647, %v927
  %vm2807 = vcmp.le.f32.partialorder %v2806, 0.7853982
  %vm2808 = vcmp.lt.s32.totalorder %v927, 0
  %v2809 = vand.u32 %v927, 2139095040
  %v2810 = vshrl.u32 %v2809, 23
  %v2811 = vsub.s32 %v2810, 127
  %v2812 = vand.u32 2147483647, %v927
  %v2813 = vand.u32 %v2812, 8388607
  %v2814 = vor.u32 %v2813, 8388608
  %v2815 = vsub.s32 0, %v2814
  %v2816 = vadd.s32 %v2811, 1
  %vm2817 = vcmp.gt.s32.totalorder %v2816, 0
  %v2818 = vsel %vm2817, %v2816, 0
  %v2819 = vshrl.u32 %v2818, 5
  %v2820 = vand.u32 %v2818, 31
  %v2821 = vsub.s32 32, %v2820
  %v2822 = vshrl.u32 683565275, %v2821
  %v2823 = vshll.u32 683565275, %v2820
  %v2824 = vshrl.u32 2475754826, %v2821
  %v2825 = vor.u32 %v2823, %v2824
  %v2826 = vshll.u32 2475754826, %v2820
  %v2827 = vshrl.u32 2131351028, %v2821
  %v2828 = vor.u32 %v2826, %v2827
  %v2829 = vshll.u32 2131351028, %v2820
  %v2830 = vshrl.u32 2102212464, %v2821
  %v2831 = vor.u32 %v2829, %v2830
  %v2832 = vshll.u32 2102212464, %v2820
  %v2833 = vshrl.u32 920167782, %v2821
  %v2834 = vor.u32 %v2832, %v2833
  %v2835 = vshll.u32 920167782, %v2820
  %v2836 = vshrl.u32 1326507024, %v2821
  %v2837 = vor.u32 %v2835, %v2836
  %vm2838 = vcmp.lt.s32.totalorder %v2819, 1
  %vm2839 = vcmp.lt.s32.totalorder %v2819, 2
  %vm2840 = vcmp.lt.s32.totalorder %v2819, 3
  %vm2841 = vcmp.lt.s32.totalorder %v2819, 4
  %v2842 = vsel %vm2838, %v2822, %v2825
  %v2843 = vsel %vm2841, %v2831, 2102212464
  %v2844 = vsel %vm2840, %v2828, %v2843
  %v2845 = vsel %vm2839, %v2842, %v2844
  %v2846 = vsel %vm2838, %v2825, %v2828
  %v2847 = vsel %vm2841, %v2834, 920167782
  %v2848 = vsel %vm2840, %v2831, %v2847
  %v2849 = vsel %vm2839, %v2846, %v2848
  %v2850 = vsel %vm2838, %v2828, %v2831
  %v2851 = vsel %vm2841, %v2837, 1326507024
  %v2852 = vsel %vm2840, %v2834, %v2851
  %v2853 = vsel %vm2839, %v2850, %v2852
  %v2854 = vshll.u32 %v2814, 8
  %v2855 = vmul.u32.u64.compose %v2854, %v2853
  %v2856 = vextract.low.u32 %v2855
  %v2857 = vextract.high.u32 %v2855
  %v2858 = vmul.u32.u64.compose %v2854, %v2849
  %v2859 = vextract.low.u32 %v2858
  %v2860 = vextract.high.u32 %v2858
  %v2861 = vmul.u32 %v2854, %v2845
  %v2862 = vadd.s32 %v2857, %v2859
  %vm2863 = vc.u32 %v2857, %v2859
  %v2864 = vadd.s32 %v2860, 1
  %v2865 = vsel %vm2863, %v2864, %v2860
  %v2866 = vadd.s32 %v2861, %v2865
  %v2867 = vadd.s32 %v2866, 536870912
  %v2868 = vshrl.u32 %v2867, 30
  %v2869 = vshll.u32 %v2868, 30
  %v2870 = vsub.s32 %v2866, %v2869
  %vm2871 = vcmp.lt.s32.totalorder %v2870, 0
  %v2872 = vsub.s32 0, %v2870
  %v2873 = vsel %vm2871, %v2872, %v2870
  %v2874 = vclz %v2873
  %v2875 = vsub.s32 %v2874, 2
  %vm2876 = vcmp.gt.s32.totalorder 0, %v2875
  %v2877 = vsel %vm2876, 0, %v2875
  %v2878 = vsub.s32 32, %v2877
  %v2879 = vshll.u32 %v2870, %v2877
  %v2880 = vshrl.u32 %v2862, %v2878
  %v2881 = vor.u32 %v2879, %v2880
  %v2882 = vsub.s32 4294967266, %v2877
  %v2883 = vadd.s32 %v2882, 127
  %v2884 = vshll.u32 %v2883, 23
  %v2885 = vor.u32 4788187, %v2884
  %v2886 = vand.u32 2147483647, %v2885
  %v2888 = vcvt.s32.f32 %v2881
  %v2889 = vmul.f32 %v2888, %v2886
  %v2890 = vxor.u32 %v2889, 2147483648
  %v2891 = vsel %vm2808, %v2890, %v2889
  %v2892 = vsub.s32 4, %v2868
  %v2893 = vsel %vm2808, %v2892, %v2868
  %v2894 = vsel %vm2807, %v927, %v2891
  %v2895 = vsel %vm2807, 0, %v2893
  %v2896 = vcosq.f32.pop %v2894
  %v2897 = vsinq.f32.pop %v2894
  %vm2898 = vweird.f32 %v927
  %v2899 = vadd.s32 %v2895, 3
  %v2900 = vand.u32 %v2899, 3
  %vm2901 = vcmp.lt.s32.totalorder %v2900, 2
  %vm2902 = vcmp.eq.s32.totalorder %v2900, 0
  %v2903 = vxor.u32 %v2897, 2147483648
  %v2904 = vsel %vm2902, %v2896, %v2903
  %vm2905 = vcmp.eq.s32.totalorder %v2900, 2
  %v2906 = vxor.u32 %v2896, 2147483648
  %v2907 = vsel %vm2905, %v2906, %v2897
  %v2908 = vsel %vm2901, %v2904, %v2907
  %v2909 = vsel %vm2898, nan, %v2908
  %v2910 = vand.u32 2147483647, %v928
  %vm2911 = vcmp.le.f32.partialorder %v2910, 0.7853982
  %vm2912 = vcmp.lt.s32.totalorder %v928, 0
  %v2913 = vand.u32 %v928, 2139095040
  %v2914 = vshrl.u32 %v2913, 23
  %v2915 = vsub.s32 %v2914, 127
  %v2916 = vand.u32 2147483647, %v928
  %v2917 = vand.u32 %v2916, 8388607
  %v2918 = vor.u32 %v2917, 8388608
  %v2919 = vsub.s32 0, %v2918
  %v2920 = vadd.s32 %v2915, 1
  %vm2921 = vcmp.gt.s32.totalorder %v2920, 0
  %v2922 = vsel %vm2921, %v2920, 0
  %v2923 = vshrl.u32 %v2922, 5
  %v2924 = vand.u32 %v2922, 31
  %v2925 = vsub.s32 32, %v2924
  %v2926 = vshrl.u32 683565275, %v2925
  %v2927 = vshll.u32 683565275, %v2924
  %v2928 = vshrl.u32 2475754826, %v2925
  %v2929 = vor.u32 %v2927, %v2928
  %v2930 = vshll.u32 2475754826, %v2924
  %v2931 = vshrl.u32 2131351028, %v2925
  %v2932 = vor.u32 %v2930, %v2931
  %v2933 = vshll.u32 2131351028, %v2924
  %v2934 = vshrl.u32 2102212464, %v2925
  %v2935 = vor.u32 %v2933, %v2934
  %v2936 = vshll.u32 2102212464, %v2924
  %v2937 = vshrl.u32 920167782, %v2925
  %v2938 = vor.u32 %v2936, %v2937
  %v2939 = vshll.u32 920167782, %v2924
  %v2940 = vshrl.u32 1326507024, %v2925
  %v2941 = vor.u32 %v2939, %v2940
  %vm2942 = vcmp.lt.s32.totalorder %v2923, 1
  %vm2943 = vcmp.lt.s32.totalorder %v2923, 2
  %vm2944 = vcmp.lt.s32.totalorder %v2923, 3
  %vm2945 = vcmp.lt.s32.totalorder %v2923, 4
  %v2946 = vsel %vm2942, %v2926, %v2929
  %v2947 = vsel %vm2945, %v2935, 2102212464
  %v2948 = vsel %vm2944, %v2932, %v2947
  %v2949 = vsel %vm2943, %v2946, %v2948
  %v2950 = vsel %vm2942, %v2929, %v2932
  %v2951 = vsel %vm2945, %v2938, 920167782
  %v2952 = vsel %vm2944, %v2935, %v2951
  %v2953 = vsel %vm2943, %v2950, %v2952
  %v2954 = vsel %vm2942, %v2932, %v2935
  %v2955 = vsel %vm2945, %v2941, 1326507024
  %v2956 = vsel %vm2944, %v2938, %v2955
  %v2957 = vsel %vm2943, %v2954, %v2956
  %v2958 = vshll.u32 %v2918, 8
  %v2959 = vmul.u32.u64.compose %v2958, %v2957
  %v2960 = vextract.low.u32 %v2959
  %v2961 = vextract.high.u32 %v2959
  %v2962 = vmul.u32.u64.compose %v2958, %v2953
  %v2963 = vextract.low.u32 %v2962
  %v2964 = vextract.high.u32 %v2962
  %v2965 = vmul.u32 %v2958, %v2949
  %v2966 = vadd.s32 %v2961, %v2963
  %vm2967 = vc.u32 %v2961, %v2963
  %v2968 = vadd.s32 %v2964, 1
  %v2969 = vsel %vm2967, %v2968, %v2964
  %v2970 = vadd.s32 %v2965, %v2969
  %v2971 = vadd.s32 %v2970, 536870912
  %v2972 = vshrl.u32 %v2971, 30
  %v2973 = vshll.u32 %v2972, 30
  %v2974 = vsub.s32 %v2970, %v2973
  %vm2975 = vcmp.lt.s32.totalorder %v2974, 0
  %v2976 = vsub.s32 0, %v2974
  %v2977 = vsel %vm2975, %v2976, %v2974
  %v2978 = vclz %v2977
  %v2979 = vsub.s32 %v2978, 2
  %vm2980 = vcmp.gt.s32.totalorder 0, %v2979
  %v2981 = vsel %vm2980, 0, %v2979
  %v2982 = vsub.s32 32, %v2981
  %v2983 = vshll.u32 %v2974, %v2981
  %v2984 = vshrl.u32 %v2966, %v2982
  %v2985 = vor.u32 %v2983, %v2984
  %v2986 = vsub.s32 4294967266, %v2981
  %v2987 = vadd.s32 %v2986, 127
  %v2988 = vshll.u32 %v2987, 23
  %v2989 = vor.u32 4788187, %v2988
  %v2990 = vand.u32 2147483647, %v2989
  %v2992 = vcvt.s32.f32 %v2985
  %v2993 = vmul.f32 %v2992, %v2990
  %v2994 = vxor.u32 %v2993, 2147483648
  %v2995 = vsel %vm2912, %v2994, %v2993
  %v2996 = vsub.s32 4, %v2972
  %v2997 = vsel %vm2912, %v2996, %v2972
  %v2998 = vsel %vm2911, %v928, %v2995
  %v2999 = vsel %vm2911, 0, %v2997
  %v3000 = vcosq.f32.pop %v2998
  %v3001 = vsinq.f32.pop %v2998
  %vm3002 = vweird.f32 %v928
  %v3003 = vadd.s32 %v2999, 3
  %v3004 = vand.u32 %v3003, 3
  %vm3005 = vcmp.lt.s32.totalorder %v3004, 2
  %vm3006 = vcmp.eq.s32.totalorder %v3004, 0
  %v3007 = vxor.u32 %v3001, 2147483648
  %v3008 = vsel %vm3006, %v3000, %v3007
  %vm3009 = vcmp.eq.s32.totalorder %v3004, 2
  %v3010 = vxor.u32 %v3000, 2147483648
  %v3011 = vsel %vm3009, %v3010, %v3001
  %v3012 = vsel %vm3005, %v3008, %v3011
  %v3013 = vsel %vm3002, nan, %v3012
  %v3014 = vand.u32 2147483647, %v929
  %vm3015 = vcmp.le.f32.partialorder %v3014, 0.7853982
  %vm3016 = vcmp.lt.s32.totalorder %v929, 0
  %v3017 = vand.u32 %v929, 2139095040
  %v3018 = vshrl.u32 %v3017, 23
  %v3019 = vsub.s32 %v3018, 127
  %v3020 = vand.u32 2147483647, %v929
  %v3021 = vand.u32 %v3020, 8388607
  %v3022 = vor.u32 %v3021, 8388608
  %v3023 = vsub.s32 0, %v3022
  %v3024 = vadd.s32 %v3019, 1
  %vm3025 = vcmp.gt.s32.totalorder %v3024, 0
  %v3026 = vsel %vm3025, %v3024, 0
  %v3027 = vshrl.u32 %v3026, 5
  %v3028 = vand.u32 %v3026, 31
  %v3029 = vsub.s32 32, %v3028
  %v3030 = vshrl.u32 683565275, %v3029
  %v3031 = vshll.u32 683565275, %v3028
  %v3032 = vshrl.u32 2475754826, %v3029
  %v3033 = vor.u32 %v3031, %v3032
  %v3034 = vshll.u32 2475754826, %v3028
  %v3035 = vshrl.u32 2131351028, %v3029
  %v3036 = vor.u32 %v3034, %v3035
  %v3037 = vshll.u32 2131351028, %v3028
  %v3038 = vshrl.u32 2102212464, %v3029
  %v3039 = vor.u32 %v3037, %v3038
  %v3040 = vshll.u32 2102212464, %v3028
  %v3041 = vshrl.u32 920167782, %v3029
  %v3042 = vor.u32 %v3040, %v3041
  %v3043 = vshll.u32 920167782, %v3028
  %v3044 = vshrl.u32 1326507024, %v3029
  %v3045 = vor.u32 %v3043, %v3044
  %vm3046 = vcmp.lt.s32.totalorder %v3027, 1
  %vm3047 = vcmp.lt.s32.totalorder %v3027, 2
  %vm3048 = vcmp.lt.s32.totalorder %v3027, 3
  %vm3049 = vcmp.lt.s32.totalorder %v3027, 4
  %v3050 = vsel %vm3046, %v3030, %v3033
  %v3051 = vsel %vm3049, %v3039, 2102212464
  %v3052 = vsel %vm3048, %v3036, %v3051
  %v3053 = vsel %vm3047, %v3050, %v3052
  %v3054 = vsel %vm3046, %v3033, %v3036
  %v3055 = vsel %vm3049, %v3042, 920167782
  %v3056 = vsel %vm3048, %v3039, %v3055
  %v3057 = vsel %vm3047, %v3054, %v3056
  %v3058 = vsel %vm3046, %v3036, %v3039
  %v3059 = vsel %vm3049, %v3045, 1326507024
  %v3060 = vsel %vm3048, %v3042, %v3059
  %v3061 = vsel %vm3047, %v3058, %v3060
  %v3062 = vshll.u32 %v3022, 8
  %v3063 = vmul.u32.u64.compose %v3062, %v3061
  %v3064 = vextract.low.u32 %v3063
  %v3065 = vextract.high.u32 %v3063
  %v3066 = vmul.u32.u64.compose %v3062, %v3057
  %v3067 = vextract.low.u32 %v3066
  %v3068 = vextract.high.u32 %v3066
  %v3069 = vmul.u32 %v3062, %v3053
  %v3070 = vadd.s32 %v3065, %v3067
  %vm3071 = vc.u32 %v3065, %v3067
  %v3072 = vadd.s32 %v3068, 1
  %v3073 = vsel %vm3071, %v3072, %v3068
  %v3074 = vadd.s32 %v3069, %v3073
  %v3075 = vadd.s32 %v3074, 536870912
  %v3076 = vshrl.u32 %v3075, 30
  %v3077 = vshll.u32 %v3076, 30
  %v3078 = vsub.s32 %v3074, %v3077
  %vm3079 = vcmp.lt.s32.totalorder %v3078, 0
  %v3080 = vsub.s32 0, %v3078
  %v3081 = vsel %vm3079, %v3080, %v3078
  %v3082 = vclz %v3081
  %v3083 = vsub.s32 %v3082, 2
  %vm3084 = vcmp.gt.s32.totalorder 0, %v3083
  %v3085 = vsel %vm3084, 0, %v3083
  %v3086 = vsub.s32 32, %v3085
  %v3087 = vshll.u32 %v3078, %v3085
  %v3088 = vshrl.u32 %v3070, %v3086
  %v3089 = vor.u32 %v3087, %v3088
  %v3090 = vsub.s32 4294967266, %v3085
  %v3091 = vadd.s32 %v3090, 127
  %v3092 = vshll.u32 %v3091, 23
  %v3093 = vor.u32 4788187, %v3092
  %v3094 = vand.u32 2147483647, %v3093
  %v3096 = vcvt.s32.f32 %v3089
  %v3097 = vmul.f32 %v3096, %v3094
  %v3098 = vxor.u32 %v3097, 2147483648
  %v3099 = vsel %vm3016, %v3098, %v3097
  %v3100 = vsub.s32 4, %v3076
  %v3101 = vsel %vm3016, %v3100, %v3076
  %v3102 = vsel %vm3015, %v929, %v3099
  %v3103 = vsel %vm3015, 0, %v3101
  %v3104 = vcosq.f32.pop %v3102
  %v3105 = vsinq.f32.pop %v3102
  %vm3106 = vweird.f32 %v929
  %v3107 = vadd.s32 %v3103, 3
  %v3108 = vand.u32 %v3107, 3
  %vm3109 = vcmp.lt.s32.totalorder %v3108, 2
  %vm3110 = vcmp.eq.s32.totalorder %v3108, 0
  %v3111 = vxor.u32 %v3105, 2147483648
  %v3112 = vsel %vm3110, %v3104, %v3111
  %vm3113 = vcmp.eq.s32.totalorder %v3108, 2
  %v3114 = vxor.u32 %v3104, 2147483648
  %v3115 = vsel %vm3113, %v3114, %v3105
  %v3116 = vsel %vm3109, %v3112, %v3115
  %v3117 = vsel %vm3106, nan, %v3116
  %v3118 = vand.u32 2147483647, %v930
  %vm3119 = vcmp.le.f32.partialorder %v3118, 0.7853982
  %vm3120 = vcmp.lt.s32.totalorder %v930, 0
  %v3121 = vand.u32 %v930, 2139095040
  %v3122 = vshrl.u32 %v3121, 23
  %v3123 = vsub.s32 %v3122, 127
  %v3124 = vand.u32 2147483647, %v930
  %v3125 = vand.u32 %v3124, 8388607
  %v3126 = vor.u32 %v3125, 8388608
  %v3127 = vsub.s32 0, %v3126
  %v3128 = vadd.s32 %v3123, 1
  %vm3129 = vcmp.gt.s32.totalorder %v3128, 0
  %v3130 = vsel %vm3129, %v3128, 0
  %v3131 = vshrl.u32 %v3130, 5
  %v3132 = vand.u32 %v3130, 31
  %v3133 = vsub.s32 32, %v3132
  %v3134 = vshrl.u32 683565275, %v3133
  %v3135 = vshll.u32 683565275, %v3132
  %v3136 = vshrl.u32 2475754826, %v3133
  %v3137 = vor.u32 %v3135, %v3136
  %v3138 = vshll.u32 2475754826, %v3132
  %v3139 = vshrl.u32 2131351028, %v3133
  %v3140 = vor.u32 %v3138, %v3139
  %v3141 = vshll.u32 2131351028, %v3132
  %v3142 = vshrl.u32 2102212464, %v3133
  %v3143 = vor.u32 %v3141, %v3142
  %v3144 = vshll.u32 2102212464, %v3132
  %v3145 = vshrl.u32 920167782, %v3133
  %v3146 = vor.u32 %v3144, %v3145
  %v3147 = vshll.u32 920167782, %v3132
  %v3148 = vshrl.u32 1326507024, %v3133
  %v3149 = vor.u32 %v3147, %v3148
  %vm3150 = vcmp.lt.s32.totalorder %v3131, 1
  %vm3151 = vcmp.lt.s32.totalorder %v3131, 2
  %vm3152 = vcmp.lt.s32.totalorder %v3131, 3
  %vm3153 = vcmp.lt.s32.totalorder %v3131, 4
  %v3154 = vsel %vm3150, %v3134, %v3137
  %v3155 = vsel %vm3153, %v3143, 2102212464
  %v3156 = vsel %vm3152, %v3140, %v3155
  %v3157 = vsel %vm3151, %v3154, %v3156
  %v3158 = vsel %vm3150, %v3137, %v3140
  %v3159 = vsel %vm3153, %v3146, 920167782
  %v3160 = vsel %vm3152, %v3143, %v3159
  %v3161 = vsel %vm3151, %v3158, %v3160
  %v3162 = vsel %vm3150, %v3140, %v3143
  %v3163 = vsel %vm3153, %v3149, 1326507024
  %v3164 = vsel %vm3152, %v3146, %v3163
  %v3165 = vsel %vm3151, %v3162, %v3164
  %v3166 = vshll.u32 %v3126, 8
  %v3167 = vmul.u32.u64.compose %v3166, %v3165
  %v3168 = vextract.low.u32 %v3167
  %v3169 = vextract.high.u32 %v3167
  %v3170 = vmul.u32.u64.compose %v3166, %v3161
  %v3171 = vextract.low.u32 %v3170
  %v3172 = vextract.high.u32 %v3170
  %v3173 = vmul.u32 %v3166, %v3157
  %v3174 = vadd.s32 %v3169, %v3171
  %vm3175 = vc.u32 %v3169, %v3171
  %v3176 = vadd.s32 %v3172, 1
  %v3177 = vsel %vm3175, %v3176, %v3172
  %v3178 = vadd.s32 %v3173, %v3177
  %v3179 = vadd.s32 %v3178, 536870912
  %v3180 = vshrl.u32 %v3179, 30
  %v3181 = vshll.u32 %v3180, 30
  %v3182 = vsub.s32 %v3178, %v3181
  %vm3183 = vcmp.lt.s32.totalorder %v3182, 0
  %v3184 = vsub.s32 0, %v3182
  %v3185 = vsel %vm3183, %v3184, %v3182
  %v3186 = vclz %v3185
  %v3187 = vsub.s32 %v3186, 2
  %vm3188 = vcmp.gt.s32.totalorder 0, %v3187
  %v3189 = vsel %vm3188, 0, %v3187
  %v3190 = vsub.s32 32, %v3189
  %v3191 = vshll.u32 %v3182, %v3189
  %v3192 = vshrl.u32 %v3174, %v3190
  %v3193 = vor.u32 %v3191, %v3192
  %v3194 = vsub.s32 4294967266, %v3189
  %v3195 = vadd.s32 %v3194, 127
  %v3196 = vshll.u32 %v3195, 23
  %v3197 = vor.u32 4788187, %v3196
  %v3198 = vand.u32 2147483647, %v3197
  %v3200 = vcvt.s32.f32 %v3193
  %v3201 = vmul.f32 %v3200, %v3198
  %v3202 = vxor.u32 %v3201, 2147483648
  %v3203 = vsel %vm3120, %v3202, %v3201
  %v3204 = vsub.s32 4, %v3180
  %v3205 = vsel %vm3120, %v3204, %v3180
  %v3206 = vsel %vm3119, %v930, %v3203
  %v3207 = vsel %vm3119, 0, %v3205
  %v3208 = vcosq.f32.pop %v3206
  %v3209 = vsinq.f32.pop %v3206
  %vm3210 = vweird.f32 %v930
  %v3211 = vadd.s32 %v3207, 3
  %v3212 = vand.u32 %v3211, 3
  %vm3213 = vcmp.lt.s32.totalorder %v3212, 2
  %vm3214 = vcmp.eq.s32.totalorder %v3212, 0
  %v3215 = vxor.u32 %v3209, 2147483648
  %v3216 = vsel %vm3214, %v3208, %v3215
  %vm3217 = vcmp.eq.s32.totalorder %v3212, 2
  %v3218 = vxor.u32 %v3208, 2147483648
  %v3219 = vsel %vm3217, %v3218, %v3209
  %v3220 = vsel %vm3213, %v3216, %v3219
  %v3221 = vsel %vm3210, nan, %v3220
  %v3222 = vand.u32 2147483647, %v931
  %vm3223 = vcmp.le.f32.partialorder %v3222, 0.7853982
  %vm3224 = vcmp.lt.s32.totalorder %v931, 0
  %v3225 = vand.u32 %v931, 2139095040
  %v3226 = vshrl.u32 %v3225, 23
  %v3227 = vsub.s32 %v3226, 127
  %v3228 = vand.u32 2147483647, %v931
  %v3229 = vand.u32 %v3228, 8388607
  %v3230 = vor.u32 %v3229, 8388608
  %v3231 = vsub.s32 0, %v3230
  %v3232 = vadd.s32 %v3227, 1
  %vm3233 = vcmp.gt.s32.totalorder %v3232, 0
  %v3234 = vsel %vm3233, %v3232, 0
  %v3235 = vshrl.u32 %v3234, 5
  %v3236 = vand.u32 %v3234, 31
  %v3237 = vsub.s32 32, %v3236
  %v3238 = vshrl.u32 683565275, %v3237
  %v3239 = vshll.u32 683565275, %v3236
  %v3240 = vshrl.u32 2475754826, %v3237
  %v3241 = vor.u32 %v3239, %v3240
  %v3242 = vshll.u32 2475754826, %v3236
  %v3243 = vshrl.u32 2131351028, %v3237
  %v3244 = vor.u32 %v3242, %v3243
  %v3245 = vshll.u32 2131351028, %v3236
  %v3246 = vshrl.u32 2102212464, %v3237
  %v3247 = vor.u32 %v3245, %v3246
  %v3248 = vshll.u32 2102212464, %v3236
  %v3249 = vshrl.u32 920167782, %v3237
  %v3250 = vor.u32 %v3248, %v3249
  %v3251 = vshll.u32 920167782, %v3236
  %v3252 = vshrl.u32 1326507024, %v3237
  %v3253 = vor.u32 %v3251, %v3252
  %vm3254 = vcmp.lt.s32.totalorder %v3235, 1
  %vm3255 = vcmp.lt.s32.totalorder %v3235, 2
  %vm3256 = vcmp.lt.s32.totalorder %v3235, 3
  %vm3257 = vcmp.lt.s32.totalorder %v3235, 4
  %v3258 = vsel %vm3254, %v3238, %v3241
  %v3259 = vsel %vm3257, %v3247, 2102212464
  %v3260 = vsel %vm3256, %v3244, %v3259
  %v3261 = vsel %vm3255, %v3258, %v3260
  %v3262 = vsel %vm3254, %v3241, %v3244
  %v3263 = vsel %vm3257, %v3250, 920167782
  %v3264 = vsel %vm3256, %v3247, %v3263
  %v3265 = vsel %vm3255, %v3262, %v3264
  %v3266 = vsel %vm3254, %v3244, %v3247
  %v3267 = vsel %vm3257, %v3253, 1326507024
  %v3268 = vsel %vm3256, %v3250, %v3267
  %v3269 = vsel %vm3255, %v3266, %v3268
  %v3270 = vshll.u32 %v3230, 8
  %v3271 = vmul.u32.u64.compose %v3270, %v3269
  %v3272 = vextract.low.u32 %v3271
  %v3273 = vextract.high.u32 %v3271
  %v3274 = vmul.u32.u64.compose %v3270, %v3265
  %v3275 = vextract.low.u32 %v3274
  %v3276 = vextract.high.u32 %v3274
  %v3277 = vmul.u32 %v3270, %v3261
  %v3278 = vadd.s32 %v3273, %v3275
  %vm3279 = vc.u32 %v3273, %v3275
  %v3280 = vadd.s32 %v3276, 1
  %v3281 = vsel %vm3279, %v3280, %v3276
  %v3282 = vadd.s32 %v3277, %v3281
  %v3283 = vadd.s32 %v3282, 536870912
  %v3284 = vshrl.u32 %v3283, 30
  %v3285 = vshll.u32 %v3284, 30
  %v3286 = vsub.s32 %v3282, %v3285
  %vm3287 = vcmp.lt.s32.totalorder %v3286, 0
  %v3288 = vsub.s32 0, %v3286
  %v3289 = vsel %vm3287, %v3288, %v3286
  %v3290 = vclz %v3289
  %v3291 = vsub.s32 %v3290, 2
  %vm3292 = vcmp.gt.s32.totalorder 0, %v3291
  %v3293 = vsel %vm3292, 0, %v3291
  %v3294 = vsub.s32 32, %v3293
  %v3295 = vshll.u32 %v3286, %v3293
  %v3296 = vshrl.u32 %v3278, %v3294
  %v3297 = vor.u32 %v3295, %v3296
  %v3298 = vsub.s32 4294967266, %v3293
  %v3299 = vadd.s32 %v3298, 127
  %v3300 = vshll.u32 %v3299, 23
  %v3301 = vor.u32 4788187, %v3300
  %v3302 = vand.u32 2147483647, %v3301
  %v3304 = vcvt.s32.f32 %v3297
  %v3305 = vmul.f32 %v3304, %v3302
  %v3306 = vxor.u32 %v3305, 2147483648
  %v3307 = vsel %vm3224, %v3306, %v3305
  %v3308 = vsub.s32 4, %v3284
  %v3309 = vsel %vm3224, %v3308, %v3284
  %v3310 = vsel %vm3223, %v931, %v3307
  %v3311 = vsel %vm3223, 0, %v3309
  %v3312 = vcosq.f32.pop %v3310
  %v3313 = vsinq.f32.pop %v3310
  %vm3314 = vweird.f32 %v931
  %v3315 = vadd.s32 %v3311, 3
  %v3316 = vand.u32 %v3315, 3
  %vm3317 = vcmp.lt.s32.totalorder %v3316, 2
  %vm3318 = vcmp.eq.s32.totalorder %v3316, 0
  %v3319 = vxor.u32 %v3313, 2147483648
  %v3320 = vsel %vm3318, %v3312, %v3319
  %vm3321 = vcmp.eq.s32.totalorder %v3316, 2
  %v3322 = vxor.u32 %v3312, 2147483648
  %v3323 = vsel %vm3321, %v3322, %v3313
  %v3324 = vsel %vm3317, %v3320, %v3323
  %v3325 = vsel %vm3314, nan, %v3324
  %v3326 = vand.u32 2147483647, %v932
  %vm3327 = vcmp.le.f32.partialorder %v3326, 0.7853982
  %vm3328 = vcmp.lt.s32.totalorder %v932, 0
  %v3329 = vand.u32 %v932, 2139095040
  %v3330 = vshrl.u32 %v3329, 23
  %v3331 = vsub.s32 %v3330, 127
  %v3332 = vand.u32 2147483647, %v932
  %v3333 = vand.u32 %v3332, 8388607
  %v3334 = vor.u32 %v3333, 8388608
  %v3335 = vsub.s32 0, %v3334
  %v3336 = vadd.s32 %v3331, 1
  %vm3337 = vcmp.gt.s32.totalorder %v3336, 0
  %v3338 = vsel %vm3337, %v3336, 0
  %v3339 = vshrl.u32 %v3338, 5
  %v3340 = vand.u32 %v3338, 31
  %v3341 = vsub.s32 32, %v3340
  %v3342 = vshrl.u32 683565275, %v3341
  %v3343 = vshll.u32 683565275, %v3340
  %v3344 = vshrl.u32 2475754826, %v3341
  %v3345 = vor.u32 %v3343, %v3344
  %v3346 = vshll.u32 2475754826, %v3340
  %v3347 = vshrl.u32 2131351028, %v3341
  %v3348 = vor.u32 %v3346, %v3347
  %v3349 = vshll.u32 2131351028, %v3340
  %v3350 = vshrl.u32 2102212464, %v3341
  %v3351 = vor.u32 %v3349, %v3350
  %v3352 = vshll.u32 2102212464, %v3340
  %v3353 = vshrl.u32 920167782, %v3341
  %v3354 = vor.u32 %v3352, %v3353
  %v3355 = vshll.u32 920167782, %v3340
  %v3356 = vshrl.u32 1326507024, %v3341
  %v3357 = vor.u32 %v3355, %v3356
  %vm3358 = vcmp.lt.s32.totalorder %v3339, 1
  %vm3359 = vcmp.lt.s32.totalorder %v3339, 2
  %vm3360 = vcmp.lt.s32.totalorder %v3339, 3
  %vm3361 = vcmp.lt.s32.totalorder %v3339, 4
  %v3362 = vsel %vm3358, %v3342, %v3345
  %v3363 = vsel %vm3361, %v3351, 2102212464
  %v3364 = vsel %vm3360, %v3348, %v3363
  %v3365 = vsel %vm3359, %v3362, %v3364
  %v3366 = vsel %vm3358, %v3345, %v3348
  %v3367 = vsel %vm3361, %v3354, 920167782
  %v3368 = vsel %vm3360, %v3351, %v3367
  %v3369 = vsel %vm3359, %v3366, %v3368
  %v3370 = vsel %vm3358, %v3348, %v3351
  %v3371 = vsel %vm3361, %v3357, 1326507024
  %v3372 = vsel %vm3360, %v3354, %v3371
  %v3373 = vsel %vm3359, %v3370, %v3372
  %v3374 = vshll.u32 %v3334, 8
  %v3375 = vmul.u32.u64.compose %v3374, %v3373
  %v3376 = vextract.low.u32 %v3375
  %v3377 = vextract.high.u32 %v3375
  %v3378 = vmul.u32.u64.compose %v3374, %v3369
  %v3379 = vextract.low.u32 %v3378
  %v3380 = vextract.high.u32 %v3378
  %v3381 = vmul.u32 %v3374, %v3365
  %v3382 = vadd.s32 %v3377, %v3379
  %vm3383 = vc.u32 %v3377, %v3379
  %v3384 = vadd.s32 %v3380, 1
  %v3385 = vsel %vm3383, %v3384, %v3380
  %v3386 = vadd.s32 %v3381, %v3385
  %v3387 = vadd.s32 %v3386, 536870912
  %v3388 = vshrl.u32 %v3387, 30
  %v3389 = vshll.u32 %v3388, 30
  %v3390 = vsub.s32 %v3386, %v3389
  %vm3391 = vcmp.lt.s32.totalorder %v3390, 0
  %v3392 = vsub.s32 0, %v3390
  %v3393 = vsel %vm3391, %v3392, %v3390
  %v3394 = vclz %v3393
  %v3395 = vsub.s32 %v3394, 2
  %vm3396 = vcmp.gt.s32.totalorder 0, %v3395
  %v3397 = vsel %vm3396, 0, %v3395
  %v3398 = vsub.s32 32, %v3397
  %v3399 = vshll.u32 %v3390, %v3397
  %v3400 = vshrl.u32 %v3382, %v3398
  %v3401 = vor.u32 %v3399, %v3400
  %v3402 = vsub.s32 4294967266, %v3397
  %v3403 = vadd.s32 %v3402, 127
  %v3404 = vshll.u32 %v3403, 23
  %v3405 = vor.u32 4788187, %v3404
  %v3406 = vand.u32 2147483647, %v3405
  %v3408 = vcvt.s32.f32 %v3401
  %v3409 = vmul.f32 %v3408, %v3406
  %v3410 = vxor.u32 %v3409, 2147483648
  %v3411 = vsel %vm3328, %v3410, %v3409
  %v3412 = vsub.s32 4, %v3388
  %v3413 = vsel %vm3328, %v3412, %v3388
  %v3414 = vsel %vm3327, %v932, %v3411
  %v3415 = vsel %vm3327, 0, %v3413
  %v3416 = vcosq.f32.pop %v3414
  %v3417 = vsinq.f32.pop %v3414
  %vm3418 = vweird.f32 %v932
  %v3419 = vadd.s32 %v3415, 3
  %v3420 = vand.u32 %v3419, 3
  %vm3421 = vcmp.lt.s32.totalorder %v3420, 2
  %vm3422 = vcmp.eq.s32.totalorder %v3420, 0
  %v3423 = vxor.u32 %v3417, 2147483648
  %v3424 = vsel %vm3422, %v3416, %v3423
  %vm3425 = vcmp.eq.s32.totalorder %v3420, 2
  %v3426 = vxor.u32 %v3416, 2147483648
  %v3427 = vsel %vm3425, %v3426, %v3417
  %v3428 = vsel %vm3421, %v3424, %v3427
  %v3429 = vsel %vm3418, nan, %v3428
  %v3430 = vand.u32 2147483647, %v933
  %vm3431 = vcmp.le.f32.partialorder %v3430, 0.7853982
  %vm3432 = vcmp.lt.s32.totalorder %v933, 0
  %v3433 = vand.u32 %v933, 2139095040
  %v3434 = vshrl.u32 %v3433, 23
  %v3435 = vsub.s32 %v3434, 127
  %v3436 = vand.u32 2147483647, %v933
  %v3437 = vand.u32 %v3436, 8388607
  %v3438 = vor.u32 %v3437, 8388608
  %v3439 = vsub.s32 0, %v3438
  %v3440 = vadd.s32 %v3435, 1
  %vm3441 = vcmp.gt.s32.totalorder %v3440, 0
  %v3442 = vsel %vm3441, %v3440, 0
  %v3443 = vshrl.u32 %v3442, 5
  %v3444 = vand.u32 %v3442, 31
  %v3445 = vsub.s32 32, %v3444
  %v3446 = vshrl.u32 683565275, %v3445
  %v3447 = vshll.u32 683565275, %v3444
  %v3448 = vshrl.u32 2475754826, %v3445
  %v3449 = vor.u32 %v3447, %v3448
  %v3450 = vshll.u32 2475754826, %v3444
  %v3451 = vshrl.u32 2131351028, %v3445
  %v3452 = vor.u32 %v3450, %v3451
  %v3453 = vshll.u32 2131351028, %v3444
  %v3454 = vshrl.u32 2102212464, %v3445
  %v3455 = vor.u32 %v3453, %v3454
  %v3456 = vshll.u32 2102212464, %v3444
  %v3457 = vshrl.u32 920167782, %v3445
  %v3458 = vor.u32 %v3456, %v3457
  %v3459 = vshll.u32 920167782, %v3444
  %v3460 = vshrl.u32 1326507024, %v3445
  %v3461 = vor.u32 %v3459, %v3460
  %vm3462 = vcmp.lt.s32.totalorder %v3443, 1
  %vm3463 = vcmp.lt.s32.totalorder %v3443, 2
  %vm3464 = vcmp.lt.s32.totalorder %v3443, 3
  %vm3465 = vcmp.lt.s32.totalorder %v3443, 4
  %v3466 = vsel %vm3462, %v3446, %v3449
  %v3467 = vsel %vm3465, %v3455, 2102212464
  %v3468 = vsel %vm3464, %v3452, %v3467
  %v3469 = vsel %vm3463, %v3466, %v3468
  %v3470 = vsel %vm3462, %v3449, %v3452
  %v3471 = vsel %vm3465, %v3458, 920167782
  %v3472 = vsel %vm3464, %v3455, %v3471
  %v3473 = vsel %vm3463, %v3470, %v3472
  %v3474 = vsel %vm3462, %v3452, %v3455
  %v3475 = vsel %vm3465, %v3461, 1326507024
  %v3476 = vsel %vm3464, %v3458, %v3475
  %v3477 = vsel %vm3463, %v3474, %v3476
  %v3478 = vshll.u32 %v3438, 8
  %v3479 = vmul.u32.u64.compose %v3478, %v3477
  %v3480 = vextract.low.u32 %v3479
  %v3481 = vextract.high.u32 %v3479
  %v3482 = vmul.u32.u64.compose %v3478, %v3473
  %v3483 = vextract.low.u32 %v3482
  %v3484 = vextract.high.u32 %v3482
  %v3485 = vmul.u32 %v3478, %v3469
  %v3486 = vadd.s32 %v3481, %v3483
  %vm3487 = vc.u32 %v3481, %v3483
  %v3488 = vadd.s32 %v3484, 1
  %v3489 = vsel %vm3487, %v3488, %v3484
  %v3490 = vadd.s32 %v3485, %v3489
  %v3491 = vadd.s32 %v3490, 536870912
  %v3492 = vshrl.u32 %v3491, 30
  %v3493 = vshll.u32 %v3492, 30
  %v3494 = vsub.s32 %v3490, %v3493
  %vm3495 = vcmp.lt.s32.totalorder %v3494, 0
  %v3496 = vsub.s32 0, %v3494
  %v3497 = vsel %vm3495, %v3496, %v3494
  %v3498 = vclz %v3497
  %v3499 = vsub.s32 %v3498, 2
  %vm3500 = vcmp.gt.s32.totalorder 0, %v3499
  %v3501 = vsel %vm3500, 0, %v3499
  %v3502 = vsub.s32 32, %v3501
  %v3503 = vshll.u32 %v3494, %v3501
  %v3504 = vshrl.u32 %v3486, %v3502
  %v3505 = vor.u32 %v3503, %v3504
  %v3506 = vsub.s32 4294967266, %v3501
  %v3507 = vadd.s32 %v3506, 127
  %v3508 = vshll.u32 %v3507, 23
  %v3509 = vor.u32 4788187, %v3508
  %v3510 = vand.u32 2147483647, %v3509
  %v3512 = vcvt.s32.f32 %v3505
  %v3513 = vmul.f32 %v3512, %v3510
  %v3514 = vxor.u32 %v3513, 2147483648
  %v3515 = vsel %vm3432, %v3514, %v3513
  %v3516 = vsub.s32 4, %v3492
  %v3517 = vsel %vm3432, %v3516, %v3492
  %v3518 = vsel %vm3431, %v933, %v3515
  %v3519 = vsel %vm3431, 0, %v3517
  %v3520 = vcosq.f32.pop %v3518
  %v3521 = vsinq.f32.pop %v3518
  %vm3522 = vweird.f32 %v933
  %v3523 = vadd.s32 %v3519, 3
  %v3524 = vand.u32 %v3523, 3
  %vm3525 = vcmp.lt.s32.totalorder %v3524, 2
  %vm3526 = vcmp.eq.s32.totalorder %v3524, 0
  %v3527 = vxor.u32 %v3521, 2147483648
  %v3528 = vsel %vm3526, %v3520, %v3527
  %vm3529 = vcmp.eq.s32.totalorder %v3524, 2
  %v3530 = vxor.u32 %v3520, 2147483648
  %v3531 = vsel %vm3529, %v3530, %v3521
  %v3532 = vsel %vm3525, %v3528, %v3531
  %v3533 = vsel %vm3522, nan, %v3532
  %v3534 = vlaneseq
  %v3535 = vand.u32 %v3534, 127
  %vm3536 = vcmp.lt.s32.totalorder %v3535, 3
  %v3537 = vsel %vm3536, 1, 0
  %vm3538 = vcmp.eq.s32.totalorder %v3537, 1
  %v3539 = vsel %vm3538, %v909, %v1037
  %v3540 = vsel %vm3538, %v910, %v1141
  %v3541 = vsel %vm3538, %v911, %v1245
  %v3542 = vsel %vm3538, %v912, %v1349
  %v3543 = vsel %vm3538, %v913, %v1453
  %v3544 = vsel %vm3538, %v914, %v1557
  %v3545 = vsel %vm3538, %v915, %v1661
  %v3546 = vsel %vm3538, %v916, %v1765
  %v3547 = vsel %vm3538, %v917, %v1869
  %v3548 = vsel %vm3538, %v918, %v1973
  %v3549 = vsel %vm3538, %v919, %v2077
  %v3550 = vsel %vm3538, %v920, %v2181
  %v3551 = vsel %vm3538, %v921, %v2285
  %v3552 = vsel %vm3538, %v922, %v2389
  %v3553 = vsel %vm3538, %v923, %v2493
  %v3554 = vsel %vm3538, %v924, %v2597
  %v3555 = vsel %vm3538, %v925, %v2701
  %v3556 = vsel %vm3538, %v926, %v2805
  %v3557 = vsel %vm3538, %v927, %v2909
  %v3558 = vsel %vm3538, %v928, %v3013
  %v3559 = vsel %vm3538, %v929, %v3117
  %v3560 = vsel %vm3538, %v930, %v3221
  %v3561 = vsel %vm3538, %v931, %v3325
  %v3562 = vsel %vm3538, %v932, %v3429
  %v3563 = vsel %vm3538, %v933, %v3533
  %vm3564 = vcmask 564224
  %3565 = vst.msk [vmem:[%s3] sm:$0xff] %vm3564, %v3539
  %3566 = vst.msk [vmem:[%s3 + $0x8] sm:$0xff] %vm3564, %v3540
  %3567 = vst.msk [vmem:[%s3 + $0x10] sm:$0xff] %vm3564, %v3541
  %3568 = vst.msk [vmem:[%s3 + $0x18] sm:$0xff] %vm3564, %v3542
  %3569 = vst.msk [vmem:[%s3 + $0x20] sm:$0xff] %vm3564, %v3543
  %3570 = vst.msk [vmem:[%s3 + $0x28] sm:$0xff] %vm3564, %v3544
  %3571 = vst.msk [vmem:[%s3 + $0x30] sm:$0xff] %vm3564, %v3545
  %3572 = vst.msk [vmem:[%s3 + $0x38] sm:$0xff] %vm3564, %v3546
  %3573 = vst.msk [vmem:[%s3 + $0x40] sm:$0xff] %vm3564, %v3547
  %3574 = vst.msk [vmem:[%s3 + $0x48] sm:$0xff] %vm3564, %v3548
  %3575 = vst.msk [vmem:[%s3 + $0x50] sm:$0xff] %vm3564, %v3549
  %3576 = vst.msk [vmem:[%s3 + $0x58] sm:$0xff] %vm3564, %v3550
  %3577 = vst.msk [vmem:[%s3 + $0x60] sm:$0xff] %vm3564, %v3551
  %3578 = vst.msk [vmem:[%s3 + $0x68] sm:$0xff] %vm3564, %v3552
  %3579 = vst.msk [vmem:[%s3 + $0x70] sm:$0xff] %vm3564, %v3553
  %3580 = vst.msk [vmem:[%s3 + $0x78] sm:$0xff] %vm3564, %v3554
  %3581 = vst.msk [vmem:[%s3 + $0x80] sm:$0xff] %vm3564, %v3555
  %3582 = vst.msk [vmem:[%s3 + $0x88] sm:$0xff] %vm3564, %v3556
  %3583 = vst.msk [vmem:[%s3 + $0x90] sm:$0xff] %vm3564, %v3557
  %3584 = vst.msk [vmem:[%s3 + $0x98] sm:$0xff] %vm3564, %v3558
  %3585 = vst.msk [vmem:[%s3 + $0xa0] sm:$0xff] %vm3564, %v3559
  %3586 = vst.msk [vmem:[%s3 + $0xa8] sm:$0xff] %vm3564, %v3560
  %3587 = vst.msk [vmem:[%s3 + $0xb0] sm:$0xff] %vm3564, %v3561
  %3588 = vst.msk [vmem:[%s3 + $0xb8] sm:$0xff] %vm3564, %v3562
  %3589 = vst.msk [vmem:[%s3 + $0xc0] sm:$0xff] %vm3564, %v3563
  // Predicated region
  $region14: #{tpu_custom_call.1} parent=0 // pred_check
    _
  $region15: #{tpu_custom_call.1} parent=0 // pred_check_branch
    %3591 = sbr.rel (0) target = $region17
  $region16: #{tpu_custom_call.1} parent=0 // pred_region
    _
  $region17: #{tpu_custom_call.1} parent=0 // pred_fallthru
    _
  // Predicated region
  $region18: #{tpu_custom_call.1} parent=0 // pred_check
    _
  $region19: #{tpu_custom_call.1} parent=0 // pred_check_branch
    %3593 = sbr.rel (0) target = $region21
  $region20: #{tpu_custom_call.1} parent=0 // pred_region
    _
  $region21: #{tpu_custom_call.1} parent=0 // pred_fallthru
    _

</llo_original>
